<compile_context>
chip_gen: v7x
topology: tpu7x:2x2x1
jax: 0.10.0
libtpu: 0.0.40
codegen_flags: <defaults>
</compile_context>

<pallas_src>
import jax
import jax.numpy as jnp
import numpy as np
from jax.experimental import pallas as pl
from jax.experimental.pallas import tpu as pltpu

# Small stand-in sizes (resnet50 would have F_CH=2048 layer4 channels and
# D_ENC=1000 logits).
B, C, H, W = 2, 4, 16, 16
F_CH = 8          # "layer4" feature channels
D_ENC = 32        # encoder output dim
NCLS = 5
CAM_HW = 224
EPS = 1e-8        # torch cosine_similarity eps clamp
SMALL_W = 2 * NCLS + 1   # packed per-image outputs: logit(5) | score(5) | cls(1)


# ------------- Kernel 1: conv1x1 + GAP + fc + cosine + GradCAM ---------------
def fused_kernel(x_ref, cw_ref, cb_ref, fw_ref, fb_ref, proto_ref, gaze_ref,
                 small_ref, cam_ref):
    # One grid step == one image.
    # x:(1,C,S) cw:(F,C) cb:(F,1) fw:(D,F) fb:(D,1) proto:(5,D) gaze:(1,1,5)
    # small_ref:(1, 11, 1)  cam_ref:(1, 1, S)
    X = x_ref[0]                                                       # (C, S)
    A = (jnp.dot(cw_ref[...], X, preferred_element_type=jnp.float32)
         + cb_ref[...])                                                # (F, S)
    S = A.shape[-1]

    # encoder tail: global average pool (lane reduce) + linear
    pooled = jnp.mean(A, axis=-1, keepdims=True)                       # (F, 1)
    enc = (jnp.dot(fw_ref[...], pooled, preferred_element_type=jnp.float32)
           + fb_ref[...])                                              # (D, 1)

    # cosine similarity against the 5 prototypes (proto_n computed ONCE,
    # reused by the backward below — torch eps clamp on both norms)
    proto = proto_ref[...]                                             # (5, D)
    pn = jnp.maximum(jnp.sqrt(jnp.sum(proto * proto, axis=-1, keepdims=True)), EPS)
    proto_n = proto / pn                                               # (5, D)
    ne = jnp.maximum(jnp.sqrt(jnp.sum(enc * enc, axis=0, keepdims=True)), EPS)  # (1,1)
    inv_ne = 1.0 / ne
    logit = jnp.dot(proto_n, enc, preferred_element_type=jnp.float32) * inv_ne  # (5,1)

    # softmax over the 5 classes + expected-score head (sidx built in-kernel)
    m = jnp.max(logit, axis=0, keepdims=True)
    e = jnp.exp(logit - m)
    score = e / jnp.sum(e, axis=0, keepdims=True)                      # (5, 1)
    sidx = jax.lax.broadcasted_iota(jnp.int32, (NCLS, 1), 0).astype(jnp.float32) + 1.0
    cls = jnp.sum(score * sidx, axis=0, keepdims=True)                 # (1, 1)

    # Analytic GradCAM backward of sum_i gaze_i*logit_i through cosine+fc+GAP,
    # in ROW form so fc_w / proto are used untransposed:
    #   d logit_i/d enc = proto_n_i/ne - logit_i*enc/ne^2 ; d enc_d/dA[f,s]=fw[d,f]/S
    gaze_row = gaze_ref[0]                                             # (1, 5)
    term1_row = (jnp.dot(gaze_row, proto_n, preferred_element_type=jnp.float32)
                 * inv_ne)                                             # (1, D)
    wlog = jnp.dot(gaze_row, logit, preferred_element_type=jnp.float32)  # (1,1)
    coef = wlog * inv_ne * inv_ne                                      # (1, 1)
    t1f = jnp.dot(term1_row, fw_ref[...], preferred_element_type=jnp.float32)  # (1,F)
    # enc_row @ fc_w via sublane broadcast-reduce (no transpose of enc needed;
    # at real scale this product should also go on the MXU).
    e2f = jnp.sum(fw_ref[...] * enc, axis=0, keepdims=True)            # (1, F)
    w_row = (t1f - coef * e2f) * (1.0 / S)                             # (1, F) == G_row@fc_w/S
    cam = jnp.dot(w_row, A, preferred_element_type=jnp.float32)        # (1, S) on the MXU
    cam_ref[...] = jnp.maximum(cam, 0.0)[None]                         # F.relu

    # pack tiny outputs into one buffer (single output DMA). Kept
    # sublane-packed: a lane-major layout would need the dropped proto.T or an
    # extra transpose of the (5,1) logit/score columns — not worth it.
    small_ref[:, 0:NCLS, :] = logit[None]
    small_ref[:, NCLS:2 * NCLS, :] = score[None]
    small_ref[:, 2 * NCLS:SMALL_W, :] = cls[None]


# --------- Kernel 2: fused bilinear resize (MXU) + global min/max norm -------
def resize_norm_kernel(cam_ref, l_ref, r_ref, out_ref):
    # cam:(B, Hs, Ws)  l:(224, Hs)  r:(Ws, 224)  out:(B, 224, 224)  (all VMEM)
    Lm = l_ref[...]
    Rm = r_ref[...]
    nb = cam_ref.shape[0]
    bigs = []
    for b in range(nb):                       # static unroll, B is tiny
        t = jnp.dot(Lm, cam_ref[b], preferred_element_type=jnp.float32)   # (224, Hs)
        bigs.append(jnp.dot(t, Rm, preferred_element_type=jnp.float32))   # (224, 224)
    # single fused min/max pass over the resized values (no 'shifted' temp)
    mn = jnp.min(bigs[0])
    mx = jnp.max(bigs[0])
    for big in bigs[1:]:
        mn = jnp.minimum(mn, jnp.min(big))
        mx = jnp.maximum(mx, jnp.max(big))
    span = mx - mn
    inv = jnp.where(span > 0.0, 1.0 / span, 1.0)   # exact division; `if max != 0`
    for b in range(nb):
        out_ref[b] = (bigs[b] - mn) * inv


# ------------------------------- wrapper -------------------------------------
def visual_similarity_forward(x, gaze, params):
    conv_w, conv_b, fc_w, fc_b, proto = (
        params["conv_w"], params["conv_b"], params["fc_w"], params["fc_b"],
        params["proto"])
    Bx, Cx, Hx, Wx = x.shape
    S = Hx * Wx

    x3 = x.reshape(Bx, Cx, S)            # NCHW is already (B, C, H*W)-contiguous
    gaze3 = gaze[:, None, :]             # (B, 1, 5)

    small, cam3 = pl.pallas_call(
        fused_kernel,
        out_shape=(
            jax.ShapeDtypeStruct((Bx, SMALL_W, 1), jnp.float32),
            jax.ShapeDtypeStruct((Bx, 1, S), jnp.float32),
        ),
        grid_spec=pltpu.PrefetchScalarGridSpec(
            num_scalar_prefetch=0,
            grid=(Bx,),
            in_specs=[
                pl.BlockSpec((1, Cx, S), lambda b: (b, 0, 0)),      # x
                pl.BlockSpec((F_CH, Cx), lambda b: (0, 0)),         # conv_w
                pl.BlockSpec((F_CH, 1), lambda b: (0, 0)),          # conv_b
                pl.BlockSpec((D_ENC, F_CH), lambda b: (0, 0)),      # fc_w (no .T copy)
                pl.BlockSpec((D_ENC, 1), lambda b: (0, 0)),         # fc_b
                pl.BlockSpec((NCLS, D_ENC), lambda b: (0, 0)),      # proto (no .T copy)
                pl.BlockSpec((1, 1, NCLS), lambda b: (b, 0, 0)),    # gaze
            ],
            out_specs=[
                pl.BlockSpec((1, SMALL_W, 1), lambda b: (b, 0, 0)),
                pl.BlockSpec((1, 1, S), lambda b: (b, 0, 0)),
            ],
        ),
        compiler_params=pltpu.CompilerParams(
            dimension_semantics=("parallel",)),
    )(x3, conv_w, conv_b[:, None], fc_w, fc_b[:, None], proto, gaze3)

    sm = small[:, :, 0]                         # (B, 11)
    score = sm[:, NCLS:2 * NCLS]                # (B, 5)
    classified = sm[:, 2 * NCLS]                # (B,)

    cam_small = cam3.reshape(Bx, Hx, Wx)        # (B, 16, 16), zero-copy

    # Separable bilinear interpolation matrices (match jax.image.resize
    # exactly since resize is linear: L = resize(I) along rows, R along cols).
    l_mat = jax.image.resize(jnp.eye(Hx, dtype=jnp.float32), (CAM_HW, Hx),
                             method="bilinear")                       # (224, Hs)
    r_mat = jax.image.resize(jnp.eye(Wx, dtype=jnp.float32), (Wx, CAM_HW),
                             method="bilinear")                       # (Ws, 224)

    cam_norm = pl.pallas_call(
        resize_norm_kernel,
        out_shape=jax.ShapeDtypeStruct((Bx, CAM_HW, CAM_HW), jnp.float32),
        in_specs=[pl.BlockSpec(memory_space=pltpu.MemorySpace.VMEM)] * 3,
        out_specs=pl.BlockSpec(memory_space=pltpu.MemorySpace.VMEM),
        cost_estimate=pl.CostEstimate(
            flops=Bx * (2 * CAM_HW * Hx * Wx + 2 * CAM_HW * CAM_HW * Wx
                        + 3 * CAM_HW * CAM_HW),
            transcendentals=0,
            bytes_accessed=4 * (Bx * Hx * Wx + CAM_HW * Hx + Wx * CAM_HW
                                + Bx * CAM_HW * CAM_HW)),
    )(cam_small, l_mat, r_mat)

    return classified, cam_norm, score


# -------------------- pure-JAX reference (autograd GradCam) ------------------
def reference_forward(x, gaze, params):
    conv_w, conv_b, fc_w, fc_b, proto = (
        params["conv_w"], params["conv_b"], params["fc_w"], params["fc_b"],
        params["proto"])
    Bx = x.shape[0]
    A = jnp.einsum("bchw,fc->bfhw", x, conv_w) + conv_b[None, :, None, None]
    pn = jnp.maximum(jnp.linalg.norm(proto, axis=-1, keepdims=True), EPS)

    def logits_of(a):
        pooled = a.mean(axis=(2, 3))
        enc = pooled @ fc_w.T + fc_b
        ne = jnp.maximum(jnp.linalg.norm(enc, axis=-1, keepdims=True), EPS)
        return (enc @ (proto / pn).T) / ne

    logit = logits_of(A)
    score = jax.nn.softmax(logit, axis=-1)
    classified = score @ jnp.arange(1.0, 6.0, dtype=jnp.float32)

    weights = jnp.zeros((Bx, F_CH), jnp.float32)
    for i in range(NCLS):
        g = jax.grad(lambda a, ii=i: logits_of(a)[:, ii].sum())(A)
        weights = weights + g.mean(axis=(2, 3)) * gaze[:, i:i + 1]
    cam = jnp.maximum((weights[:, :, None, None] * A).sum(axis=1), 0.0)
    cam = jax.image.resize(cam, (Bx, CAM_HW, CAM_HW), method="bilinear")
    cam = cam - jnp.min(cam)
    mx = jnp.max(cam)
    cam = jnp.where(mx != 0.0, cam / mx, cam)
    return classified, cam, score


if __name__ == "__main__":
    key = jax.random.PRNGKey(0)
    kx, kg, k1, k2, k3, k4, k5 = jax.random.split(key, 7)

    x = jax.random.normal(kx, (B, C, H, W), jnp.float32)
    gaze = jax.nn.softmax(jax.random.normal(kg, (B, NCLS), jnp.float32), axis=-1)

    params = {
        "conv_w": 0.2 * jax.random.normal(k1, (F_CH, C), jnp.float32),    # layer4-analog 1x1 conv
        "conv_b": 0.1 * jax.random.normal(k2, (F_CH,), jnp.float32),
        "fc_w": 0.2 * jax.random.normal(k3, (D_ENC, F_CH), jnp.float32),  # encoder fc
        "fc_b": 0.1 * jax.random.normal(k4, (D_ENC,), jnp.float32),
        "proto": jax.random.normal(k5, (NCLS, D_ENC), jnp.float32),       # score_prototype embedding
    }

    fwd = jax.jit(visual_similarity_forward)
    classified, cam, sim_score = fwd(x, gaze, params)
    jax.block_until_ready((classified, cam, sim_score))

    ref_cls, ref_cam, ref_score = reference_forward(x, gaze, params)
    assert classified.shape == (B,)
    assert cam.shape == (B, CAM_HW, CAM_HW)
    assert sim_score.shape == (B, NCLS)
    assert np.allclose(np.asarray(classified), np.asarray(ref_cls), rtol=1e-3, atol=1e-3)
    assert np.allclose(np.asarray(sim_score), np.asarray(ref_score), rtol=1e-3, atol=1e-3)
    assert np.allclose(np.asarray(cam), np.asarray(ref_cam), rtol=1e-3, atol=1e-3)

    print("KERNEL_OK")
</pallas_src>

<mosaic_0001>
module attributes {stable_mosaic.version = 11 : i64} {
  func.func @fused_kernel(%arg0: i32, %arg1: memref<1x4x256xf32, #tpu.memory_space<vmem>>, %arg2: memref<8x4xf32, #tpu.memory_space<vmem>>, %arg3: memref<8x1xf32, #tpu.memory_space<vmem>>, %arg4: memref<32x8xf32, #tpu.memory_space<vmem>>, %arg5: memref<32x1xf32, #tpu.memory_space<vmem>>, %arg6: memref<5x32xf32, #tpu.memory_space<vmem>>, %arg7: memref<1x1x5xf32, #tpu.memory_space<vmem>>, %arg8: memref<1x11x1xf32, #tpu.memory_space<vmem>>, %arg9: memref<1x1x256xf32, #tpu.memory_space<vmem>>) attributes {dimension_semantics = [#tpu.dimension_semantics<parallel>], iteration_bounds = array<i64: 2>, scalar_prefetch = 0 : i64, scratch_operands = 0 : i64, tpu.core_type = #tpu.core_type<tc>, window_params = [{transform_indices = @transform_0, window_bounds = array<i64: 1, 4, 256>}, {pipeline_mode = #tpu.pipeline_mode<synchronous>, transform_indices = @transform_1, window_bounds = array<i64: 8, 4>}, {pipeline_mode = #tpu.pipeline_mode<synchronous>, transform_indices = @transform_2, window_bounds = array<i64: 8, 1>}, {pipeline_mode = #tpu.pipeline_mode<synchronous>, transform_indices = @transform_3, window_bounds = array<i64: 32, 8>}, {pipeline_mode = #tpu.pipeline_mode<synchronous>, transform_indices = @transform_4, window_bounds = array<i64: 32, 1>}, {pipeline_mode = #tpu.pipeline_mode<synchronous>, transform_indices = @transform_5, window_bounds = array<i64: 5, 32>}, {transform_indices = @transform_6, window_bounds = array<i64: 1, 1, 5>}, {transform_indices = @transform_7, window_bounds = array<i64: 1, 11, 1>}, {transform_indices = @transform_8, window_bounds = array<i64: 1, 1, 256>}]} {
    %c0 = arith.constant 0 : index
    %c0_0 = arith.constant 0 : index
    %c0_1 = arith.constant 0 : index
    %0 = vector.load %arg1[%c0, %c0_0, %c0_1] : memref<1x4x256xf32, #tpu.memory_space<vmem>>, vector<1x4x256xf32>
    %1 = vector.shape_cast %0 : vector<1x4x256xf32> to vector<4x256xf32>
    %c0_2 = arith.constant 0 : index
    %c0_3 = arith.constant 0 : index
    %2 = vector.load %arg2[%c0_2, %c0_3] : memref<8x4xf32, #tpu.memory_space<vmem>>, vector<8x4xf32>
    %cst = arith.constant dense<0.000000e+00> : vector<8x256xf32>
    %3 = tpu.matmul %2, %1, %cst {dimension_numbers = #tpu.dot_dimension_numbers<[1], [0], [0], [1], [0, 0, 1, 1], [], []>} : vector<8x4xf32>, vector<4x256xf32>, vector<8x256xf32> -> vector<8x256xf32>
    %c0_4 = arith.constant 0 : index
    %c0_5 = arith.constant 0 : index
    %4 = vector.load %arg3[%c0_4, %c0_5] : memref<8x1xf32, #tpu.memory_space<vmem>>, vector<8x1xf32>
    %5 = vector.broadcast %4 : vector<8x1xf32> to vector<8x256xf32>
    %6 = arith.addf %3, %5 : vector<8x256xf32>
    %cst_6 = arith.constant dense<0.000000e+00> : vector<8xf32>
    %7 = vector.multi_reduction <add>, %6, %cst_6 [1] : vector<8x256xf32> to vector<8xf32>
    %8 = vector.shape_cast %7 : vector<8xf32> to vector<8x1xf32>
    %cst_7 = arith.constant 2.560000e+02 : f32
    %9 = vector.broadcast %cst_7 : f32 to vector<8x1xf32>
    %10 = arith.divf %8, %9 : vector<8x1xf32>
    %c0_8 = arith.constant 0 : index
    %c0_9 = arith.constant 0 : index
    %11 = vector.load %arg4[%c0_8, %c0_9] : memref<32x8xf32, #tpu.memory_space<vmem>>, vector<32x8xf32>
    %cst_10 = arith.constant dense<0.000000e+00> : vector<32x1xf32>
    %12 = tpu.matmul %11, %10, %cst_10 {dimension_numbers = #tpu.dot_dimension_numbers<[1], [0], [0], [1], [0, 0, 1, 1], [], []>} : vector<32x8xf32>, vector<8x1xf32>, vector<32x1xf32> -> vector<32x1xf32>
    %c0_11 = arith.constant 0 : index
    %c0_12 = arith.constant 0 : index
    %13 = vector.load %arg5[%c0_11, %c0_12] : memref<32x1xf32, #tpu.memory_space<vmem>>, vector<32x1xf32>
    %14 = arith.addf %12, %13 : vector<32x1xf32>
    %c0_13 = arith.constant 0 : index
    %c0_14 = arith.constant 0 : index
    %15 = vector.load %arg6[%c0_13, %c0_14] : memref<5x32xf32, #tpu.memory_space<vmem>>, vector<5x32xf32>
    %16 = arith.mulf %15, %15 : vector<5x32xf32>
    %cst_15 = arith.constant dense<0.000000e+00> : vector<5xf32>
    %17 = vector.multi_reduction <add>, %16, %cst_15 [1] : vector<5x32xf32> to vector<5xf32>
    %18 = vector.shape_cast %17 : vector<5xf32> to vector<5x1xf32>
    %19 = math.sqrt %18 : vector<5x1xf32>
    %cst_16 = arith.constant 9.99999993E-9 : f32
    %20 = vector.broadcast %cst_16 : f32 to vector<5x1xf32>
    %21 = arith.maximumf %19, %20 : vector<5x1xf32>
    %22 = vector.broadcast %21 : vector<5x1xf32> to vector<5x32xf32>
    %23 = arith.divf %15, %22 : vector<5x32xf32>
    %24 = arith.mulf %14, %14 : vector<32x1xf32>
    %cst_17 = arith.constant dense<0.000000e+00> : vector<1xf32>
    %25 = vector.multi_reduction <add>, %24, %cst_17 [0] : vector<32x1xf32> to vector<1xf32>
    %26 = vector.shape_cast %25 : vector<1xf32> to vector<1x1xf32>
    %27 = math.sqrt %26 : vector<1x1xf32>
    %cst_18 = arith.constant 9.99999993E-9 : f32
    %28 = vector.broadcast %cst_18 : f32 to vector<1x1xf32>
    %29 = arith.maximumf %27, %28 : vector<1x1xf32>
    %cst_19 = arith.constant 1.000000e+00 : f32
    %30 = vector.broadcast %cst_19 : f32 to vector<1x1xf32>
    %31 = arith.divf %30, %29 : vector<1x1xf32>
    %cst_20 = arith.constant dense<0.000000e+00> : vector<5x1xf32>
    %32 = tpu.matmul %23, %14, %cst_20 {dimension_numbers = #tpu.dot_dimension_numbers<[1], [0], [0], [1], [0, 0, 1, 1], [], []>} : vector<5x32xf32>, vector<32x1xf32>, vector<5x1xf32> -> vector<5x1xf32>
    %33 = vector.broadcast %31 : vector<1x1xf32> to vector<5x1xf32>
    %34 = arith.mulf %32, %33 : vector<5x1xf32>
    %cst_21 = arith.constant dense<0xFF800000> : vector<1xf32>
    %35 = vector.multi_reduction <maximumf>, %34, %cst_21 [0] : vector<5x1xf32> to vector<1xf32>
    %36 = vector.shape_cast %35 : vector<1xf32> to vector<1x1xf32>
    %37 = vector.broadcast %36 : vector<1x1xf32> to vector<5x1xf32>
    %38 = arith.subf %34, %37 : vector<5x1xf32>
    %39 = math.exp %38 : vector<5x1xf32>
    %cst_22 = arith.constant dense<0.000000e+00> : vector<1xf32>
    %40 = vector.multi_reduction <add>, %39, %cst_22 [0] : vector<5x1xf32> to vector<1xf32>
    %41 = vector.shape_cast %40 : vector<1xf32> to vector<1x1xf32>
    %42 = vector.broadcast %41 : vector<1x1xf32> to vector<5x1xf32>
    %43 = arith.divf %39, %42 : vector<5x1xf32>
    %44 = tpu.iota {dimensions = array<i32: 0>} : vector<5x1xi32>
    %45 = arith.sitofp %44 : vector<5x1xi32> to vector<5x1xf32>
    %cst_23 = arith.constant 1.000000e+00 : f32
    %46 = vector.broadcast %cst_23 : f32 to vector<5x1xf32>
    %47 = arith.addf %45, %46 : vector<5x1xf32>
    %48 = arith.mulf %43, %47 : vector<5x1xf32>
    %cst_24 = arith.constant dense<0.000000e+00> : vector<1xf32>
    %49 = vector.multi_reduction <add>, %48, %cst_24 [0] : vector<5x1xf32> to vector<1xf32>
    %50 = vector.shape_cast %49 : vector<1xf32> to vector<1x1xf32>
    %c0_25 = arith.constant 0 : index
    %c0_26 = arith.constant 0 : index
    %c0_27 = arith.constant 0 : index
    %51 = vector.load %arg7[%c0_25, %c0_26, %c0_27] : memref<1x1x5xf32, #tpu.memory_space<vmem>>, vector<1x1x5xf32>
    %52 = vector.shape_cast %51 : vector<1x1x5xf32> to vector<1x5xf32>
    %cst_28 = arith.constant dense<0.000000e+00> : vector<1x32xf32>
    %53 = tpu.matmul %52, %23, %cst_28 {dimension_numbers = #tpu.dot_dimension_numbers<[1], [0], [0], [1], [0, 0, 1, 1], [], []>} : vector<1x5xf32>, vector<5x32xf32>, vector<1x32xf32> -> vector<1x32xf32>
    %54 = vector.broadcast %31 : vector<1x1xf32> to vector<1x32xf32>
    %55 = arith.mulf %53, %54 : vector<1x32xf32>
    %cst_29 = arith.constant dense<0.000000e+00> : vector<1x1xf32>
    %56 = tpu.matmul %52, %34, %cst_29 {dimension_numbers = #tpu.dot_dimension_numbers<[1], [0], [0], [1], [0, 0, 1, 1], [], []>} : vector<1x5xf32>, vector<5x1xf32>, vector<1x1xf32> -> vector<1x1xf32>
    %57 = arith.mulf %56, %31 : vector<1x1xf32>
    %58 = arith.mulf %57, %31 : vector<1x1xf32>
    %c0_30 = arith.constant 0 : index
    %c0_31 = arith.constant 0 : index
    %59 = vector.load %arg4[%c0_30, %c0_31] : memref<32x8xf32, #tpu.memory_space<vmem>>, vector<32x8xf32>
    %cst_32 = arith.constant dense<0.000000e+00> : vector<1x8xf32>
    %60 = tpu.matmul %55, %59, %cst_32 {dimension_numbers = #tpu.dot_dimension_numbers<[1], [0], [0], [1], [0, 0, 1, 1], [], []>} : vector<1x32xf32>, vector<32x8xf32>, vector<1x8xf32> -> vector<1x8xf32>
    %c0_33 = arith.constant 0 : index
    %c0_34 = arith.constant 0 : index
    %61 = vector.load %arg4[%c0_33, %c0_34] : memref<32x8xf32, #tpu.memory_space<vmem>>, vector<32x8xf32>
    %62 = vector.broadcast %14 : vector<32x1xf32> to vector<32x8xf32>
    %63 = arith.mulf %61, %62 : vector<32x8xf32>
    %cst_35 = arith.constant dense<0.000000e+00> : vector<8xf32>
    %64 = vector.multi_reduction <add>, %63, %cst_35 [0] : vector<32x8xf32> to vector<8xf32>
    %65 = vector.shape_cast %64 : vector<8xf32> to vector<1x8xf32>
    %66 = vector.broadcast %58 : vector<1x1xf32> to vector<1x8xf32>
    %67 = arith.mulf %66, %65 : vector<1x8xf32>
    %68 = arith.subf %60, %67 : vector<1x8xf32>
    %cst_36 = arith.constant 3.906250e-03 : f32
    %69 = vector.broadcast %cst_36 : f32 to vector<1x8xf32>
    %70 = arith.mulf %68, %69 : vector<1x8xf32>
    %cst_37 = arith.constant dense<0.000000e+00> : vector<1x256xf32>
    %71 = tpu.matmul %70, %6, %cst_37 {dimension_numbers = #tpu.dot_dimension_numbers<[1], [0], [0], [1], [0, 0, 1, 1], [], []>} : vector<1x8xf32>, vector<8x256xf32>, vector<1x256xf32> -> vector<1x256xf32>
    %cst_38 = arith.constant 0.000000e+00 : f32
    %72 = vector.broadcast %cst_38 : f32 to vector<1x256xf32>
    %73 = arith.maximumf %71, %72 : vector<1x256xf32>
    %74 = vector.shape_cast %73 : vector<1x256xf32> to vector<1x1x256xf32>
    %c0_39 = arith.constant 0 : index
    %c0_40 = arith.constant 0 : index
    %c0_41 = arith.constant 0 : index
    %75 = vector.load %arg9[%c0_39, %c0_40, %c0_41] : memref<1x1x256xf32, #tpu.memory_space<vmem>>, vector<1x1x256xf32>
    tpu.vector_store %arg9[%c0_39, %c0_40, %c0_41], %74 {strides = array<i32>} : memref<1x1x256xf32, #tpu.memory_space<vmem>>, vector<1x1x256xf32>,
    %76 = vector.shape_cast %34 : vector<5x1xf32> to vector<1x5x1xf32>
    %c0_42 = arith.constant 0 : index
    %c0_43 = arith.constant 0 : index
    %c0_44 = arith.constant 0 : index
    %77 = vector.load %arg8[%c0_42, %c0_43, %c0_44] : memref<1x11x1xf32, #tpu.memory_space<vmem>>, vector<1x5x1xf32>
    tpu.vector_store %arg8[%c0_42, %c0_43, %c0_44], %76 {strides = array<i32>} : memref<1x11x1xf32, #tpu.memory_space<vmem>>, vector<1x5x1xf32>,
    %78 = vector.shape_cast %43 : vector<5x1xf32> to vector<1x5x1xf32>
    %c0_45 = arith.constant 0 : index
    %c5 = arith.constant 5 : index
    %c0_46 = arith.constant 0 : index
    %79 = vector.load %arg8[%c0_45, %c5, %c0_46] : memref<1x11x1xf32, #tpu.memory_space<vmem>>, vector<1x5x1xf32>
    tpu.vector_store %arg8[%c0_45, %c5, %c0_46], %78 {strides = array<i32>} : memref<1x11x1xf32, #tpu.memory_space<vmem>>, vector<1x5x1xf32>,
    %80 = vector.shape_cast %50 : vector<1x1xf32> to vector<1x1x1xf32>
    %c0_47 = arith.constant 0 : index
    %c10 = arith.constant 10 : index
    %c0_48 = arith.constant 0 : index
    %81 = vector.load %arg8[%c0_47, %c10, %c0_48] : memref<1x11x1xf32, #tpu.memory_space<vmem>>, vector<1x1x1xf32>
    tpu.vector_store %arg8[%c0_47, %c10, %c0_48], %80 {strides = array<i32>} : memref<1x11x1xf32, #tpu.memory_space<vmem>>, vector<1x1x1xf32>,
    return
  }
  func.func @transform_0(%arg0: i32) -> (i32, i32, i32) {
    %c0_i32 = arith.constant 0 : i32
    %c0_i32_0 = arith.constant 0 : i32
    %c0_i32_1 = arith.constant 0 : i32
    return %arg0, %c0_i32, %c0_i32_0 : i32, i32, i32
  }
  func.func @transform_1(%arg0: i32) -> (i32, i32) {
    %c0_i32 = arith.constant 0 : i32
    %c0_i32_0 = arith.constant 0 : i32
    %c0_i32_1 = arith.constant 0 : i32
    return %c0_i32, %c0_i32_0 : i32, i32
  }
  func.func @transform_2(%arg0: i32) -> (i32, i32) {
    %c0_i32 = arith.constant 0 : i32
    %c0_i32_0 = arith.constant 0 : i32
    %c0_i32_1 = arith.constant 0 : i32
    return %c0_i32, %c0_i32_0 : i32, i32
  }
  func.func @transform_3(%arg0: i32) -> (i32, i32) {
    %c0_i32 = arith.constant 0 : i32
    %c0_i32_0 = arith.constant 0 : i32
    %c0_i32_1 = arith.constant 0 : i32
    return %c0_i32, %c0_i32_0 : i32, i32
  }
  func.func @transform_4(%arg0: i32) -> (i32, i32) {
    %c0_i32 = arith.constant 0 : i32
    %c0_i32_0 = arith.constant 0 : i32
    %c0_i32_1 = arith.constant 0 : i32
    return %c0_i32, %c0_i32_0 : i32, i32
  }
  func.func @transform_5(%arg0: i32) -> (i32, i32) {
    %c0_i32 = arith.constant 0 : i32
    %c0_i32_0 = arith.constant 0 : i32
    %c0_i32_1 = arith.constant 0 : i32
    return %c0_i32, %c0_i32_0 : i32, i32
  }
  func.func @transform_6(%arg0: i32) -> (i32, i32, i32) {
    %c0_i32 = arith.constant 0 : i32
    %c0_i32_0 = arith.constant 0 : i32
    %c0_i32_1 = arith.constant 0 : i32
    return %arg0, %c0_i32, %c0_i32_0 : i32, i32, i32
  }
  func.func @transform_7(%arg0: i32) -> (i32, i32, i32) {
    %c0_i32 = arith.constant 0 : i32
    %c0_i32_0 = arith.constant 0 : i32
    %c0_i32_1 = arith.constant 0 : i32
    return %arg0, %c0_i32, %c0_i32_0 : i32, i32, i32
  }
  func.func @transform_8(%arg0: i32) -> (i32, i32, i32) {
    %c0_i32 = arith.constant 0 : i32
    %c0_i32_0 = arith.constant 0 : i32
    %c0_i32_1 = arith.constant 0 : i32
    return %arg0, %c0_i32, %c0_i32_0 : i32, i32, i32
  }
}

module attributes {stable_mosaic.version = 11 : i64} {
  func.func @resize_norm_kernel(%arg0: memref<2x16x16xf32, #tpu.memory_space<vmem>>, %arg1: memref<224x16xf32, #tpu.memory_space<vmem>>, %arg2: memref<16x224xf32, #tpu.memory_space<vmem>>, %arg3: memref<2x224x224xf32, #tpu.memory_space<vmem>>) attributes {dimension_semantics = [], scalar_prefetch = 0 : i64, scratch_operands = 0 : i64, tpu.core_type = #tpu.core_type<tc>} {
    %c0 = arith.constant 0 : index
    %c0_0 = arith.constant 0 : index
    %0 = vector.load %arg1[%c0, %c0_0] : memref<224x16xf32, #tpu.memory_space<vmem>>, vector<224x16xf32>
    %c0_1 = arith.constant 0 : index
    %c0_2 = arith.constant 0 : index
    %1 = vector.load %arg2[%c0_1, %c0_2] : memref<16x224xf32, #tpu.memory_space<vmem>>, vector<16x224xf32>
    %c0_3 = arith.constant 0 : index
    %c0_4 = arith.constant 0 : index
    %c0_5 = arith.constant 0 : index
    %2 = vector.load %arg0[%c0_3, %c0_4, %c0_5] : memref<2x16x16xf32, #tpu.memory_space<vmem>>, vector<1x16x16xf32>
    %3 = vector.shape_cast %2 : vector<1x16x16xf32> to vector<16x16xf32>
    %cst = arith.constant dense<0.000000e+00> : vector<224x16xf32>
    %4 = tpu.matmul %0, %3, %cst {dimension_numbers = #tpu.dot_dimension_numbers<[1], [0], [0], [1], [0, 0, 1, 1], [], []>} : vector<224x16xf32>, vector<16x16xf32>, vector<224x16xf32> -> vector<224x16xf32>
    %cst_6 = arith.constant dense<0.000000e+00> : vector<224x224xf32>
    %5 = tpu.matmul %4, %1, %cst_6 {dimension_numbers = #tpu.dot_dimension_numbers<[1], [0], [0], [1], [0, 0, 1, 1], [], []>} : vector<224x16xf32>, vector<16x224xf32>, vector<224x224xf32> -> vector<224x224xf32>
    %c1 = arith.constant 1 : index
    %c0_7 = arith.constant 0 : index
    %c0_8 = arith.constant 0 : index
    %6 = vector.load %arg0[%c1, %c0_7, %c0_8] : memref<2x16x16xf32, #tpu.memory_space<vmem>>, vector<1x16x16xf32>
    %7 = vector.shape_cast %6 : vector<1x16x16xf32> to vector<16x16xf32>
    %cst_9 = arith.constant dense<0.000000e+00> : vector<224x16xf32>
    %8 = tpu.matmul %0, %7, %cst_9 {dimension_numbers = #tpu.dot_dimension_numbers<[1], [0], [0], [1], [0, 0, 1, 1], [], []>} : vector<224x16xf32>, vector<16x16xf32>, vector<224x16xf32> -> vector<224x16xf32>
    %cst_10 = arith.constant dense<0.000000e+00> : vector<224x224xf32>
    %9 = tpu.matmul %8, %1, %cst_10 {dimension_numbers = #tpu.dot_dimension_numbers<[1], [0], [0], [1], [0, 0, 1, 1], [], []>} : vector<224x16xf32>, vector<16x224xf32>, vector<224x224xf32> -> vector<224x224xf32>
    %10 = vector.shape_cast %5 : vector<224x224xf32> to vector<1x224x224xf32>
    %cst_11 = arith.constant dense<0x7F800000> : vector<1xf32>
    %11 = vector.multi_reduction <minimumf>, %10, %cst_11 [1, 2] : vector<1x224x224xf32> to vector<1xf32>
    %12 = vector.shape_cast %11 : vector<1xf32> to vector<1x1x1xf32>
    %13 = vector.extract %12[0, 0, 0] : f32 from vector<1x1x1xf32>
    %14 = vector.shape_cast %5 : vector<224x224xf32> to vector<1x224x224xf32>
    %cst_12 = arith.constant dense<0xFF800000> : vector<1xf32>
    %15 = vector.multi_reduction <maximumf>, %14, %cst_12 [1, 2] : vector<1x224x224xf32> to vector<1xf32>
    %16 = vector.shape_cast %15 : vector<1xf32> to vector<1x1x1xf32>
    %17 = vector.extract %16[0, 0, 0] : f32 from vector<1x1x1xf32>
    %18 = vector.shape_cast %9 : vector<224x224xf32> to vector<1x224x224xf32>
    %cst_13 = arith.constant dense<0x7F800000> : vector<1xf32>
    %19 = vector.multi_reduction <minimumf>, %18, %cst_13 [1, 2] : vector<1x224x224xf32> to vector<1xf32>
    %20 = vector.shape_cast %19 : vector<1xf32> to vector<1x1x1xf32>
    %21 = vector.extract %20[0, 0, 0] : f32 from vector<1x1x1xf32>
    %22 = arith.minimumf %13, %21 : f32
    %23 = vector.shape_cast %9 : vector<224x224xf32> to vector<1x224x224xf32>
    %cst_14 = arith.constant dense<0xFF800000> : vector<1xf32>
    %24 = vector.multi_reduction <maximumf>, %23, %cst_14 [1, 2] : vector<1x224x224xf32> to vector<1xf32>
    %25 = vector.shape_cast %24 : vector<1xf32> to vector<1x1x1xf32>
    %26 = vector.extract %25[0, 0, 0] : f32 from vector<1x1x1xf32>
    %27 = arith.maximumf %17, %26 : f32
    %28 = arith.subf %27, %22 : f32
    %cst_15 = arith.constant 0.000000e+00 : f32
    %29 = arith.cmpf ogt, %28, %cst_15 : f32
    %cst_16 = arith.constant 1.000000e+00 : f32
    %30 = arith.divf %cst_16, %28 : f32
    %cst_17 = arith.constant 1.000000e+00 : f32
    %31 = arith.select %29, %30, %cst_17 : f32
    %32 = vector.broadcast %22 : f32 to vector<224x224xf32>
    %33 = arith.subf %5, %32 : vector<224x224xf32>
    %34 = vector.broadcast %31 : f32 to vector<224x224xf32>
    %35 = arith.mulf %33, %34 : vector<224x224xf32>
    %c0_18 = arith.constant 0 : index
    %c0_19 = arith.constant 0 : index
    %c0_20 = arith.constant 0 : index
    %36 = vector.load %arg3[%c0_18, %c0_19, %c0_20] : memref<2x224x224xf32, #tpu.memory_space<vmem>>, vector<1x224x224xf32>
    %37 = vector.shape_cast %36 : vector<1x224x224xf32> to vector<224x224xf32>
    %38 = vector.shape_cast %35 : vector<224x224xf32> to vector<1x224x224xf32>
    tpu.vector_store %arg3[%c0_18, %c0_19, %c0_20], %38 {strides = array<i32>} : memref<2x224x224xf32, #tpu.memory_space<vmem>>, vector<1x224x224xf32>,
    %39 = vector.broadcast %22 : f32 to vector<224x224xf32>
    %40 = arith.subf %9, %39 : vector<224x224xf32>
    %41 = vector.broadcast %31 : f32 to vector<224x224xf32>
    %42 = arith.mulf %40, %41 : vector<224x224xf32>
    %c1_21 = arith.constant 1 : index
    %c0_22 = arith.constant 0 : index
    %c0_23 = arith.constant 0 : index
    %43 = vector.load %arg3[%c1_21, %c0_22, %c0_23] : memref<2x224x224xf32, #tpu.memory_space<vmem>>, vector<1x224x224xf32>
    %44 = vector.shape_cast %43 : vector<1x224x224xf32> to vector<224x224xf32>
    %45 = vector.shape_cast %42 : vector<224x224xf32> to vector<1x224x224xf32>
    tpu.vector_store %arg3[%c1_21, %c0_22, %c0_23], %45 {strides = array<i32>} : memref<2x224x224xf32, #tpu.memory_space<vmem>>, vector<1x224x224xf32>,
    return
  }
}

</mosaic_0001>

<llo_original>
// kernel: visual_similarity_forward.2
$region0: #{visual_similarity_forward.2}
  #allocation0 [shape = 'u32[]', space=smem, size = 0x4, offset = 0x4, fixed_abs, tag = 'smem constant byte address 0x4 - core index']
  #allocation1 [shape = 'u32[144,128]{1,0:T(1,128)}', space=vmem, size = 0x12000, scoped, tag = 'internal scratch']
  %s0 = inlined_call_operand.vmem [shape: f32[2,4,256], index: 0, kind: input, shape index: {}]
  %s1 = inlined_call_operand.vmem [shape: f32[8,4], index: 1, kind: input, shape index: {}]
  %s2 = inlined_call_operand.vmem [shape: f32[8,1], index: 2, kind: input, shape index: {}]
  %s3 = inlined_call_operand.vmem [shape: f32[32,8], index: 3, kind: input, shape index: {}]
  %s4 = inlined_call_operand.vmem [shape: f32[32,1], index: 4, kind: input, shape index: {}]
  %s5 = inlined_call_operand.vmem [shape: f32[5,32], index: 5, kind: input, shape index: {}]
  %s6 = inlined_call_operand.vmem [shape: f32[2,1,5], index: 6, kind: input, shape index: {}]
  %s7 = inlined_call_operand.vmem [shape: f32[2,11,1], index: 7, kind: output, shape index: {0}]
  %s8 = inlined_call_operand.vmem [shape: f32[2,1,256], index: 8, kind: output, shape index: {1}]
  %9 = xla_tuple %s7, %s8
  %s10 = sld [smem:[#allocation0]]
  $region69: #{visual_similarity_forward.2} parent=0
    _
  %s12 = ssub.s32 1, %s10
  %s13 = scalar_select 0, %s12, %s10
  loop: start=0, step=1, limit=4
  $region2: #{visual_similarity_forward.2} parent=0 // loop_pre_header
    _
  $region3: #{visual_similarity_forward.2} parent=0 // loop_header
    %s15 = sphi 0, %s19
    %p16 = scmp.ge.s32.totalorder %s15, 4
    %s25 = sphi 0, %s27
    %s28 = sphi 0, %s25
    %s29 = sphi 0, %s28
    %s45 = sphi 0, %s29
    %s49 = sphi 0, %s49
    %s51 = sphi 0, %s49
    %s52 = sphi 0, %s51
    %s66 = sphi 0, %s52
    %s70 = sphi 0, %s70
    %s72 = sphi 0, %s70
    %s73 = sphi 0, %s72
    %s87 = sphi 0, %s73
    %s91 = sphi 0, %s91
    %s93 = sphi 0, %s91
    %s94 = sphi 0, %s93
    %s108 = sphi 0, %s94
    %s112 = sphi 0, %s112
    %s114 = sphi 0, %s112
    %s115 = sphi 0, %s114
    %s129 = sphi 0, %s115
    %s133 = sphi 0, %s133
    %s135 = sphi 0, %s133
    %s136 = sphi 0, %s135
    %s150 = sphi 0, %s136
    %s156 = sphi 0, %s158
    %s159 = sphi 0, %s156
    %s160 = sphi 0, %s159
    %s176 = sphi 0, %s160
    %s182 = sphi 0, %s184
    %s185 = sphi 0, %s182
    %s186 = sphi 0, %s185
    %s202 = sphi 0, %s186
    %s208 = sphi 0, %s210
    %s211 = sphi 0, %s208
    %s212 = sphi 0, %s211
    %s228 = sphi 0, %s212
  $region4: #{visual_similarity_forward.2} parent=0 // loop_header_branch
    %18 = sbr.rel (%p16) target = $region8
  $region5: #{visual_similarity_forward.2} parent=0 // loop_body
    %s20 = ssub.s32 %s15, 1
    %s21 = ssub.s32 %s15, 2
    %s22 = sadd.s32 %s15, 1
    %s23 = ssub.s32 %s15, %s22
    %p24 = scmp.eq.s32.totalorder %s23, 0
    %s26 = sadd.s32 %s25, 1
    %s27 = scalar_select %p24, %s25, %s26
    %p30 = pneg %p24
    %p31 = scmp.eq.s32.totalorder %s15, 1
    %p32 = por %p30, %p31
    %p33 = scmp.ne.s32.totalorder %s25, %s28
    %p34 = scmp.eq.s32.totalorder %s15, 0
    %p35 = por %p33, %p34
    %p36 = scmp.ne.s32.totalorder %s25, %s28
    %p37 = scmp.eq.s32.totalorder %s20, 1
    %p38 = por %p36, %p37
    %p39 = scmp.ne.s32.totalorder %s28, %s29
    %p40 = scmp.eq.s32.totalorder %s20, 0
    %p41 = por %p39, %p40
    %p42 = scmp.ne.s32.totalorder %s28, %s29
    %p43 = scmp.eq.s32.totalorder %s21, 1
    %p44 = por %p42, %p43
    %p46 = scmp.ne.s32.totalorder %s29, %s45
    %p47 = scmp.eq.s32.totalorder %s21, 0
    %p48 = por %p46, %p47
    %s50 = sadd.s32 %s49, 1
    %p53 = scmp.eq.s32.totalorder %s15, 1
    %p54 = scmp.ne.s32.totalorder %s49, %s51
    %p55 = scmp.eq.s32.totalorder %s15, 0
    %p56 = por %p54, %p55
    %p57 = scmp.ne.s32.totalorder %s49, %s51
    %p58 = scmp.eq.s32.totalorder %s20, 1
    %p59 = por %p57, %p58
    %p60 = scmp.ne.s32.totalorder %s51, %s52
    %p61 = scmp.eq.s32.totalorder %s20, 0
    %p62 = por %p60, %p61
    %p63 = scmp.ne.s32.totalorder %s51, %s52
    %p64 = scmp.eq.s32.totalorder %s21, 1
    %p65 = por %p63, %p64
    %p67 = scmp.ne.s32.totalorder %s52, %s66
    %p68 = scmp.eq.s32.totalorder %s21, 0
    %p69 = por %p67, %p68
    %s71 = sadd.s32 %s70, 1
    %p74 = scmp.eq.s32.totalorder %s15, 1
    %p75 = scmp.ne.s32.totalorder %s70, %s72
    %p76 = scmp.eq.s32.totalorder %s15, 0
    %p77 = por %p75, %p76
    %p78 = scmp.ne.s32.totalorder %s70, %s72
    %p79 = scmp.eq.s32.totalorder %s20, 1
    %p80 = por %p78, %p79
    %p81 = scmp.ne.s32.totalorder %s72, %s73
    %p82 = scmp.eq.s32.totalorder %s20, 0
    %p83 = por %p81, %p82
    %p84 = scmp.ne.s32.totalorder %s72, %s73
    %p85 = scmp.eq.s32.totalorder %s21, 1
    %p86 = por %p84, %p85
    %p88 = scmp.ne.s32.totalorder %s73, %s87
    %p89 = scmp.eq.s32.totalorder %s21, 0
    %p90 = por %p88, %p89
    %s92 = sadd.s32 %s91, 1
    %p95 = scmp.eq.s32.totalorder %s15, 1
    %p96 = scmp.ne.s32.totalorder %s91, %s93
    %p97 = scmp.eq.s32.totalorder %s15, 0
    %p98 = por %p96, %p97
    %p99 = scmp.ne.s32.totalorder %s91, %s93
    %p100 = scmp.eq.s32.totalorder %s20, 1
    %p101 = por %p99, %p100
    %p102 = scmp.ne.s32.totalorder %s93, %s94
    %p103 = scmp.eq.s32.totalorder %s20, 0
    %p104 = por %p102, %p103
    %p105 = scmp.ne.s32.totalorder %s93, %s94
    %p106 = scmp.eq.s32.totalorder %s21, 1
    %p107 = por %p105, %p106
    %p109 = scmp.ne.s32.totalorder %s94, %s108
    %p110 = scmp.eq.s32.totalorder %s21, 0
    %p111 = por %p109, %p110
    %s113 = sadd.s32 %s112, 1
    %p116 = scmp.eq.s32.totalorder %s15, 1
    %p117 = scmp.ne.s32.totalorder %s112, %s114
    %p118 = scmp.eq.s32.totalorder %s15, 0
    %p119 = por %p117, %p118
    %p120 = scmp.ne.s32.totalorder %s112, %s114
    %p121 = scmp.eq.s32.totalorder %s20, 1
    %p122 = por %p120, %p121
    %p123 = scmp.ne.s32.totalorder %s114, %s115
    %p124 = scmp.eq.s32.totalorder %s20, 0
    %p125 = por %p123, %p124
    %p126 = scmp.ne.s32.totalorder %s114, %s115
    %p127 = scmp.eq.s32.totalorder %s21, 1
    %p128 = por %p126, %p127
    %p130 = scmp.ne.s32.totalorder %s115, %s129
    %p131 = scmp.eq.s32.totalorder %s21, 0
    %p132 = por %p130, %p131
    %s134 = sadd.s32 %s133, 1
    %p137 = scmp.eq.s32.totalorder %s15, 1
    %p138 = scmp.ne.s32.totalorder %s133, %s135
    %p139 = scmp.eq.s32.totalorder %s15, 0
    %p140 = por %p138, %p139
    %p141 = scmp.ne.s32.totalorder %s133, %s135
    %p142 = scmp.eq.s32.totalorder %s20, 1
    %p143 = por %p141, %p142
    %p144 = scmp.ne.s32.totalorder %s135, %s136
    %p145 = scmp.eq.s32.totalorder %s20, 0
    %p146 = por %p144, %p145
    %p147 = scmp.ne.s32.totalorder %s135, %s136
    %p148 = scmp.eq.s32.totalorder %s21, 1
    %p149 = por %p147, %p148
    %p151 = scmp.ne.s32.totalorder %s136, %s150
    %p152 = scmp.eq.s32.totalorder %s21, 0
    %p153 = por %p151, %p152
    %s154 = ssub.s32 %s15, %s22
    %p155 = scmp.eq.s32.totalorder %s154, 0
    %s157 = sadd.s32 %s156, 1
    %s158 = scalar_select %p155, %s156, %s157
    %p161 = pneg %p155
    %p162 = scmp.eq.s32.totalorder %s15, 1
    %p163 = por %p161, %p162
    %p164 = scmp.ne.s32.totalorder %s156, %s159
    %p165 = scmp.eq.s32.totalorder %s15, 0
    %p166 = por %p164, %p165
    %p167 = scmp.ne.s32.totalorder %s156, %s159
    %p168 = scmp.eq.s32.totalorder %s20, 1
    %p169 = por %p167, %p168
    %p170 = scmp.ne.s32.totalorder %s159, %s160
    %p171 = scmp.eq.s32.totalorder %s20, 0
    %p172 = por %p170, %p171
    %p173 = scmp.ne.s32.totalorder %s159, %s160
    %p174 = scmp.eq.s32.totalorder %s21, 1
    %p175 = por %p173, %p174
    %p177 = scmp.ne.s32.totalorder %s160, %s176
    %p178 = scmp.eq.s32.totalorder %s21, 0
    %p179 = por %p177, %p178
    %s180 = ssub.s32 %s15, %s22
    %p181 = scmp.eq.s32.totalorder %s180, 0
    %s183 = sadd.s32 %s182, 1
    %s184 = scalar_select %p181, %s182, %s183
    %p187 = pneg %p181
    %p188 = scmp.eq.s32.totalorder %s15, 1
    %p189 = por %p187, %p188
    %p190 = scmp.ne.s32.totalorder %s182, %s185
    %p191 = scmp.eq.s32.totalorder %s15, 0
    %p192 = por %p190, %p191
    %p193 = scmp.ne.s32.totalorder %s182, %s185
    %p194 = scmp.eq.s32.totalorder %s20, 1
    %p195 = por %p193, %p194
    %p196 = scmp.ne.s32.totalorder %s185, %s186
    %p197 = scmp.eq.s32.totalorder %s20, 0
    %p198 = por %p196, %p197
    %p199 = scmp.ne.s32.totalorder %s185, %s186
    %p200 = scmp.eq.s32.totalorder %s21, 1
    %p201 = por %p199, %p200
    %p203 = scmp.ne.s32.totalorder %s186, %s202
    %p204 = scmp.eq.s32.totalorder %s21, 0
    %p205 = por %p203, %p204
    %s206 = ssub.s32 %s15, %s22
    %p207 = scmp.eq.s32.totalorder %s206, 0
    %s209 = sadd.s32 %s208, 1
    %s210 = scalar_select %p207, %s208, %s209
    %p213 = pneg %p207
    %p214 = scmp.eq.s32.totalorder %s15, 1
    %p215 = por %p213, %p214
    %p216 = scmp.ne.s32.totalorder %s208, %s211
    %p217 = scmp.eq.s32.totalorder %s15, 0
    %p218 = por %p216, %p217
    %p219 = scmp.ne.s32.totalorder %s208, %s211
    %p220 = scmp.eq.s32.totalorder %s20, 1
    %p221 = por %p219, %p220
    %p222 = scmp.ne.s32.totalorder %s211, %s212
    %p223 = scmp.eq.s32.totalorder %s20, 0
    %p224 = por %p222, %p223
    %p225 = scmp.ne.s32.totalorder %s211, %s212
    %p226 = scmp.eq.s32.totalorder %s21, 1
    %p227 = por %p225, %p226
    %p229 = scmp.ne.s32.totalorder %s212, %s228
    %p230 = scmp.eq.s32.totalorder %s21, 0
    %p231 = por %p229, %p230
    %p232 = scmp.le.s32.totalorder 1, %s15
    %p233 = scmp.lt.s32.totalorder %s15, 3
    %p234 = pnand %p232, %p233
    %p235 = pneg %p234
    // Predicated region
    $region9: #{visual_similarity_forward.2} parent=5 // pred_check
      _
    $region10: #{visual_similarity_forward.2} parent=5 // pred_check_branch
      %237 = sbr.rel (%p234) target = $region12
    $region11: #{visual_similarity_forward.2} parent=5 // pred_region
      %s238 = ssub.s32 %s15, 1
      // Predicated region
      $region13: #{visual_similarity_forward.2} parent=11 // pred_check
        %p239 = pneg %p62
      $region14: #{visual_similarity_forward.2} parent=11 // pred_check_branch
        %241 = sbr.rel (%p239) target = $region16
      $region15: #{visual_similarity_forward.2} parent=11 // pred_region
        _
      $region16: #{visual_similarity_forward.2} parent=11 // pred_fallthru
        _
      // Predicated region
      $region17: #{visual_similarity_forward.2} parent=11 // pred_check
        %p242 = pneg %p83
      $region18: #{visual_similarity_forward.2} parent=11 // pred_check_branch
        %244 = sbr.rel (%p242) target = $region20
      $region19: #{visual_similarity_forward.2} parent=11 // pred_region
        _
      $region20: #{visual_similarity_forward.2} parent=11 // pred_fallthru
        _
      // Predicated region
      $region21: #{visual_similarity_forward.2} parent=11 // pred_check
        %p245 = pneg %p104
      $region22: #{visual_similarity_forward.2} parent=11 // pred_check_branch
        %247 = sbr.rel (%p245) target = $region24
      $region23: #{visual_similarity_forward.2} parent=11 // pred_region
        _
      $region24: #{visual_similarity_forward.2} parent=11 // pred_fallthru
        _
      // Predicated region
      $region25: #{visual_similarity_forward.2} parent=11 // pred_check
        %p248 = pneg %p125
      $region26: #{visual_similarity_forward.2} parent=11 // pred_check_branch
        %250 = sbr.rel (%p248) target = $region28
      $region27: #{visual_similarity_forward.2} parent=11 // pred_region
        _
      $region28: #{visual_similarity_forward.2} parent=11 // pred_fallthru
        _
      // Predicated region
      $region29: #{visual_similarity_forward.2} parent=11 // pred_check
        %p251 = pneg %p146
      $region30: #{visual_similarity_forward.2} parent=11 // pred_check_branch
        %253 = sbr.rel (%p251) target = $region32
      $region31: #{visual_similarity_forward.2} parent=11 // pred_region
        _
      $region32: #{visual_similarity_forward.2} parent=11 // pred_fallthru
        _
    $region12: #{visual_similarity_forward.2} parent=5 // pred_fallthru
      _
    %p254 = scmp.lt.s32.totalorder %s15, 2
    // Predicated region
    $region33: #{visual_similarity_forward.2} parent=5 // pred_check
      %p255 = pneg %p254
    $region34: #{visual_similarity_forward.2} parent=5 // pred_check_branch
      %257 = sbr.rel (%p255) target = $region36
    $region35: #{visual_similarity_forward.2} parent=5 // pred_region
      // Predicated region
      $region37: #{visual_similarity_forward.2} parent=35 // pred_check
        %p258 = pneg %p35
      $region38: #{visual_similarity_forward.2} parent=35 // pred_check_branch
        %260 = sbr.rel (%p258) target = $region40
      $region39: #{visual_similarity_forward.2} parent=35 // pred_region
        %p261 = scmp.lt.s32.totalorder %s15, 1
        %s262 = scalar_select %p261, %s15, 1
        %s263 = smul.addr %s262, 2
        %s264 = smul.addr %s263, 4
        %s265 = scalar_lea.vmem %s0, %s264
      $region40: #{visual_similarity_forward.2} parent=35 // pred_fallthru
        _
      // Predicated region
      $region41: #{visual_similarity_forward.2} parent=35 // pred_check
        %p266 = pneg %p166
      $region42: #{visual_similarity_forward.2} parent=35 // pred_check_branch
        %268 = sbr.rel (%p266) target = $region44
      $region43: #{visual_similarity_forward.2} parent=35 // pred_region
        %p269 = scmp.lt.s32.totalorder %s15, 1
        %s270 = scalar_select %p269, %s15, 1
        %s271 = scalar_lea.vmem %s6, %s270
      $region44: #{visual_similarity_forward.2} parent=35 // pred_fallthru
        _
    $region36: #{visual_similarity_forward.2} parent=5 // pred_fallthru
      _
    %p272 = scmp.le.s32.totalorder 1, %s15
    %p273 = scmp.lt.s32.totalorder %s15, 3
    %p274 = pnand %p272, %p273
    %p275 = pneg %p274
    // Predicated region
    $region45: #{visual_similarity_forward.2} parent=5 // pred_check
      _
    $region46: #{visual_similarity_forward.2} parent=5 // pred_check_branch
      %277 = sbr.rel (%p274) target = $region48
    $region47: #{visual_similarity_forward.2} parent=5 // pred_region
      %s278 = ssub.s32 %s15, 1
      %p279 = scmp.lt.s32.totalorder %s20, 1
      %s280 = scalar_select %p279, %s20, 1
      %s281 = smul.addr %s280, 2
      %s282 = smul.addr %s281, 4
      %s283 = scalar_lea.vmem %s0, %s282
      %p284 = pneg %p41
      %p285 = pneg %p38
      %p286 = pneg %p62
      %p287 = pneg %p59
      %p288 = pneg %p83
      %p289 = pneg %p80
      %p290 = pneg %p104
      %p291 = pneg %p101
      %p292 = pneg %p125
      %p293 = pneg %p122
      %p294 = pneg %p146
      %p295 = pneg %p143
      %p296 = scmp.lt.s32.totalorder %s20, 1
      %s297 = scalar_select %p296, %s20, 1
      %s298 = scalar_lea.vmem %s6, %s297
      %p299 = pneg %p172
      %p300 = pneg %p169
      %p301 = pneg %p198
      %p302 = pneg %p195
      %p303 = scmp.lt.s32.totalorder %s20, 1
      %s304 = scalar_select %p303, %s20, 1
      %s305 = smul.addr %s304, 2
      %s306 = smul.addr %s305, 8
      %s307 = scalar_lea.vmem %s7, %s306
      %p308 = pneg %p224
      %p309 = pneg %p221
      %p310 = scmp.lt.s32.totalorder %s20, 1
      %s311 = scalar_select %p310, %s20, 1
      %s312 = smul.addr %s311, 2
      %s313 = scalar_lea.vmem %s8, %s312
      %p314 = scmp.lt.s32.totalorder %s20, 1
      %s315 = scalar_select %p314, %s20, 1
      %s316 = smul.addr %s315, 2
      %s317 = smul.addr %s316, 4
      %s318 = scalar_lea.vmem %s0, %s317
      %p319 = scmp.lt.s32.totalorder %s20, 1
      %s320 = scalar_select %p319, %s20, 1
      %s321 = scalar_lea.vmem %s6, %s320
      %p322 = scmp.lt.s32.totalorder %s20, 1
      %s323 = scalar_select %p322, %s20, 1
      %s324 = smul.addr %s323, 2
      %s325 = smul.addr %s324, 8
      %s326 = scalar_lea.vmem %s7, %s325
      %p327 = scmp.lt.s32.totalorder %s20, 1
      %s328 = scalar_select %p327, %s20, 1
      %s329 = smul.addr %s328, 2
      %s330 = scalar_lea.vmem %s8, %s329
      %v331 = vld [vmem:[%s318] sm:$0xff]
      %v332 = vld [vmem:[%s1] sm:$0xff]
      %v333 = vld [vmem:[%s2] sm:$0xff]
      %335 = vset.pattern.permute.xlu0 0
      %336 = vperm.xlu0 %335, %v333
      %v337 = vpop.permute.xlu0 %336
      %v340 = vcombine.high %v331, %v331
      %vm341 = vcmask 31744
      %v343 = vsel %vm341, %v332, 0
      %vm345 = vcmask 1043456
      %v346 = vsel %vm345, %v331, 0
      %v348 = vsel %vm345, %v340, 0
      %350 = vmatprep.subr.mxu0 %v348
      %351 = vmatpush1.msra.mxu0 %v346
      %352 = vmatprep.subr.mxu0 0.0
      %353 = vmatpush1.msra.mxu0 0.0
      %354 = vmatprep.subr.mxu0 0.0
      %355 = vmatpush1.msra.mxu0 0.0
      %356 = vmatprep.subr.mxu0 0.0
      %357 = vmatpush1.msra.mxu0 0.0
      %358 = vmatprep.subr.mxu0 0.0
      %359 = vmatpush1.msra.mxu0 0.0
      %360 = vmatprep.subr.mxu0 0.0
      %361 = vmatpush1.msra.mxu0 0.0
      %362 = vmatprep.subr.mxu0 0.0
      %363 = vmatpush1.msra.mxu0 0.0
      %364 = vmatprep.subr.mxu0 0.0
      %365 = vmatpush1.msra.mxu0 0.0
      %366 = vmatprep.subr.mxu0 0.0
      %367 = vmatpush1.msra.mxu0 0.0
      %368 = vmatprep.subr.mxu0 0.0
      %369 = vmatpush1.msra.mxu0 0.0
      %370 = vmatprep.subr.mxu0 0.0
      %371 = vmatpush1.msra.mxu0 0.0
      %372 = vmatprep.subr.mxu0 0.0
      %373 = vmatpush1.msra.mxu0 0.0
      %374 = vmatprep.subr.mxu0 0.0
      %375 = vmatpush1.msra.mxu0 0.0
      %376 = vmatprep.subr.mxu0 0.0
      %377 = vmatpush1.msra.mxu0 0.0
      %378 = vmatprep.subr.mxu0 0.0
      %379 = vmatpush1.msra.mxu0 0.0
      %380 = vmatprep.subr.mxu0 0.0
      %381 = vmatpush1.msra.mxu0 0.0
      %382 = vmatprep.subr.mxu0 0.0
      %383 = vmatpush1.msra.mxu0 0.0
      %384 = vmatprep.subr.mxu0 0.0
      %385 = vmatpush1.msra.mxu0 0.0
      %386 = vmatprep.subr.mxu0 0.0
      %387 = vmatpush1.msra.mxu0 0.0
      %388 = vmatprep.subr.mxu0 0.0
      %389 = vmatpush1.msra.mxu0 0.0
      %390 = vmatprep.subr.mxu0 0.0
      %391 = vmatpush1.msra.mxu0 0.0
      %392 = vmatprep.subr.mxu0 0.0
      %393 = vmatpush1.msra.mxu0 0.0
      %394 = vmatprep.subr.mxu0 0.0
      %395 = vmatpush1.msra.mxu0 0.0
      %396 = vmatprep.subr.mxu0 0.0
      %397 = vmatpush1.msra.mxu0 0.0
      %398 = vmatprep.subr.mxu0 0.0
      %399 = vmatpush1.msra.mxu0 0.0
      %400 = vmatprep.subr.mxu0 0.0
      %401 = vmatpush1.msra.mxu0 0.0
      %402 = vmatprep.subr.mxu0 0.0
      %403 = vmatpush1.msra.mxu0 0.0
      %404 = vmatprep.subr.mxu0 0.0
      %405 = vmatpush1.msra.mxu0 0.0
      %406 = vmatprep.subr.mxu0 0.0
      %407 = vmatpush1.msra.mxu0 0.0
      %408 = vmatprep.subr.mxu0 0.0
      %409 = vmatpush1.msra.mxu0 0.0
      %410 = vmatprep.subr.mxu0 0.0
      %411 = vmatpush1.msra.mxu0 0.0
      %412 = vmatprep.subr.mxu0 0.0
      %413 = vmatpush1.msra.mxu0 0.0
      %414 = vmatprep.mubr.f32.mxu0 0.0
      %415 = vmatmul.mubr.f32.gmra.mrb[0].mxu0 %v343
      %v416 = vpop.f32.mrb[0].mxu0
      %v417 = vadd.f32 %v337, %v416
      %v418 = vpop.f32.mrb[0].mxu0
      %v419 = vadd.f32 %v337, %v418
      %420 = vdwg.mxu0
      %v421 = vadd.f32 %v417, %v419
      %422 = vadd.xlane.f32.xlu0 %v421
      %v423 = vpop.xlane.xlu0 %422
      %v424 = vrcp.pop 256.0
      %v425 = vmul.f32 %v423, %v424
      %v426 = vld [vmem:[%s3] sm:$0xff]
      %v427 = vld [vmem:[%s3 + $0x8] sm:$0xff]
      %v428 = vld [vmem:[%s3 + $0x10] sm:$0xff]
      %v429 = vld [vmem:[%s3 + $0x18] sm:$0xff]
      %v430 = vld [vmem:[%s4] sm:$0xff]
      %v431 = vld [vmem:[%s4 + $0x8] sm:$0xff]
      %v432 = vld [vmem:[%s4 + $0x10] sm:$0xff]
      %v433 = vld [vmem:[%s4 + $0x18] sm:$0xff]
      %vm434 = vcmask 64512
      %v436 = vsel %vm434, %v426, 0
      %v439 = vsel %vm434, %v427, 0
      %v442 = vsel %vm434, %v428, 0
      %v445 = vsel %vm434, %v429, 0
      %447 = vmatprep.subr.mxu0 0.0
      %448 = vmatpush1.msra.mxu0 %v425
      %449 = vmatprep.subr.mxu0 0.0
      %450 = vmatpush1.msra.mxu0 0.0
      %451 = vmatprep.subr.mxu0 0.0
      %452 = vmatpush1.msra.mxu0 0.0
      %453 = vmatprep.subr.mxu0 0.0
      %454 = vmatpush1.msra.mxu0 0.0
      %455 = vmatprep.subr.mxu0 0.0
      %456 = vmatpush1.msra.mxu0 0.0
      %457 = vmatprep.subr.mxu0 0.0
      %458 = vmatpush1.msra.mxu0 0.0
      %459 = vmatprep.subr.mxu0 0.0
      %460 = vmatpush1.msra.mxu0 0.0
      %461 = vmatprep.subr.mxu0 0.0
      %462 = vmatpush1.msra.mxu0 0.0
      %463 = vmatprep.subr.mxu0 0.0
      %464 = vmatpush1.msra.mxu0 0.0
      %465 = vmatprep.subr.mxu0 0.0
      %466 = vmatpush1.msra.mxu0 0.0
      %467 = vmatprep.subr.mxu0 0.0
      %468 = vmatpush1.msra.mxu0 0.0
      %469 = vmatprep.subr.mxu0 0.0
      %470 = vmatpush1.msra.mxu0 0.0
      %471 = vmatprep.subr.mxu0 0.0
      %472 = vmatpush1.msra.mxu0 0.0
      %473 = vmatprep.subr.mxu0 0.0
      %474 = vmatpush1.msra.mxu0 0.0
      %475 = vmatprep.subr.mxu0 0.0
      %476 = vmatpush1.msra.mxu0 0.0
      %477 = vmatprep.subr.mxu0 0.0
      %478 = vmatpush1.msra.mxu0 0.0
      %479 = vmatprep.subr.mxu0 0.0
      %480 = vmatpush1.msra.mxu0 0.0
      %481 = vmatprep.subr.mxu0 0.0
      %482 = vmatpush1.msra.mxu0 0.0
      %483 = vmatprep.subr.mxu0 0.0
      %484 = vmatpush1.msra.mxu0 0.0
      %485 = vmatprep.subr.mxu0 0.0
      %486 = vmatpush1.msra.mxu0 0.0
      %487 = vmatprep.subr.mxu0 0.0
      %488 = vmatpush1.msra.mxu0 0.0
      %489 = vmatprep.subr.mxu0 0.0
      %490 = vmatpush1.msra.mxu0 0.0
      %491 = vmatprep.subr.mxu0 0.0
      %492 = vmatpush1.msra.mxu0 0.0
      %493 = vmatprep.subr.mxu0 0.0
      %494 = vmatpush1.msra.mxu0 0.0
      %495 = vmatprep.subr.mxu0 0.0
      %496 = vmatpush1.msra.mxu0 0.0
      %497 = vmatprep.subr.mxu0 0.0
      %498 = vmatpush1.msra.mxu0 0.0
      %499 = vmatprep.subr.mxu0 0.0
      %500 = vmatpush1.msra.mxu0 0.0
      %501 = vmatprep.subr.mxu0 0.0
      %502 = vmatpush1.msra.mxu0 0.0
      %503 = vmatprep.subr.mxu0 0.0
      %504 = vmatpush1.msra.mxu0 0.0
      %505 = vmatprep.subr.mxu0 0.0
      %506 = vmatpush1.msra.mxu0 0.0
      %507 = vmatprep.subr.mxu0 0.0
      %508 = vmatpush1.msra.mxu0 0.0
      %509 = vmatprep.subr.mxu0 0.0
      %510 = vmatpush1.msra.mxu0 0.0
      %511 = vmatprep.mubr.f32.mxu0 0.0
      %512 = vmatmul.mubr.f32.gmra.mrb[0].mxu0 %v436
      %v513 = vpop.f32.mrb[0].mxu0
      %v514 = vadd.f32 %v430, %v513
      %v515 = vpop.f32.mrb[0].mxu0
      %516 = vmatprep.mubr.f32.mxu0 0.0
      %517 = vmatmul.mubr.f32.gmra.mrb[0].mxu0 %v439
      %v518 = vpop.f32.mrb[0].mxu0
      %v519 = vadd.f32 %v431, %v518
      %v520 = vpop.f32.mrb[0].mxu0
      %521 = vmatprep.mubr.f32.mxu0 0.0
      %522 = vmatmul.mubr.f32.gmra.mrb[0].mxu0 %v442
      %v523 = vpop.f32.mrb[0].mxu0
      %v524 = vadd.f32 %v432, %v523
      %v525 = vpop.f32.mrb[0].mxu0
      %526 = vmatprep.mubr.f32.mxu0 0.0
      %527 = vmatmul.mubr.f32.gmra.mrb[0].mxu0 %v445
      %v528 = vpop.f32.mrb[0].mxu0
      %v529 = vadd.f32 %v433, %v528
      %v530 = vpop.f32.mrb[0].mxu0
      %531 = vdwg.mxu0
      %v532 = vld [vmem:[%s5] sm:$0x1f]
      %v533 = vmul.f32 %v532, %v532
      %vm534 = vcmask 258048
      %v535 = vsel %vm534, %v533, 0.0
      %536 = vadd.xlane.f32.xlu0 %v535
      %v537 = vpop.xlane.xlu0 %536
      %v538 = vrsqrt.pop %v537
      %v539 = vmul.f32 %v537, %v538
      %vm540 = vcmp.eq.f32.partialorder %v537, inf
      %v541 = vsel %vm540, %v537, %v539
      %vm542 = vcmp.eq.f32.partialorder %v537, 0.0
      %v543 = vand.u32 %v537, 2147483648
      %v544 = vsel %vm542, %v543, %v541
      %v545 = vmax.f32 %v544, 1e-08
      %v546 = vrcp.pop %v545
      %v547 = vmul.f32 %v532, %v546
      %v548 = vmul.f32 %v514, %v514
      %v549 = vmul.f32 %v519, %v519
      %v550 = vmul.f32 %v524, %v524
      %v551 = vmul.f32 %v529, %v529
      %vm552 = vcmask 7168
      %v553 = vsel %vm552, %v548, 0.0
      %v554 = vsel %vm552, %v549, 0.0
      %v555 = vadd.f32 %v553, %v554
      %v556 = vsel %vm552, %v550, 0.0
      %v557 = vadd.f32 %v555, %v556
      %v558 = vsel %vm552, %v551, 0.0
      %v559 = vadd.f32 %v557, %v558
      %v560 = vrot.slane %v559, 4
      %v561 = vadd.f32 %v559, %v560
      %v562 = vrot.slane %v561, 2
      %v563 = vadd.f32 %v561, %v562
      %v564 = vrot.slane %v563, 1
      %v565 = vadd.f32 %v563, %v564
      %v566 = vrsqrt.pop %v565
      %v567 = vmul.f32 %v565, %v566
      %vm568 = vcmp.eq.f32.partialorder %v565, inf
      %v569 = vsel %vm568, %v565, %v567
      %vm570 = vcmp.eq.f32.partialorder %v565, 0.0
      %v571 = vand.u32 %v565, 2147483648
      %v572 = vsel %vm570, %v571, %v569
      %v573 = vmax.f32 %v572, 1e-08
      %v574 = vrcp.pop %v573
      %v575 = vmul.f32 1.0, %v574
      %vm576 = vcmask 261120
      %v578 = vsel %vm576, %v547, 0
      %580 = vmatprep.subr.mxu0 0.0
      %581 = vmatpush1.msra.mxu0 %v514
      %582 = vmatprep.subr.mxu0 0.0
      %583 = vmatpush1.msra.mxu0 %v519
      %584 = vmatprep.subr.mxu0 0.0
      %585 = vmatpush1.msra.mxu0 %v524
      %586 = vmatprep.subr.mxu0 0.0
      %587 = vmatpush1.msra.mxu0 %v529
      %588 = vmatprep.subr.mxu0 0.0
      %589 = vmatpush1.msra.mxu0 0.0
      %590 = vmatprep.subr.mxu0 0.0
      %591 = vmatpush1.msra.mxu0 0.0
      %592 = vmatprep.subr.mxu0 0.0
      %593 = vmatpush1.msra.mxu0 0.0
      %594 = vmatprep.subr.mxu0 0.0
      %595 = vmatpush1.msra.mxu0 0.0
      %596 = vmatprep.subr.mxu0 0.0
      %597 = vmatpush1.msra.mxu0 0.0
      %598 = vmatprep.subr.mxu0 0.0
      %599 = vmatpush1.msra.mxu0 0.0
      %600 = vmatprep.subr.mxu0 0.0
      %601 = vmatpush1.msra.mxu0 0.0
      %602 = vmatprep.subr.mxu0 0.0
      %603 = vmatpush1.msra.mxu0 0.0
      %604 = vmatprep.subr.mxu0 0.0
      %605 = vmatpush1.msra.mxu0 0.0
      %606 = vmatprep.subr.mxu0 0.0
      %607 = vmatpush1.msra.mxu0 0.0
      %608 = vmatprep.subr.mxu0 0.0
      %609 = vmatpush1.msra.mxu0 0.0
      %610 = vmatprep.subr.mxu0 0.0
      %611 = vmatpush1.msra.mxu0 0.0
      %612 = vmatprep.subr.mxu0 0.0
      %613 = vmatpush1.msra.mxu0 0.0
      %614 = vmatprep.subr.mxu0 0.0
      %615 = vmatpush1.msra.mxu0 0.0
      %616 = vmatprep.subr.mxu0 0.0
      %617 = vmatpush1.msra.mxu0 0.0
      %618 = vmatprep.subr.mxu0 0.0
      %619 = vmatpush1.msra.mxu0 0.0
      %620 = vmatprep.subr.mxu0 0.0
      %621 = vmatpush1.msra.mxu0 0.0
      %622 = vmatprep.subr.mxu0 0.0
      %623 = vmatpush1.msra.mxu0 0.0
      %624 = vmatprep.subr.mxu0 0.0
      %625 = vmatpush1.msra.mxu0 0.0
      %626 = vmatprep.subr.mxu0 0.0
      %627 = vmatpush1.msra.mxu0 0.0
      %628 = vmatprep.subr.mxu0 0.0
      %629 = vmatpush1.msra.mxu0 0.0
      %630 = vmatprep.subr.mxu0 0.0
      %631 = vmatpush1.msra.mxu0 0.0
      %632 = vmatprep.subr.mxu0 0.0
      %633 = vmatpush1.msra.mxu0 0.0
      %634 = vmatprep.subr.mxu0 0.0
      %635 = vmatpush1.msra.mxu0 0.0
      %636 = vmatprep.subr.mxu0 0.0
      %637 = vmatpush1.msra.mxu0 0.0
      %638 = vmatprep.subr.mxu0 0.0
      %639 = vmatpush1.msra.mxu0 0.0
      %640 = vmatprep.subr.mxu0 0.0
      %641 = vmatpush1.msra.mxu0 0.0
      %642 = vmatprep.subr.mxu0 0.0
      %643 = vmatpush1.msra.mxu0 0.0
      %644 = vmatprep.mubr.f32.mxu0 0.0
      %645 = vmatmul.mubr.f32.gmra.mrb[0].mxu0 %v578
      %v646 = vpop.f32.mrb[0].mxu0
      %v647 = vadd.f32 0.0, %v646
      %v648 = vpop.f32.mrb[0].mxu0
      %649 = vdwg.mxu0
      %v650 = vmul.f32 %v647, %v575
      %vm651 = vcmask 4096
      %v652 = vsel %vm651, %v650, -inf
      %v653 = vrot.slane %v652, 4
      %v654 = vmax.f32 %v652, %v653
      %v655 = vrot.slane %v654, 2
      %v656 = vmax.f32 %v654, %v655
      %v657 = vrot.slane %v656, 1
      %v658 = vmax.f32 %v656, %v657
      %v659 = vsub.f32 %v650, %v658
      %v660 = vmul.f32 %v659, 1.442695
      %v661 = vpow.pop %v660
      %v662 = vsel %vm651, %v661, 0.0
      %v663 = vrot.slane %v662, 4
      %v664 = vadd.f32 %v662, %v663
      %v665 = vrot.slane %v664, 2
      %v666 = vadd.f32 %v664, %v665
      %v667 = vrot.slane %v666, 1
      %v668 = vadd.f32 %v666, %v667
      %v669 = vrcp.pop %v668
      %v670 = vmul.f32 %v661, %v669
      %v671 = vlaneseq
      %v672 = vshrl.u32 %v671, 7
      %v673 = vcvt.s32.f32 %v672
      %v674 = vadd.f32 %v673, 1.0
      %v675 = vmul.f32 %v670, %v674
      %v676 = vsel %vm651, %v675, 0.0
      %v677 = vrot.slane %v676, 4
      %v678 = vadd.f32 %v676, %v677
      %v679 = vrot.slane %v678, 2
      %v680 = vadd.f32 %v678, %v679
      %v681 = vrot.slane %v680, 1
      %v682 = vadd.f32 %v680, %v681
      %v683 = vld [vmem:[%s321] sm:$0x1]
      %vm684 = vcmask 39936
      %v686 = vsel %vm684, %v683, 0
      %vm688 = vcmask 1044480
      %v689 = vsel %vm688, %v547, 0
      %691 = vmatprep.subr.mxu0 0.0
      %692 = vmatpush1.msra.mxu0 %v689
      %693 = vmatprep.subr.mxu0 0.0
      %694 = vmatpush1.msra.mxu0 0.0
      %695 = vmatprep.subr.mxu0 0.0
      %696 = vmatpush1.msra.mxu0 0.0
      %697 = vmatprep.subr.mxu0 0.0
      %698 = vmatpush1.msra.mxu0 0.0
      %699 = vmatprep.subr.mxu0 0.0
      %700 = vmatpush1.msra.mxu0 0.0
      %701 = vmatprep.subr.mxu0 0.0
      %702 = vmatpush1.msra.mxu0 0.0
      %703 = vmatprep.subr.mxu0 0.0
      %704 = vmatpush1.msra.mxu0 0.0
      %705 = vmatprep.subr.mxu0 0.0
      %706 = vmatpush1.msra.mxu0 0.0
      %707 = vmatprep.subr.mxu0 0.0
      %708 = vmatpush1.msra.mxu0 0.0
      %709 = vmatprep.subr.mxu0 0.0
      %710 = vmatpush1.msra.mxu0 0.0
      %711 = vmatprep.subr.mxu0 0.0
      %712 = vmatpush1.msra.mxu0 0.0
      %713 = vmatprep.subr.mxu0 0.0
      %714 = vmatpush1.msra.mxu0 0.0
      %715 = vmatprep.subr.mxu0 0.0
      %716 = vmatpush1.msra.mxu0 0.0
      %717 = vmatprep.subr.mxu0 0.0
      %718 = vmatpush1.msra.mxu0 0.0
      %719 = vmatprep.subr.mxu0 0.0
      %720 = vmatpush1.msra.mxu0 0.0
      %721 = vmatprep.subr.mxu0 0.0
      %722 = vmatpush1.msra.mxu0 0.0
      %723 = vmatprep.subr.mxu0 0.0
      %724 = vmatpush1.msra.mxu0 0.0
      %725 = vmatprep.subr.mxu0 0.0
      %726 = vmatpush1.msra.mxu0 0.0
      %727 = vmatprep.subr.mxu0 0.0
      %728 = vmatpush1.msra.mxu0 0.0
      %729 = vmatprep.subr.mxu0 0.0
      %730 = vmatpush1.msra.mxu0 0.0
      %731 = vmatprep.subr.mxu0 0.0
      %732 = vmatpush1.msra.mxu0 0.0
      %733 = vmatprep.subr.mxu0 0.0
      %734 = vmatpush1.msra.mxu0 0.0
      %735 = vmatprep.subr.mxu0 0.0
      %736 = vmatpush1.msra.mxu0 0.0
      %737 = vmatprep.subr.mxu0 0.0
      %738 = vmatpush1.msra.mxu0 0.0
      %739 = vmatprep.subr.mxu0 0.0
      %740 = vmatpush1.msra.mxu0 0.0
      %741 = vmatprep.subr.mxu0 0.0
      %742 = vmatpush1.msra.mxu0 0.0
      %743 = vmatprep.subr.mxu0 0.0
      %744 = vmatpush1.msra.mxu0 0.0
      %745 = vmatprep.subr.mxu0 0.0
      %746 = vmatpush1.msra.mxu0 0.0
      %747 = vmatprep.subr.mxu0 0.0
      %748 = vmatpush1.msra.mxu0 0.0
      %749 = vmatprep.subr.mxu0 0.0
      %750 = vmatpush1.msra.mxu0 0.0
      %751 = vmatprep.subr.mxu0 0.0
      %752 = vmatpush1.msra.mxu0 0.0
      %753 = vmatprep.subr.mxu0 0.0
      %754 = vmatpush1.msra.mxu0 0.0
      %755 = vmatprep.mubr.f32.mxu0 0.0
      %756 = vmatmul.mubr.f32.gmra.mrb[0].mxu0 %v686
      %v757 = vpop.f32.mrb[0].mxu0
      %v758 = vadd.f32 0.0, %v757
      %v759 = vpop.f32.mrb[0].mxu0
      %760 = vdwg.mxu0
      %762 = vset.pattern.permute.xlu0 0
      %763 = vperm.xlu0 %762, %v575
      %v764 = vpop.permute.xlu0 %763
      %v766 = vmul.f32 %v758, %v764
      %v768 = vsel %vm688, %v650, 0
      %770 = vmatprep.subr.mxu0 0.0
      %771 = vmatpush1.msra.mxu0 %v768
      %772 = vmatprep.subr.mxu0 0.0
      %773 = vmatpush1.msra.mxu0 0.0
      %774 = vmatprep.subr.mxu0 0.0
      %775 = vmatpush1.msra.mxu0 0.0
      %776 = vmatprep.subr.mxu0 0.0
      %777 = vmatpush1.msra.mxu0 0.0
      %778 = vmatprep.subr.mxu0 0.0
      %779 = vmatpush1.msra.mxu0 0.0
      %780 = vmatprep.subr.mxu0 0.0
      %781 = vmatpush1.msra.mxu0 0.0
      %782 = vmatprep.subr.mxu0 0.0
      %783 = vmatpush1.msra.mxu0 0.0
      %784 = vmatprep.subr.mxu0 0.0
      %785 = vmatpush1.msra.mxu0 0.0
      %786 = vmatprep.subr.mxu0 0.0
      %787 = vmatpush1.msra.mxu0 0.0
      %788 = vmatprep.subr.mxu0 0.0
      %789 = vmatpush1.msra.mxu0 0.0
      %790 = vmatprep.subr.mxu0 0.0
      %791 = vmatpush1.msra.mxu0 0.0
      %792 = vmatprep.subr.mxu0 0.0
      %793 = vmatpush1.msra.mxu0 0.0
      %794 = vmatprep.subr.mxu0 0.0
      %795 = vmatpush1.msra.mxu0 0.0
      %796 = vmatprep.subr.mxu0 0.0
      %797 = vmatpush1.msra.mxu0 0.0
      %798 = vmatprep.subr.mxu0 0.0
      %799 = vmatpush1.msra.mxu0 0.0
      %800 = vmatprep.subr.mxu0 0.0
      %801 = vmatpush1.msra.mxu0 0.0
      %802 = vmatprep.subr.mxu0 0.0
      %803 = vmatpush1.msra.mxu0 0.0
      %804 = vmatprep.subr.mxu0 0.0
      %805 = vmatpush1.msra.mxu0 0.0
      %806 = vmatprep.subr.mxu0 0.0
      %807 = vmatpush1.msra.mxu0 0.0
      %808 = vmatprep.subr.mxu0 0.0
      %809 = vmatpush1.msra.mxu0 0.0
      %810 = vmatprep.subr.mxu0 0.0
      %811 = vmatpush1.msra.mxu0 0.0
      %812 = vmatprep.subr.mxu0 0.0
      %813 = vmatpush1.msra.mxu0 0.0
      %814 = vmatprep.subr.mxu0 0.0
      %815 = vmatpush1.msra.mxu0 0.0
      %816 = vmatprep.subr.mxu0 0.0
      %817 = vmatpush1.msra.mxu0 0.0
      %818 = vmatprep.subr.mxu0 0.0
      %819 = vmatpush1.msra.mxu0 0.0
      %820 = vmatprep.subr.mxu0 0.0
      %821 = vmatpush1.msra.mxu0 0.0
      %822 = vmatprep.subr.mxu0 0.0
      %823 = vmatpush1.msra.mxu0 0.0
      %824 = vmatprep.subr.mxu0 0.0
      %825 = vmatpush1.msra.mxu0 0.0
      %826 = vmatprep.subr.mxu0 0.0
      %827 = vmatpush1.msra.mxu0 0.0
      %828 = vmatprep.subr.mxu0 0.0
      %829 = vmatpush1.msra.mxu0 0.0
      %830 = vmatprep.subr.mxu0 0.0
      %831 = vmatpush1.msra.mxu0 0.0
      %832 = vmatprep.subr.mxu0 0.0
      %833 = vmatpush1.msra.mxu0 0.0
      %834 = vmatprep.mubr.f32.mxu0 0.0
      %835 = vmatmul.mubr.f32.gmra.mrb[0].mxu0 %v686
      %v836 = vpop.f32.mrb[0].mxu0
      %v837 = vadd.f32 0.0, %v836
      %v838 = vpop.f32.mrb[0].mxu0
      %839 = vdwg.mxu0
      %v840 = vmul.f32 %v837, %v575
      %v841 = vmul.f32 %v840, %v575
      %v843 = vsel %vm576, %v766, 0
      %845 = vmatprep.subr.mxu0 0.0
      %846 = vmatpush1.msra.mxu0 %v426
      %847 = vmatprep.subr.mxu0 0.0
      %848 = vmatpush1.msra.mxu0 %v427
      %849 = vmatprep.subr.mxu0 0.0
      %850 = vmatpush1.msra.mxu0 %v428
      %851 = vmatprep.subr.mxu0 0.0
      %852 = vmatpush1.msra.mxu0 %v429
      %853 = vmatprep.subr.mxu0 0.0
      %854 = vmatpush1.msra.mxu0 0.0
      %855 = vmatprep.subr.mxu0 0.0
      %856 = vmatpush1.msra.mxu0 0.0
      %857 = vmatprep.subr.mxu0 0.0
      %858 = vmatpush1.msra.mxu0 0.0
      %859 = vmatprep.subr.mxu0 0.0
      %860 = vmatpush1.msra.mxu0 0.0
      %861 = vmatprep.subr.mxu0 0.0
      %862 = vmatpush1.msra.mxu0 0.0
      %863 = vmatprep.subr.mxu0 0.0
      %864 = vmatpush1.msra.mxu0 0.0
      %865 = vmatprep.subr.mxu0 0.0
      %866 = vmatpush1.msra.mxu0 0.0
      %867 = vmatprep.subr.mxu0 0.0
      %868 = vmatpush1.msra.mxu0 0.0
      %869 = vmatprep.subr.mxu0 0.0
      %870 = vmatpush1.msra.mxu0 0.0
      %871 = vmatprep.subr.mxu0 0.0
      %872 = vmatpush1.msra.mxu0 0.0
      %873 = vmatprep.subr.mxu0 0.0
      %874 = vmatpush1.msra.mxu0 0.0
      %875 = vmatprep.subr.mxu0 0.0
      %876 = vmatpush1.msra.mxu0 0.0
      %877 = vmatprep.subr.mxu0 0.0
      %878 = vmatpush1.msra.mxu0 0.0
      %879 = vmatprep.subr.mxu0 0.0
      %880 = vmatpush1.msra.mxu0 0.0
      %881 = vmatprep.subr.mxu0 0.0
      %882 = vmatpush1.msra.mxu0 0.0
      %883 = vmatprep.subr.mxu0 0.0
      %884 = vmatpush1.msra.mxu0 0.0
      %885 = vmatprep.subr.mxu0 0.0
      %886 = vmatpush1.msra.mxu0 0.0
      %887 = vmatprep.subr.mxu0 0.0
      %888 = vmatpush1.msra.mxu0 0.0
      %889 = vmatprep.subr.mxu0 0.0
      %890 = vmatpush1.msra.mxu0 0.0
      %891 = vmatprep.subr.mxu0 0.0
      %892 = vmatpush1.msra.mxu0 0.0
      %893 = vmatprep.subr.mxu0 0.0
      %894 = vmatpush1.msra.mxu0 0.0
      %895 = vmatprep.subr.mxu0 0.0
      %896 = vmatpush1.msra.mxu0 0.0
      %897 = vmatprep.subr.mxu0 0.0
      %898 = vmatpush1.msra.mxu0 0.0
      %899 = vmatprep.subr.mxu0 0.0
      %900 = vmatpush1.msra.mxu0 0.0
      %901 = vmatprep.subr.mxu0 0.0
      %902 = vmatpush1.msra.mxu0 0.0
      %903 = vmatprep.subr.mxu0 0.0
      %904 = vmatpush1.msra.mxu0 0.0
      %905 = vmatprep.subr.mxu0 0.0
      %906 = vmatpush1.msra.mxu0 0.0
      %907 = vmatprep.subr.mxu0 0.0
      %908 = vmatpush1.msra.mxu0 0.0
      %909 = vmatprep.mubr.f32.mxu0 0.0
      %910 = vmatmul.mubr.f32.gmra.mrb[0].mxu0 %v843
      %v911 = vpop.f32.mrb[0].mxu0
      %v912 = vadd.f32 0.0, %v911
      %v913 = vpop.f32.mrb[0].mxu0
      %914 = vdwg.mxu0
      %916 = vset.pattern.permute.xlu0 0
      %917 = vperm.xlu0 %916, %v514
      %v918 = vpop.permute.xlu0 %917
      %921 = vset.pattern.permute.xlu0 0
      %922 = vperm.xlu0 %921, %v519
      %v923 = vpop.permute.xlu0 %922
      %926 = vset.pattern.permute.xlu0 0
      %927 = vperm.xlu0 %926, %v524
      %v928 = vpop.permute.xlu0 %927
      %931 = vset.pattern.permute.xlu0 0
      %932 = vperm.xlu0 %931, %v529
      %v933 = vpop.permute.xlu0 %932
      %v935 = vmul.f32 %v426, %v918
      %v936 = vmul.f32 %v427, %v923
      %v937 = vmul.f32 %v428, %v928
      %v938 = vmul.f32 %v429, %v933
      %v939 = vsel %vm434, %v935, 0.0
      %v940 = vsel %vm434, %v936, 0.0
      %v941 = vadd.f32 %v939, %v940
      %v942 = vsel %vm434, %v937, 0.0
      %v943 = vadd.f32 %v941, %v942
      %v944 = vsel %vm434, %v938, 0.0
      %v945 = vadd.f32 %v943, %v944
      %v946 = vrot.slane %v945, 4
      %v947 = vadd.f32 %v945, %v946
      %v948 = vrot.slane %v947, 2
      %v949 = vadd.f32 %v947, %v948
      %v950 = vrot.slane %v949, 1
      %v951 = vadd.f32 %v949, %v950
      %953 = vset.pattern.permute.xlu0 0
      %954 = vperm.xlu0 %953, %v841
      %v955 = vpop.permute.xlu0 %954
      %v957 = vmul.f32 %v955, %v951
      %v958 = vsub.f32 %v912, %v957
      %v959 = vmul.f32 %v958, 0.00390625
      %v961 = vsel %vm434, %v959, 0
      %963 = vmatprep.subr.mxu0 %v419
      %964 = vmatpush1.msra.mxu0 %v417
      %965 = vmatprep.subr.mxu0 0.0
      %966 = vmatpush1.msra.mxu0 0.0
      %967 = vmatprep.subr.mxu0 0.0
      %968 = vmatpush1.msra.mxu0 0.0
      %969 = vmatprep.subr.mxu0 0.0
      %970 = vmatpush1.msra.mxu0 0.0
      %971 = vmatprep.subr.mxu0 0.0
      %972 = vmatpush1.msra.mxu0 0.0
      %973 = vmatprep.subr.mxu0 0.0
      %974 = vmatpush1.msra.mxu0 0.0
      %975 = vmatprep.subr.mxu0 0.0
      %976 = vmatpush1.msra.mxu0 0.0
      %977 = vmatprep.subr.mxu0 0.0
      %978 = vmatpush1.msra.mxu0 0.0
      %979 = vmatprep.subr.mxu0 0.0
      %980 = vmatpush1.msra.mxu0 0.0
      %981 = vmatprep.subr.mxu0 0.0
      %982 = vmatpush1.msra.mxu0 0.0
      %983 = vmatprep.subr.mxu0 0.0
      %984 = vmatpush1.msra.mxu0 0.0
      %985 = vmatprep.subr.mxu0 0.0
      %986 = vmatpush1.msra.mxu0 0.0
      %987 = vmatprep.subr.mxu0 0.0
      %988 = vmatpush1.msra.mxu0 0.0
      %989 = vmatprep.subr.mxu0 0.0
      %990 = vmatpush1.msra.mxu0 0.0
      %991 = vmatprep.subr.mxu0 0.0
      %992 = vmatpush1.msra.mxu0 0.0
      %993 = vmatprep.subr.mxu0 0.0
      %994 = vmatpush1.msra.mxu0 0.0
      %995 = vmatprep.subr.mxu0 0.0
      %996 = vmatpush1.msra.mxu0 0.0
      %997 = vmatprep.subr.mxu0 0.0
      %998 = vmatpush1.msra.mxu0 0.0
      %999 = vmatprep.subr.mxu0 0.0
      %1000 = vmatpush1.msra.mxu0 0.0
      %1001 = vmatprep.subr.mxu0 0.0
      %1002 = vmatpush1.msra.mxu0 0.0
      %1003 = vmatprep.subr.mxu0 0.0
      %1004 = vmatpush1.msra.mxu0 0.0
      %1005 = vmatprep.subr.mxu0 0.0
      %1006 = vmatpush1.msra.mxu0 0.0
      %1007 = vmatprep.subr.mxu0 0.0
      %1008 = vmatpush1.msra.mxu0 0.0
      %1009 = vmatprep.subr.mxu0 0.0
      %1010 = vmatpush1.msra.mxu0 0.0
      %1011 = vmatprep.subr.mxu0 0.0
      %1012 = vmatpush1.msra.mxu0 0.0
      %1013 = vmatprep.subr.mxu0 0.0
      %1014 = vmatpush1.msra.mxu0 0.0
      %1015 = vmatprep.subr.mxu0 0.0
      %1016 = vmatpush1.msra.mxu0 0.0
      %1017 = vmatprep.subr.mxu0 0.0
      %1018 = vmatpush1.msra.mxu0 0.0
      %1019 = vmatprep.subr.mxu0 0.0
      %1020 = vmatpush1.msra.mxu0 0.0
      %1021 = vmatprep.subr.mxu0 0.0
      %1022 = vmatpush1.msra.mxu0 0.0
      %1023 = vmatprep.subr.mxu0 0.0
      %1024 = vmatpush1.msra.mxu0 0.0
      %1025 = vmatprep.subr.mxu0 0.0
      %1026 = vmatpush1.msra.mxu0 0.0
      %1027 = vmatprep.mubr.f32.mxu0 0.0
      %1028 = vmatmul.mubr.f32.gmra.mrb[0].mxu0 %v961
      %v1029 = vpop.f32.mrb[0].mxu0
      %v1030 = vadd.f32 0.0, %v1029
      %v1031 = vpop.f32.mrb[0].mxu0
      %v1032 = vadd.f32 0.0, %v1031
      %1033 = vdwg.mxu0
      %v1034 = vmax.f32 %v1030, 0.0
      %v1035 = vmax.f32 %v1032, 0.0
      %v1038 = vcombine.low %v1034, %v1035
      %v1040 = vunpack.c.l.s4 1966171168
      %v1041 = vunpack.c.0.s8 %v1040
      %v1042 = vlaneseq
      %v1043 = vshrl.u32 %v1042, 7
      %v1044 = vsub.s32 %v1041, %v1043
      %v1045 = vrot.slane %v1038, %v1044
      %v1047 = vunpack.c.l.s4 1966171168
      %v1048 = vunpack.c.0.s8 %v1047
      %v1049 = vlaneseq
      %v1050 = vshrl.u32 %v1049, 7
      %v1051 = vsub.s32 %v1048, %v1050
      %v1052 = vrot.slane %v1045, %v1051
      %v1054 = vlaneseq
      %vm1055 = vcmp.ge.s32.totalorder %v1054, 0
      %vm1056 = vcmp.lt.s32.totalorder %v1054, 256
      %vm1057 = vmand %vm1055, %vm1056
      %1058 = vst.msk [vmem:[%s330] sm:$0x3] %vm1057, %v1052
      %1059 = vst.msk [vmem:[%s326] sm:$0x1f] %vm651, %v650
      %1060 = vst.msk [vmem:[%s326 + $0x5] sm:$0x1f] %vm651, %v670
      %vm1061 = vcmask 0
      %1062 = vst.msk [vmem:[%s326 + $0xa] sm:$0x1] %vm1061, %v682
      %p1063 = scmp.lt.s32.totalorder %s20, 1
      %s1064 = scalar_select %p1063, %s20, 1
      %s1065 = smul.addr %s1064, 2
      %s1066 = smul.addr %s1065, 8
      %s1067 = scalar_lea.vmem %s7, %s1066
      %p1068 = scmp.lt.s32.totalorder %s20, 1
      %s1069 = scalar_select %p1068, %s20, 1
      %s1070 = smul.addr %s1069, 2
      %s1071 = scalar_lea.vmem %s8, %s1070
      // Predicated region
      $region49: #{visual_similarity_forward.2} parent=47 // pred_check
        %p1072 = pneg %p195
      $region50: #{visual_similarity_forward.2} parent=47 // pred_check_branch
        %1074 = sbr.rel (%p1072) target = $region52
      $region51: #{visual_similarity_forward.2} parent=47 // pred_region
        _
      $region52: #{visual_similarity_forward.2} parent=47 // pred_fallthru
        _
      // Predicated region
      $region53: #{visual_similarity_forward.2} parent=47 // pred_check
        %p1075 = pneg %p221
      $region54: #{visual_similarity_forward.2} parent=47 // pred_check_branch
        %1077 = sbr.rel (%p1075) target = $region56
      $region55: #{visual_similarity_forward.2} parent=47 // pred_region
        _
      $region56: #{visual_similarity_forward.2} parent=47 // pred_fallthru
        _
    $region48: #{visual_similarity_forward.2} parent=5 // pred_fallthru
      _
    %p1078 = scmp.le.s32.totalorder 2, %s15
    // Predicated region
    $region57: #{visual_similarity_forward.2} parent=5 // pred_check
      %p1079 = pneg %p1078
    $region58: #{visual_similarity_forward.2} parent=5 // pred_check_branch
      %1081 = sbr.rel (%p1079) target = $region60
    $region59: #{visual_similarity_forward.2} parent=5 // pred_region
      %s1082 = ssub.s32 %s15, 2
      // Predicated region
      $region61: #{visual_similarity_forward.2} parent=59 // pred_check
        %p1083 = pneg %p201
      $region62: #{visual_similarity_forward.2} parent=59 // pred_check_branch
        %1085 = sbr.rel (%p1083) target = $region64
      $region63: #{visual_similarity_forward.2} parent=59 // pred_region
        %p1086 = scmp.lt.s32.totalorder %s21, 1
        %s1087 = scalar_select %p1086, %s21, 1
        %s1088 = smul.addr %s1087, 2
        %s1089 = smul.addr %s1088, 8
        %s1090 = scalar_lea.vmem %s7, %s1089
      $region64: #{visual_similarity_forward.2} parent=59 // pred_fallthru
        _
      // Predicated region
      $region65: #{visual_similarity_forward.2} parent=59 // pred_check
        %p1091 = pneg %p227
      $region66: #{visual_similarity_forward.2} parent=59 // pred_check_branch
        %1093 = sbr.rel (%p1091) target = $region68
      $region67: #{visual_similarity_forward.2} parent=59 // pred_region
        %p1094 = scmp.lt.s32.totalorder %s21, 1
        %s1095 = scalar_select %p1094, %s21, 1
        %s1096 = smul.addr %s1095, 2
        %s1097 = scalar_lea.vmem %s8, %s1096
      $region68: #{visual_similarity_forward.2} parent=59 // pred_fallthru
        _
    $region60: #{visual_similarity_forward.2} parent=5 // pred_fallthru
      _
  $region6: #{visual_similarity_forward.2} parent=0 // loop_footer
    %s19 = sadd.s32 1, %s15
  $region7: #{visual_similarity_forward.2} parent=0 // loop_footer_branch
    %14 = sbr.rel target = $region3
  $region8: #{visual_similarity_forward.2} parent=0 // loop_exit
    _

// kernel: visual_similarity_forward.3
$region0: #{visual_similarity_forward.3}
  #allocation0 [shape = 'u32[]', space=smem, size = 0x4, offset = 0x4, fixed_abs, tag = 'smem constant byte address 0x4 - core index']
  #allocation1 [shape = 'u32[144,128]{1,0:T(1,128)}', space=vmem, size = 0x12000, scoped, tag = 'internal scratch']
  %s0 = inlined_call_operand.vmem [shape: f32[2,16,16], index: 0, kind: input, shape index: {}]
  %s1 = inlined_call_operand.vmem [shape: f32[224,16], index: 1, kind: input, shape index: {}]
  %s2 = inlined_call_operand.vmem [shape: f32[16,224], index: 2, kind: input, shape index: {}]
  %s3 = inlined_call_operand.hbm [shape: f32[2,224,224], index: 3, kind: output, shape index: {}]
  %s4 = sld [smem:[#allocation0]]
  $region22: #{visual_similarity_forward.3} parent=0
    _
  %s6 = ssub.s32 1, %s4
  %s7 = scalar_select 0, %s6, %s4
  $region1: #{visual_similarity_forward.3} parent=0
    #allocation2 [shape = 'u8[458752]{0}', space=vmem, size = 0x70000, scoped, tag = 'output window, operand 0, single buffered']
    #allocation3 [shape = 's32[1]{0}', space=sflag, size = 0x4, scoped, tag = 'scoped memory for visual_similarity_forward.3']
    %8 = vsyncpa [#allocation3], 0
    // Predicated region
    $region2: #{visual_similarity_forward.3} parent=1 // pred_check
      _
    $region3: #{visual_similarity_forward.3} parent=1 // pred_check_branch
      %10 = sbr.rel (0) target = $region5
    $region4: #{visual_similarity_forward.3} parent=1 // pred_region
      _
    $region5: #{visual_similarity_forward.3} parent=1 // pred_fallthru
      _
    // Predicated region
    $region6: #{visual_similarity_forward.3} parent=1 // pred_check
      _
    $region7: #{visual_similarity_forward.3} parent=1 // pred_check_branch
      %12 = sbr.rel (0) target = $region9
    $region8: #{visual_similarity_forward.3} parent=1 // pred_region
      _
    $region9: #{visual_similarity_forward.3} parent=1 // pred_fallthru
      _
    // Predicated region
    $region10: #{visual_similarity_forward.3} parent=1 // pred_check
      _
    $region11: #{visual_similarity_forward.3} parent=1 // pred_check_branch
      %14 = sbr.rel (0) target = $region13
    $region12: #{visual_similarity_forward.3} parent=1 // pred_region
      _
    $region13: #{visual_similarity_forward.3} parent=1 // pred_fallthru
      _
    %v15 = vld [vmem:[%s1] sm:$0xff]
    %v16 = vld [vmem:[%s1 + $0x8] sm:$0xff]
    %v17 = vld [vmem:[%s1 + $0x10] sm:$0xff]
    %v18 = vld [vmem:[%s1 + $0x18] sm:$0xff]
    %v19 = vld [vmem:[%s1 + $0x20] sm:$0xff]
    %v20 = vld [vmem:[%s1 + $0x28] sm:$0xff]
    %v21 = vld [vmem:[%s1 + $0x30] sm:$0xff]
    %v22 = vld [vmem:[%s1 + $0x38] sm:$0xff]
    %v23 = vld [vmem:[%s1 + $0x40] sm:$0xff]
    %v24 = vld [vmem:[%s1 + $0x48] sm:$0xff]
    %v25 = vld [vmem:[%s1 + $0x50] sm:$0xff]
    %v26 = vld [vmem:[%s1 + $0x58] sm:$0xff]
    %v27 = vld [vmem:[%s1 + $0x60] sm:$0xff]
    %v28 = vld [vmem:[%s1 + $0x68] sm:$0xff]
    %v29 = vld [vmem:[%s1 + $0x70] sm:$0xff]
    %v30 = vld [vmem:[%s1 + $0x78] sm:$0xff]
    %v31 = vld [vmem:[%s1 + $0x80] sm:$0xff]
    %v32 = vld [vmem:[%s1 + $0x88] sm:$0xff]
    %v33 = vld [vmem:[%s1 + $0x90] sm:$0xff]
    %v34 = vld [vmem:[%s1 + $0x98] sm:$0xff]
    %v35 = vld [vmem:[%s1 + $0xa0] sm:$0xff]
    %v36 = vld [vmem:[%s1 + $0xa8] sm:$0xff]
    %v37 = vld [vmem:[%s1 + $0xb0] sm:$0xff]
    %v38 = vld [vmem:[%s1 + $0xb8] sm:$0xff]
    %v39 = vld [vmem:[%s1 + $0xc0] sm:$0xff]
    %v40 = vld [vmem:[%s1 + $0xc8] sm:$0xff]
    %v41 = vld [vmem:[%s1 + $0xd0] sm:$0xff]
    %v42 = vld [vmem:[%s1 + $0xd8] sm:$0xff]
    %v43 = vld [vmem:[%s2] sm:$0xff]
    %v44 = vld [vmem:[%s2 + $0x8] sm:$0xff]
    %v45 = vld [vmem:[%s2 + $0x10] sm:$0xff]
    %v46 = vld [vmem:[%s2 + $0x18] sm:$0xff]
    %v47 = vld [vmem:[%s0] sm:$0xff]
    %v48 = vld [vmem:[%s0 + $0x8] sm:$0xff]
    %vm49 = vcmask 130048
    %v51 = vsel %vm49, %v15, 0
    %v54 = vsel %vm49, %v16, 0
    %v57 = vsel %vm49, %v17, 0
    %v60 = vsel %vm49, %v18, 0
    %v63 = vsel %vm49, %v19, 0
    %v66 = vsel %vm49, %v20, 0
    %v69 = vsel %vm49, %v21, 0
    %v72 = vsel %vm49, %v22, 0
    %v75 = vsel %vm49, %v23, 0
    %v78 = vsel %vm49, %v24, 0
    %v81 = vsel %vm49, %v25, 0
    %v84 = vsel %vm49, %v26, 0
    %v87 = vsel %vm49, %v27, 0
    %v90 = vsel %vm49, %v28, 0
    %v93 = vsel %vm49, %v29, 0
    %v96 = vsel %vm49, %v30, 0
    %v99 = vsel %vm49, %v31, 0
    %v102 = vsel %vm49, %v32, 0
    %v105 = vsel %vm49, %v33, 0
    %v108 = vsel %vm49, %v34, 0
    %v111 = vsel %vm49, %v35, 0
    %v114 = vsel %vm49, %v36, 0
    %v117 = vsel %vm49, %v37, 0
    %v120 = vsel %vm49, %v38, 0
    %v123 = vsel %vm49, %v39, 0
    %v126 = vsel %vm49, %v40, 0
    %v129 = vsel %vm49, %v41, 0
    %v132 = vsel %vm49, %v42, 0
    %134 = vmatprep.subr.mxu0 0.0
    %135 = vmatpush1.msra.mxu0 %v47
    %136 = vmatprep.subr.mxu0 0.0
    %137 = vmatpush1.msra.mxu0 %v48
    %138 = vmatprep.subr.mxu0 0.0
    %139 = vmatpush1.msra.mxu0 0.0
    %140 = vmatprep.subr.mxu0 0.0
    %141 = vmatpush1.msra.mxu0 0.0
    %142 = vmatprep.subr.mxu0 0.0
    %143 = vmatpush1.msra.mxu0 0.0
    %144 = vmatprep.subr.mxu0 0.0
    %145 = vmatpush1.msra.mxu0 0.0
    %146 = vmatprep.subr.mxu0 0.0
    %147 = vmatpush1.msra.mxu0 0.0
    %148 = vmatprep.subr.mxu0 0.0
    %149 = vmatpush1.msra.mxu0 0.0
    %150 = vmatprep.subr.mxu0 0.0
    %151 = vmatpush1.msra.mxu0 0.0
    %152 = vmatprep.subr.mxu0 0.0
    %153 = vmatpush1.msra.mxu0 0.0
    %154 = vmatprep.subr.mxu0 0.0
    %155 = vmatpush1.msra.mxu0 0.0
    %156 = vmatprep.subr.mxu0 0.0
    %157 = vmatpush1.msra.mxu0 0.0
    %158 = vmatprep.subr.mxu0 0.0
    %159 = vmatpush1.msra.mxu0 0.0
    %160 = vmatprep.subr.mxu0 0.0
    %161 = vmatpush1.msra.mxu0 0.0
    %162 = vmatprep.subr.mxu0 0.0
    %163 = vmatpush1.msra.mxu0 0.0
    %164 = vmatprep.subr.mxu0 0.0
    %165 = vmatpush1.msra.mxu0 0.0
    %166 = vmatprep.subr.mxu0 0.0
    %167 = vmatpush1.msra.mxu0 0.0
    %168 = vmatprep.subr.mxu0 0.0
    %169 = vmatpush1.msra.mxu0 0.0
    %170 = vmatprep.subr.mxu0 0.0
    %171 = vmatpush1.msra.mxu0 0.0
    %172 = vmatprep.subr.mxu0 0.0
    %173 = vmatpush1.msra.mxu0 0.0
    %174 = vmatprep.subr.mxu0 0.0
    %175 = vmatpush1.msra.mxu0 0.0
    %176 = vmatprep.subr.mxu0 0.0
    %177 = vmatpush1.msra.mxu0 0.0
    %178 = vmatprep.subr.mxu0 0.0
    %179 = vmatpush1.msra.mxu0 0.0
    %180 = vmatprep.subr.mxu0 0.0
    %181 = vmatpush1.msra.mxu0 0.0
    %182 = vmatprep.subr.mxu0 0.0
    %183 = vmatpush1.msra.mxu0 0.0
    %184 = vmatprep.subr.mxu0 0.0
    %185 = vmatpush1.msra.mxu0 0.0
    %186 = vmatprep.subr.mxu0 0.0
    %187 = vmatpush1.msra.mxu0 0.0
    %188 = vmatprep.subr.mxu0 0.0
    %189 = vmatpush1.msra.mxu0 0.0
    %190 = vmatprep.subr.mxu0 0.0
    %191 = vmatpush1.msra.mxu0 0.0
    %192 = vmatprep.subr.mxu0 0.0
    %193 = vmatpush1.msra.mxu0 0.0
    %194 = vmatprep.subr.mxu0 0.0
    %195 = vmatpush1.msra.mxu0 0.0
    %196 = vmatprep.subr.mxu0 0.0
    %197 = vmatpush1.msra.mxu0 0.0
    %198 = vmatprep.mubr.f32.mxu0 0.0
    %199 = vmatmul.mubr.f32.gmra.mrb[0].mxu0 %v51
    %v200 = vpop.f32.mrb[0].mxu0
    %v201 = vadd.f32 0.0, %v200
    %v202 = vpop.f32.mrb[0].mxu0
    %203 = vmatprep.mubr.f32.mxu0 0.0
    %204 = vmatmul.mubr.f32.gmra.mrb[0].mxu0 %v54
    %v205 = vpop.f32.mrb[0].mxu0
    %v206 = vadd.f32 0.0, %v205
    %v207 = vpop.f32.mrb[0].mxu0
    %208 = vmatprep.mubr.f32.mxu0 0.0
    %209 = vmatmul.mubr.f32.gmra.mrb[0].mxu0 %v57
    %v210 = vpop.f32.mrb[0].mxu0
    %v211 = vadd.f32 0.0, %v210
    %v212 = vpop.f32.mrb[0].mxu0
    %213 = vmatprep.mubr.f32.mxu0 0.0
    %214 = vmatmul.mubr.f32.gmra.mrb[0].mxu0 %v60
    %v215 = vpop.f32.mrb[0].mxu0
    %v216 = vadd.f32 0.0, %v215
    %v217 = vpop.f32.mrb[0].mxu0
    %218 = vmatprep.mubr.f32.mxu0 0.0
    %219 = vmatmul.mubr.f32.gmra.mrb[0].mxu0 %v63
    %v220 = vpop.f32.mrb[0].mxu0
    %v221 = vadd.f32 0.0, %v220
    %v222 = vpop.f32.mrb[0].mxu0
    %223 = vmatprep.mubr.f32.mxu0 0.0
    %224 = vmatmul.mubr.f32.gmra.mrb[0].mxu0 %v66
    %v225 = vpop.f32.mrb[0].mxu0
    %v226 = vadd.f32 0.0, %v225
    %v227 = vpop.f32.mrb[0].mxu0
    %228 = vmatprep.mubr.f32.mxu0 0.0
    %229 = vmatmul.mubr.f32.gmra.mrb[0].mxu0 %v69
    %v230 = vpop.f32.mrb[0].mxu0
    %v231 = vadd.f32 0.0, %v230
    %v232 = vpop.f32.mrb[0].mxu0
    %233 = vmatprep.mubr.f32.mxu0 0.0
    %234 = vmatmul.mubr.f32.gmra.mrb[0].mxu0 %v72
    %v235 = vpop.f32.mrb[0].mxu0
    %v236 = vadd.f32 0.0, %v235
    %v237 = vpop.f32.mrb[0].mxu0
    %238 = vmatprep.mubr.f32.mxu0 0.0
    %239 = vmatmul.mubr.f32.gmra.mrb[0].mxu0 %v75
    %v240 = vpop.f32.mrb[0].mxu0
    %v241 = vadd.f32 0.0, %v240
    %v242 = vpop.f32.mrb[0].mxu0
    %243 = vmatprep.mubr.f32.mxu0 0.0
    %244 = vmatmul.mubr.f32.gmra.mrb[0].mxu0 %v78
    %v245 = vpop.f32.mrb[0].mxu0
    %v246 = vadd.f32 0.0, %v245
    %v247 = vpop.f32.mrb[0].mxu0
    %248 = vmatprep.mubr.f32.mxu0 0.0
    %249 = vmatmul.mubr.f32.gmra.mrb[0].mxu0 %v81
    %v250 = vpop.f32.mrb[0].mxu0
    %v251 = vadd.f32 0.0, %v250
    %v252 = vpop.f32.mrb[0].mxu0
    %253 = vmatprep.mubr.f32.mxu0 0.0
    %254 = vmatmul.mubr.f32.gmra.mrb[0].mxu0 %v84
    %v255 = vpop.f32.mrb[0].mxu0
    %v256 = vadd.f32 0.0, %v255
    %v257 = vpop.f32.mrb[0].mxu0
    %258 = vmatprep.mubr.f32.mxu0 0.0
    %259 = vmatmul.mubr.f32.gmra.mrb[0].mxu0 %v87
    %v260 = vpop.f32.mrb[0].mxu0
    %v261 = vadd.f32 0.0, %v260
    %v262 = vpop.f32.mrb[0].mxu0
    %263 = vmatprep.mubr.f32.mxu0 0.0
    %264 = vmatmul.mubr.f32.gmra.mrb[0].mxu0 %v90
    %v265 = vpop.f32.mrb[0].mxu0
    %v266 = vadd.f32 0.0, %v265
    %v267 = vpop.f32.mrb[0].mxu0
    %268 = vmatprep.mubr.f32.mxu0 0.0
    %269 = vmatmul.mubr.f32.gmra.mrb[0].mxu0 %v93
    %v270 = vpop.f32.mrb[0].mxu0
    %v271 = vadd.f32 0.0, %v270
    %v272 = vpop.f32.mrb[0].mxu0
    %273 = vmatprep.mubr.f32.mxu0 0.0
    %274 = vmatmul.mubr.f32.gmra.mrb[0].mxu0 %v96
    %v275 = vpop.f32.mrb[0].mxu0
    %v276 = vadd.f32 0.0, %v275
    %v277 = vpop.f32.mrb[0].mxu0
    %278 = vmatprep.mubr.f32.mxu0 0.0
    %279 = vmatmul.mubr.f32.gmra.mrb[0].mxu0 %v99
    %v280 = vpop.f32.mrb[0].mxu0
    %v281 = vadd.f32 0.0, %v280
    %v282 = vpop.f32.mrb[0].mxu0
    %283 = vmatprep.mubr.f32.mxu0 0.0
    %284 = vmatmul.mubr.f32.gmra.mrb[0].mxu0 %v102
    %v285 = vpop.f32.mrb[0].mxu0
    %v286 = vadd.f32 0.0, %v285
    %v287 = vpop.f32.mrb[0].mxu0
    %288 = vmatprep.mubr.f32.mxu0 0.0
    %289 = vmatmul.mubr.f32.gmra.mrb[0].mxu0 %v105
    %v290 = vpop.f32.mrb[0].mxu0
    %v291 = vadd.f32 0.0, %v290
    %v292 = vpop.f32.mrb[0].mxu0
    %293 = vmatprep.mubr.f32.mxu0 0.0
    %294 = vmatmul.mubr.f32.gmra.mrb[0].mxu0 %v108
    %v295 = vpop.f32.mrb[0].mxu0
    %v296 = vadd.f32 0.0, %v295
    %v297 = vpop.f32.mrb[0].mxu0
    %298 = vmatprep.mubr.f32.mxu0 0.0
    %299 = vmatmul.mubr.f32.gmra.mrb[0].mxu0 %v111
    %v300 = vpop.f32.mrb[0].mxu0
    %v301 = vadd.f32 0.0, %v300
    %v302 = vpop.f32.mrb[0].mxu0
    %303 = vmatprep.mubr.f32.mxu0 0.0
    %304 = vmatmul.mubr.f32.gmra.mrb[0].mxu0 %v114
    %v305 = vpop.f32.mrb[0].mxu0
    %v306 = vadd.f32 0.0, %v305
    %v307 = vpop.f32.mrb[0].mxu0
    %308 = vmatprep.mubr.f32.mxu0 0.0
    %309 = vmatmul.mubr.f32.gmra.mrb[0].mxu0 %v117
    %v310 = vpop.f32.mrb[0].mxu0
    %v311 = vadd.f32 0.0, %v310
    %v312 = vpop.f32.mrb[0].mxu0
    %313 = vmatprep.mubr.f32.mxu0 0.0
    %314 = vmatmul.mubr.f32.gmra.mrb[0].mxu0 %v120
    %v315 = vpop.f32.mrb[0].mxu0
    %v316 = vadd.f32 0.0, %v315
    %v317 = vpop.f32.mrb[0].mxu0
    %318 = vmatprep.mubr.f32.mxu0 0.0
    %319 = vmatmul.mubr.f32.gmra.mrb[0].mxu0 %v123
    %v320 = vpop.f32.mrb[0].mxu0
    %v321 = vadd.f32 0.0, %v320
    %v322 = vpop.f32.mrb[0].mxu0
    %323 = vmatprep.mubr.f32.mxu0 0.0
    %324 = vmatmul.mubr.f32.gmra.mrb[0].mxu0 %v126
    %v325 = vpop.f32.mrb[0].mxu0
    %v326 = vadd.f32 0.0, %v325
    %v327 = vpop.f32.mrb[0].mxu0
    %328 = vmatprep.mubr.f32.mxu0 0.0
    %329 = vmatmul.mubr.f32.gmra.mrb[0].mxu0 %v129
    %v330 = vpop.f32.mrb[0].mxu0
    %v331 = vadd.f32 0.0, %v330
    %v332 = vpop.f32.mrb[0].mxu0
    %333 = vmatprep.mubr.f32.mxu0 0.0
    %334 = vmatmul.mubr.f32.gmra.mrb[0].mxu0 %v132
    %v335 = vpop.f32.mrb[0].mxu0
    %v336 = vadd.f32 0.0, %v335
    %v337 = vpop.f32.mrb[0].mxu0
    %338 = vdwg.mxu0
    %v340 = vsel %vm49, %v201, 0
    %v343 = vsel %vm49, %v206, 0
    %v346 = vsel %vm49, %v211, 0
    %v349 = vsel %vm49, %v216, 0
    %v352 = vsel %vm49, %v221, 0
    %v355 = vsel %vm49, %v226, 0
    %v358 = vsel %vm49, %v231, 0
    %v361 = vsel %vm49, %v236, 0
    %v364 = vsel %vm49, %v241, 0
    %v367 = vsel %vm49, %v246, 0
    %v370 = vsel %vm49, %v251, 0
    %v373 = vsel %vm49, %v256, 0
    %v376 = vsel %vm49, %v261, 0
    %v379 = vsel %vm49, %v266, 0
    %v382 = vsel %vm49, %v271, 0
    %v385 = vsel %vm49, %v276, 0
    %v388 = vsel %vm49, %v281, 0
    %v391 = vsel %vm49, %v286, 0
    %v394 = vsel %vm49, %v291, 0
    %v397 = vsel %vm49, %v296, 0
    %v400 = vsel %vm49, %v301, 0
    %v403 = vsel %vm49, %v306, 0
    %v406 = vsel %vm49, %v311, 0
    %v409 = vsel %vm49, %v316, 0
    %v412 = vsel %vm49, %v321, 0
    %v415 = vsel %vm49, %v326, 0
    %v418 = vsel %vm49, %v331, 0
    %v421 = vsel %vm49, %v336, 0
    %423 = vmatprep.subr.mxu0 %v44
    %424 = vmatpush1.msra.mxu0 %v43
    %425 = vmatprep.subr.mxu0 %v46
    %426 = vmatpush1.msra.mxu0 %v45
    %427 = vmatprep.subr.mxu0 0.0
    %428 = vmatpush1.msra.mxu0 0.0
    %429 = vmatprep.subr.mxu0 0.0
    %430 = vmatpush1.msra.mxu0 0.0
    %431 = vmatprep.subr.mxu0 0.0
    %432 = vmatpush1.msra.mxu0 0.0
    %433 = vmatprep.subr.mxu0 0.0
    %434 = vmatpush1.msra.mxu0 0.0
    %435 = vmatprep.subr.mxu0 0.0
    %436 = vmatpush1.msra.mxu0 0.0
    %437 = vmatprep.subr.mxu0 0.0
    %438 = vmatpush1.msra.mxu0 0.0
    %439 = vmatprep.subr.mxu0 0.0
    %440 = vmatpush1.msra.mxu0 0.0
    %441 = vmatprep.subr.mxu0 0.0
    %442 = vmatpush1.msra.mxu0 0.0
    %443 = vmatprep.subr.mxu0 0.0
    %444 = vmatpush1.msra.mxu0 0.0
    %445 = vmatprep.subr.mxu0 0.0
    %446 = vmatpush1.msra.mxu0 0.0
    %447 = vmatprep.subr.mxu0 0.0
    %448 = vmatpush1.msra.mxu0 0.0
    %449 = vmatprep.subr.mxu0 0.0
    %450 = vmatpush1.msra.mxu0 0.0
    %451 = vmatprep.subr.mxu0 0.0
    %452 = vmatpush1.msra.mxu0 0.0
    %453 = vmatprep.subr.mxu0 0.0
    %454 = vmatpush1.msra.mxu0 0.0
    %455 = vmatprep.subr.mxu0 0.0
    %456 = vmatpush1.msra.mxu0 0.0
    %457 = vmatprep.subr.mxu0 0.0
    %458 = vmatpush1.msra.mxu0 0.0
    %459 = vmatprep.subr.mxu0 0.0
    %460 = vmatpush1.msra.mxu0 0.0
    %461 = vmatprep.subr.mxu0 0.0
    %462 = vmatpush1.msra.mxu0 0.0
    %463 = vmatprep.subr.mxu0 0.0
    %464 = vmatpush1.msra.mxu0 0.0
    %465 = vmatprep.subr.mxu0 0.0
    %466 = vmatpush1.msra.mxu0 0.0
    %467 = vmatprep.subr.mxu0 0.0
    %468 = vmatpush1.msra.mxu0 0.0
    %469 = vmatprep.subr.mxu0 0.0
    %470 = vmatpush1.msra.mxu0 0.0
    %471 = vmatprep.subr.mxu0 0.0
    %472 = vmatpush1.msra.mxu0 0.0
    %473 = vmatprep.subr.mxu0 0.0
    %474 = vmatpush1.msra.mxu0 0.0
    %475 = vmatprep.subr.mxu0 0.0
    %476 = vmatpush1.msra.mxu0 0.0
    %477 = vmatprep.subr.mxu0 0.0
    %478 = vmatpush1.msra.mxu0 0.0
    %479 = vmatprep.subr.mxu0 0.0
    %480 = vmatpush1.msra.mxu0 0.0
    %481 = vmatprep.subr.mxu0 0.0
    %482 = vmatpush1.msra.mxu0 0.0
    %483 = vmatprep.subr.mxu0 0.0
    %484 = vmatpush1.msra.mxu0 0.0
    %485 = vmatprep.subr.mxu0 0.0
    %486 = vmatpush1.msra.mxu0 0.0
    %487 = vmatprep.mubr.f32.mxu0 0.0
    %488 = vmatmul.mubr.f32.gmra.mrb[0].mxu0 %v340
    %v489 = vpop.f32.mrb[0].mxu0
    %v490 = vadd.f32 0.0, %v489
    %v491 = vpop.f32.mrb[0].mxu0
    %v492 = vadd.f32 0.0, %v491
    %493 = vmatprep.mubr.f32.mxu0 0.0
    %494 = vmatmul.mubr.f32.gmra.mrb[0].mxu0 %v343
    %v495 = vpop.f32.mrb[0].mxu0
    %v496 = vadd.f32 0.0, %v495
    %v497 = vpop.f32.mrb[0].mxu0
    %v498 = vadd.f32 0.0, %v497
    %499 = vmatprep.mubr.f32.mxu0 0.0
    %500 = vmatmul.mubr.f32.gmra.mrb[0].mxu0 %v346
    %v501 = vpop.f32.mrb[0].mxu0
    %v502 = vadd.f32 0.0, %v501
    %v503 = vpop.f32.mrb[0].mxu0
    %v504 = vadd.f32 0.0, %v503
    %505 = vmatprep.mubr.f32.mxu0 0.0
    %506 = vmatmul.mubr.f32.gmra.mrb[0].mxu0 %v349
    %v507 = vpop.f32.mrb[0].mxu0
    %v508 = vadd.f32 0.0, %v507
    %v509 = vpop.f32.mrb[0].mxu0
    %v510 = vadd.f32 0.0, %v509
    %511 = vmatprep.mubr.f32.mxu0 0.0
    %512 = vmatmul.mubr.f32.gmra.mrb[0].mxu0 %v352
    %v513 = vpop.f32.mrb[0].mxu0
    %v514 = vadd.f32 0.0, %v513
    %v515 = vpop.f32.mrb[0].mxu0
    %v516 = vadd.f32 0.0, %v515
    %517 = vmatprep.mubr.f32.mxu0 0.0
    %518 = vmatmul.mubr.f32.gmra.mrb[0].mxu0 %v355
    %v519 = vpop.f32.mrb[0].mxu0
    %v520 = vadd.f32 0.0, %v519
    %v521 = vpop.f32.mrb[0].mxu0
    %v522 = vadd.f32 0.0, %v521
    %523 = vmatprep.mubr.f32.mxu0 0.0
    %524 = vmatmul.mubr.f32.gmra.mrb[0].mxu0 %v358
    %v525 = vpop.f32.mrb[0].mxu0
    %v526 = vadd.f32 0.0, %v525
    %v527 = vpop.f32.mrb[0].mxu0
    %v528 = vadd.f32 0.0, %v527
    %529 = vmatprep.mubr.f32.mxu0 0.0
    %530 = vmatmul.mubr.f32.gmra.mrb[0].mxu0 %v361
    %v531 = vpop.f32.mrb[0].mxu0
    %v532 = vadd.f32 0.0, %v531
    %v533 = vpop.f32.mrb[0].mxu0
    %v534 = vadd.f32 0.0, %v533
    %535 = vmatprep.mubr.f32.mxu0 0.0
    %536 = vmatmul.mubr.f32.gmra.mrb[0].mxu0 %v364
    %v537 = vpop.f32.mrb[0].mxu0
    %v538 = vadd.f32 0.0, %v537
    %v539 = vpop.f32.mrb[0].mxu0
    %v540 = vadd.f32 0.0, %v539
    %541 = vmatprep.mubr.f32.mxu0 0.0
    %542 = vmatmul.mubr.f32.gmra.mrb[0].mxu0 %v367
    %v543 = vpop.f32.mrb[0].mxu0
    %v544 = vadd.f32 0.0, %v543
    %v545 = vpop.f32.mrb[0].mxu0
    %v546 = vadd.f32 0.0, %v545
    %547 = vmatprep.mubr.f32.mxu0 0.0
    %548 = vmatmul.mubr.f32.gmra.mrb[0].mxu0 %v370
    %v549 = vpop.f32.mrb[0].mxu0
    %v550 = vadd.f32 0.0, %v549
    %v551 = vpop.f32.mrb[0].mxu0
    %v552 = vadd.f32 0.0, %v551
    %553 = vmatprep.mubr.f32.mxu0 0.0
    %554 = vmatmul.mubr.f32.gmra.mrb[0].mxu0 %v373
    %v555 = vpop.f32.mrb[0].mxu0
    %v556 = vadd.f32 0.0, %v555
    %v557 = vpop.f32.mrb[0].mxu0
    %v558 = vadd.f32 0.0, %v557
    %559 = vmatprep.mubr.f32.mxu0 0.0
    %560 = vmatmul.mubr.f32.gmra.mrb[0].mxu0 %v376
    %v561 = vpop.f32.mrb[0].mxu0
    %v562 = vadd.f32 0.0, %v561
    %v563 = vpop.f32.mrb[0].mxu0
    %v564 = vadd.f32 0.0, %v563
    %565 = vmatprep.mubr.f32.mxu0 0.0
    %566 = vmatmul.mubr.f32.gmra.mrb[0].mxu0 %v379
    %v567 = vpop.f32.mrb[0].mxu0
    %v568 = vadd.f32 0.0, %v567
    %v569 = vpop.f32.mrb[0].mxu0
    %v570 = vadd.f32 0.0, %v569
    %571 = vmatprep.mubr.f32.mxu0 0.0
    %572 = vmatmul.mubr.f32.gmra.mrb[0].mxu0 %v382
    %v573 = vpop.f32.mrb[0].mxu0
    %v574 = vadd.f32 0.0, %v573
    %v575 = vpop.f32.mrb[0].mxu0
    %v576 = vadd.f32 0.0, %v575
    %577 = vmatprep.mubr.f32.mxu0 0.0
    %578 = vmatmul.mubr.f32.gmra.mrb[0].mxu0 %v385
    %v579 = vpop.f32.mrb[0].mxu0
    %v580 = vadd.f32 0.0, %v579
    %v581 = vpop.f32.mrb[0].mxu0
    %v582 = vadd.f32 0.0, %v581
    %583 = vmatprep.mubr.f32.mxu0 0.0
    %584 = vmatmul.mubr.f32.gmra.mrb[0].mxu0 %v388
    %v585 = vpop.f32.mrb[0].mxu0
    %v586 = vadd.f32 0.0, %v585
    %v587 = vpop.f32.mrb[0].mxu0
    %v588 = vadd.f32 0.0, %v587
    %589 = vmatprep.mubr.f32.mxu0 0.0
    %590 = vmatmul.mubr.f32.gmra.mrb[0].mxu0 %v391
    %v591 = vpop.f32.mrb[0].mxu0
    %v592 = vadd.f32 0.0, %v591
    %v593 = vpop.f32.mrb[0].mxu0
    %v594 = vadd.f32 0.0, %v593
    %595 = vmatprep.mubr.f32.mxu0 0.0
    %596 = vmatmul.mubr.f32.gmra.mrb[0].mxu0 %v394
    %v597 = vpop.f32.mrb[0].mxu0
    %v598 = vadd.f32 0.0, %v597
    %v599 = vpop.f32.mrb[0].mxu0
    %v600 = vadd.f32 0.0, %v599
    %601 = vmatprep.mubr.f32.mxu0 0.0
    %602 = vmatmul.mubr.f32.gmra.mrb[0].mxu0 %v397
    %v603 = vpop.f32.mrb[0].mxu0
    %v604 = vadd.f32 0.0, %v603
    %v605 = vpop.f32.mrb[0].mxu0
    %v606 = vadd.f32 0.0, %v605
    %607 = vmatprep.mubr.f32.mxu0 0.0
    %608 = vmatmul.mubr.f32.gmra.mrb[0].mxu0 %v400
    %v609 = vpop.f32.mrb[0].mxu0
    %v610 = vadd.f32 0.0, %v609
    %v611 = vpop.f32.mrb[0].mxu0
    %v612 = vadd.f32 0.0, %v611
    %613 = vmatprep.mubr.f32.mxu0 0.0
    %614 = vmatmul.mubr.f32.gmra.mrb[0].mxu0 %v403
    %v615 = vpop.f32.mrb[0].mxu0
    %v616 = vadd.f32 0.0, %v615
    %v617 = vpop.f32.mrb[0].mxu0
    %v618 = vadd.f32 0.0, %v617
    %619 = vmatprep.mubr.f32.mxu0 0.0
    %620 = vmatmul.mubr.f32.gmra.mrb[0].mxu0 %v406
    %v621 = vpop.f32.mrb[0].mxu0
    %v622 = vadd.f32 0.0, %v621
    %v623 = vpop.f32.mrb[0].mxu0
    %v624 = vadd.f32 0.0, %v623
    %625 = vmatprep.mubr.f32.mxu0 0.0
    %626 = vmatmul.mubr.f32.gmra.mrb[0].mxu0 %v409
    %v627 = vpop.f32.mrb[0].mxu0
    %v628 = vadd.f32 0.0, %v627
    %v629 = vpop.f32.mrb[0].mxu0
    %v630 = vadd.f32 0.0, %v629
    %631 = vmatprep.mubr.f32.mxu0 0.0
    %632 = vmatmul.mubr.f32.gmra.mrb[0].mxu0 %v412
    %v633 = vpop.f32.mrb[0].mxu0
    %v634 = vadd.f32 0.0, %v633
    %v635 = vpop.f32.mrb[0].mxu0
    %v636 = vadd.f32 0.0, %v635
    %637 = vmatprep.mubr.f32.mxu0 0.0
    %638 = vmatmul.mubr.f32.gmra.mrb[0].mxu0 %v415
    %v639 = vpop.f32.mrb[0].mxu0
    %v640 = vadd.f32 0.0, %v639
    %v641 = vpop.f32.mrb[0].mxu0
    %v642 = vadd.f32 0.0, %v641
    %643 = vmatprep.mubr.f32.mxu0 0.0
    %644 = vmatmul.mubr.f32.gmra.mrb[0].mxu0 %v418
    %v645 = vpop.f32.mrb[0].mxu0
    %v646 = vadd.f32 0.0, %v645
    %v647 = vpop.f32.mrb[0].mxu0
    %v648 = vadd.f32 0.0, %v647
    %649 = vmatprep.mubr.f32.mxu0 0.0
    %650 = vmatmul.mubr.f32.gmra.mrb[0].mxu0 %v421
    %v651 = vpop.f32.mrb[0].mxu0
    %v652 = vadd.f32 0.0, %v651
    %v653 = vpop.f32.mrb[0].mxu0
    %v654 = vadd.f32 0.0, %v653
    %655 = vdwg.mxu0
    %s656 = scalar_lea.vmem %s0, 16
    %v657 = vld [vmem:[%s656] sm:$0xff]
    %v658 = vld [vmem:[%s656 + $0x8] sm:$0xff]
    %659 = vmatprep.subr.mxu0 0.0
    %660 = vmatpush1.msra.mxu0 %v657
    %661 = vmatprep.subr.mxu0 0.0
    %662 = vmatpush1.msra.mxu0 %v658
    %663 = vmatprep.subr.mxu0 0.0
    %664 = vmatpush1.msra.mxu0 0.0
    %665 = vmatprep.subr.mxu0 0.0
    %666 = vmatpush1.msra.mxu0 0.0
    %667 = vmatprep.subr.mxu0 0.0
    %668 = vmatpush1.msra.mxu0 0.0
    %669 = vmatprep.subr.mxu0 0.0
    %670 = vmatpush1.msra.mxu0 0.0
    %671 = vmatprep.subr.mxu0 0.0
    %672 = vmatpush1.msra.mxu0 0.0
    %673 = vmatprep.subr.mxu0 0.0
    %674 = vmatpush1.msra.mxu0 0.0
    %675 = vmatprep.subr.mxu0 0.0
    %676 = vmatpush1.msra.mxu0 0.0
    %677 = vmatprep.subr.mxu0 0.0
    %678 = vmatpush1.msra.mxu0 0.0
    %679 = vmatprep.subr.mxu0 0.0
    %680 = vmatpush1.msra.mxu0 0.0
    %681 = vmatprep.subr.mxu0 0.0
    %682 = vmatpush1.msra.mxu0 0.0
    %683 = vmatprep.subr.mxu0 0.0
    %684 = vmatpush1.msra.mxu0 0.0
    %685 = vmatprep.subr.mxu0 0.0
    %686 = vmatpush1.msra.mxu0 0.0
    %687 = vmatprep.subr.mxu0 0.0
    %688 = vmatpush1.msra.mxu0 0.0
    %689 = vmatprep.subr.mxu0 0.0
    %690 = vmatpush1.msra.mxu0 0.0
    %691 = vmatprep.subr.mxu0 0.0
    %692 = vmatpush1.msra.mxu0 0.0
    %693 = vmatprep.subr.mxu0 0.0
    %694 = vmatpush1.msra.mxu0 0.0
    %695 = vmatprep.subr.mxu0 0.0
    %696 = vmatpush1.msra.mxu0 0.0
    %697 = vmatprep.subr.mxu0 0.0
    %698 = vmatpush1.msra.mxu0 0.0
    %699 = vmatprep.subr.mxu0 0.0
    %700 = vmatpush1.msra.mxu0 0.0
    %701 = vmatprep.subr.mxu0 0.0
    %702 = vmatpush1.msra.mxu0 0.0
    %703 = vmatprep.subr.mxu0 0.0
    %704 = vmatpush1.msra.mxu0 0.0
    %705 = vmatprep.subr.mxu0 0.0
    %706 = vmatpush1.msra.mxu0 0.0
    %707 = vmatprep.subr.mxu0 0.0
    %708 = vmatpush1.msra.mxu0 0.0
    %709 = vmatprep.subr.mxu0 0.0
    %710 = vmatpush1.msra.mxu0 0.0
    %711 = vmatprep.subr.mxu0 0.0
    %712 = vmatpush1.msra.mxu0 0.0
    %713 = vmatprep.subr.mxu0 0.0
    %714 = vmatpush1.msra.mxu0 0.0
    %715 = vmatprep.subr.mxu0 0.0
    %716 = vmatpush1.msra.mxu0 0.0
    %717 = vmatprep.subr.mxu0 0.0
    %718 = vmatpush1.msra.mxu0 0.0
    %719 = vmatprep.subr.mxu0 0.0
    %720 = vmatpush1.msra.mxu0 0.0
    %721 = vmatprep.subr.mxu0 0.0
    %722 = vmatpush1.msra.mxu0 0.0
    %723 = vmatprep.mubr.f32.mxu0 0.0
    %724 = vmatmul.mubr.f32.gmra.mrb[0].mxu0 %v51
    %v725 = vpop.f32.mrb[0].mxu0
    %v726 = vadd.f32 0.0, %v725
    %v727 = vpop.f32.mrb[0].mxu0
    %728 = vmatprep.mubr.f32.mxu0 0.0
    %729 = vmatmul.mubr.f32.gmra.mrb[0].mxu0 %v54
    %v730 = vpop.f32.mrb[0].mxu0
    %v731 = vadd.f32 0.0, %v730
    %v732 = vpop.f32.mrb[0].mxu0
    %733 = vmatprep.mubr.f32.mxu0 0.0
    %734 = vmatmul.mubr.f32.gmra.mrb[0].mxu0 %v57
    %v735 = vpop.f32.mrb[0].mxu0
    %v736 = vadd.f32 0.0, %v735
    %v737 = vpop.f32.mrb[0].mxu0
    %738 = vmatprep.mubr.f32.mxu0 0.0
    %739 = vmatmul.mubr.f32.gmra.mrb[0].mxu0 %v60
    %v740 = vpop.f32.mrb[0].mxu0
    %v741 = vadd.f32 0.0, %v740
    %v742 = vpop.f32.mrb[0].mxu0
    %743 = vmatprep.mubr.f32.mxu0 0.0
    %744 = vmatmul.mubr.f32.gmra.mrb[0].mxu0 %v63
    %v745 = vpop.f32.mrb[0].mxu0
    %v746 = vadd.f32 0.0, %v745
    %v747 = vpop.f32.mrb[0].mxu0
    %748 = vmatprep.mubr.f32.mxu0 0.0
    %749 = vmatmul.mubr.f32.gmra.mrb[0].mxu0 %v66
    %v750 = vpop.f32.mrb[0].mxu0
    %v751 = vadd.f32 0.0, %v750
    %v752 = vpop.f32.mrb[0].mxu0
    %753 = vmatprep.mubr.f32.mxu0 0.0
    %754 = vmatmul.mubr.f32.gmra.mrb[0].mxu0 %v69
    %v755 = vpop.f32.mrb[0].mxu0
    %v756 = vadd.f32 0.0, %v755
    %v757 = vpop.f32.mrb[0].mxu0
    %758 = vmatprep.mubr.f32.mxu0 0.0
    %759 = vmatmul.mubr.f32.gmra.mrb[0].mxu0 %v72
    %v760 = vpop.f32.mrb[0].mxu0
    %v761 = vadd.f32 0.0, %v760
    %v762 = vpop.f32.mrb[0].mxu0
    %763 = vmatprep.mubr.f32.mxu0 0.0
    %764 = vmatmul.mubr.f32.gmra.mrb[0].mxu0 %v75
    %v765 = vpop.f32.mrb[0].mxu0
    %v766 = vadd.f32 0.0, %v765
    %v767 = vpop.f32.mrb[0].mxu0
    %768 = vmatprep.mubr.f32.mxu0 0.0
    %769 = vmatmul.mubr.f32.gmra.mrb[0].mxu0 %v78
    %v770 = vpop.f32.mrb[0].mxu0
    %v771 = vadd.f32 0.0, %v770
    %v772 = vpop.f32.mrb[0].mxu0
    %773 = vmatprep.mubr.f32.mxu0 0.0
    %774 = vmatmul.mubr.f32.gmra.mrb[0].mxu0 %v81
    %v775 = vpop.f32.mrb[0].mxu0
    %v776 = vadd.f32 0.0, %v775
    %v777 = vpop.f32.mrb[0].mxu0
    %778 = vmatprep.mubr.f32.mxu0 0.0
    %779 = vmatmul.mubr.f32.gmra.mrb[0].mxu0 %v84
    %v780 = vpop.f32.mrb[0].mxu0
    %v781 = vadd.f32 0.0, %v780
    %v782 = vpop.f32.mrb[0].mxu0
    %783 = vmatprep.mubr.f32.mxu0 0.0
    %784 = vmatmul.mubr.f32.gmra.mrb[0].mxu0 %v87
    %v785 = vpop.f32.mrb[0].mxu0
    %v786 = vadd.f32 0.0, %v785
    %v787 = vpop.f32.mrb[0].mxu0
    %788 = vmatprep.mubr.f32.mxu0 0.0
    %789 = vmatmul.mubr.f32.gmra.mrb[0].mxu0 %v90
    %v790 = vpop.f32.mrb[0].mxu0
    %v791 = vadd.f32 0.0, %v790
    %v792 = vpop.f32.mrb[0].mxu0
    %793 = vmatprep.mubr.f32.mxu0 0.0
    %794 = vmatmul.mubr.f32.gmra.mrb[0].mxu0 %v93
    %v795 = vpop.f32.mrb[0].mxu0
    %v796 = vadd.f32 0.0, %v795
    %v797 = vpop.f32.mrb[0].mxu0
    %798 = vmatprep.mubr.f32.mxu0 0.0
    %799 = vmatmul.mubr.f32.gmra.mrb[0].mxu0 %v96
    %v800 = vpop.f32.mrb[0].mxu0
    %v801 = vadd.f32 0.0, %v800
    %v802 = vpop.f32.mrb[0].mxu0
    %803 = vmatprep.mubr.f32.mxu0 0.0
    %804 = vmatmul.mubr.f32.gmra.mrb[0].mxu0 %v99
    %v805 = vpop.f32.mrb[0].mxu0
    %v806 = vadd.f32 0.0, %v805
    %v807 = vpop.f32.mrb[0].mxu0
    %808 = vmatprep.mubr.f32.mxu0 0.0
    %809 = vmatmul.mubr.f32.gmra.mrb[0].mxu0 %v102
    %v810 = vpop.f32.mrb[0].mxu0
    %v811 = vadd.f32 0.0, %v810
    %v812 = vpop.f32.mrb[0].mxu0
    %813 = vmatprep.mubr.f32.mxu0 0.0
    %814 = vmatmul.mubr.f32.gmra.mrb[0].mxu0 %v105
    %v815 = vpop.f32.mrb[0].mxu0
    %v816 = vadd.f32 0.0, %v815
    %v817 = vpop.f32.mrb[0].mxu0
    %818 = vmatprep.mubr.f32.mxu0 0.0
    %819 = vmatmul.mubr.f32.gmra.mrb[0].mxu0 %v108
    %v820 = vpop.f32.mrb[0].mxu0
    %v821 = vadd.f32 0.0, %v820
    %v822 = vpop.f32.mrb[0].mxu0
    %823 = vmatprep.mubr.f32.mxu0 0.0
    %824 = vmatmul.mubr.f32.gmra.mrb[0].mxu0 %v111
    %v825 = vpop.f32.mrb[0].mxu0
    %v826 = vadd.f32 0.0, %v825
    %v827 = vpop.f32.mrb[0].mxu0
    %828 = vmatprep.mubr.f32.mxu0 0.0
    %829 = vmatmul.mubr.f32.gmra.mrb[0].mxu0 %v114
    %v830 = vpop.f32.mrb[0].mxu0
    %v831 = vadd.f32 0.0, %v830
    %v832 = vpop.f32.mrb[0].mxu0
    %833 = vmatprep.mubr.f32.mxu0 0.0
    %834 = vmatmul.mubr.f32.gmra.mrb[0].mxu0 %v117
    %v835 = vpop.f32.mrb[0].mxu0
    %v836 = vadd.f32 0.0, %v835
    %v837 = vpop.f32.mrb[0].mxu0
    %838 = vmatprep.mubr.f32.mxu0 0.0
    %839 = vmatmul.mubr.f32.gmra.mrb[0].mxu0 %v120
    %v840 = vpop.f32.mrb[0].mxu0
    %v841 = vadd.f32 0.0, %v840
    %v842 = vpop.f32.mrb[0].mxu0
    %843 = vmatprep.mubr.f32.mxu0 0.0
    %844 = vmatmul.mubr.f32.gmra.mrb[0].mxu0 %v123
    %v845 = vpop.f32.mrb[0].mxu0
    %v846 = vadd.f32 0.0, %v845
    %v847 = vpop.f32.mrb[0].mxu0
    %848 = vmatprep.mubr.f32.mxu0 0.0
    %849 = vmatmul.mubr.f32.gmra.mrb[0].mxu0 %v126
    %v850 = vpop.f32.mrb[0].mxu0
    %v851 = vadd.f32 0.0, %v850
    %v852 = vpop.f32.mrb[0].mxu0
    %853 = vmatprep.mubr.f32.mxu0 0.0
    %854 = vmatmul.mubr.f32.gmra.mrb[0].mxu0 %v129
    %v855 = vpop.f32.mrb[0].mxu0
    %v856 = vadd.f32 0.0, %v855
    %v857 = vpop.f32.mrb[0].mxu0
    %858 = vmatprep.mubr.f32.mxu0 0.0
    %859 = vmatmul.mubr.f32.gmra.mrb[0].mxu0 %v132
    %v860 = vpop.f32.mrb[0].mxu0
    %v861 = vadd.f32 0.0, %v860
    %v862 = vpop.f32.mrb[0].mxu0
    %863 = vdwg.mxu0
    %v865 = vsel %vm49, %v726, 0
    %v868 = vsel %vm49, %v731, 0
    %v871 = vsel %vm49, %v736, 0
    %v874 = vsel %vm49, %v741, 0
    %v877 = vsel %vm49, %v746, 0
    %v880 = vsel %vm49, %v751, 0
    %v883 = vsel %vm49, %v756, 0
    %v886 = vsel %vm49, %v761, 0
    %v889 = vsel %vm49, %v766, 0
    %v892 = vsel %vm49, %v771, 0
    %v895 = vsel %vm49, %v776, 0
    %v898 = vsel %vm49, %v781, 0
    %v901 = vsel %vm49, %v786, 0
    %v904 = vsel %vm49, %v791, 0
    %v907 = vsel %vm49, %v796, 0
    %v910 = vsel %vm49, %v801, 0
    %v913 = vsel %vm49, %v806, 0
    %v916 = vsel %vm49, %v811, 0
    %v919 = vsel %vm49, %v816, 0
    %v922 = vsel %vm49, %v821, 0
    %v925 = vsel %vm49, %v826, 0
    %v928 = vsel %vm49, %v831, 0
    %v931 = vsel %vm49, %v836, 0
    %v934 = vsel %vm49, %v841, 0
    %v937 = vsel %vm49, %v846, 0
    %v940 = vsel %vm49, %v851, 0
    %v943 = vsel %vm49, %v856, 0
    %v946 = vsel %vm49, %v861, 0
    %948 = vmatprep.subr.mxu0 %v44
    %949 = vmatpush1.msra.mxu0 %v43
    %950 = vmatprep.subr.mxu0 %v46
    %951 = vmatpush1.msra.mxu0 %v45
    %952 = vmatprep.subr.mxu0 0.0
    %953 = vmatpush1.msra.mxu0 0.0
    %954 = vmatprep.subr.mxu0 0.0
    %955 = vmatpush1.msra.mxu0 0.0
    %956 = vmatprep.subr.mxu0 0.0
    %957 = vmatpush1.msra.mxu0 0.0
    %958 = vmatprep.subr.mxu0 0.0
    %959 = vmatpush1.msra.mxu0 0.0
    %960 = vmatprep.subr.mxu0 0.0
    %961 = vmatpush1.msra.mxu0 0.0
    %962 = vmatprep.subr.mxu0 0.0
    %963 = vmatpush1.msra.mxu0 0.0
    %964 = vmatprep.subr.mxu0 0.0
    %965 = vmatpush1.msra.mxu0 0.0
    %966 = vmatprep.subr.mxu0 0.0
    %967 = vmatpush1.msra.mxu0 0.0
    %968 = vmatprep.subr.mxu0 0.0
    %969 = vmatpush1.msra.mxu0 0.0
    %970 = vmatprep.subr.mxu0 0.0
    %971 = vmatpush1.msra.mxu0 0.0
    %972 = vmatprep.subr.mxu0 0.0
    %973 = vmatpush1.msra.mxu0 0.0
    %974 = vmatprep.subr.mxu0 0.0
    %975 = vmatpush1.msra.mxu0 0.0
    %976 = vmatprep.subr.mxu0 0.0
    %977 = vmatpush1.msra.mxu0 0.0
    %978 = vmatprep.subr.mxu0 0.0
    %979 = vmatpush1.msra.mxu0 0.0
    %980 = vmatprep.subr.mxu0 0.0
    %981 = vmatpush1.msra.mxu0 0.0
    %982 = vmatprep.subr.mxu0 0.0
    %983 = vmatpush1.msra.mxu0 0.0
    %984 = vmatprep.subr.mxu0 0.0
    %985 = vmatpush1.msra.mxu0 0.0
    %986 = vmatprep.subr.mxu0 0.0
    %987 = vmatpush1.msra.mxu0 0.0
    %988 = vmatprep.subr.mxu0 0.0
    %989 = vmatpush1.msra.mxu0 0.0
    %990 = vmatprep.subr.mxu0 0.0
    %991 = vmatpush1.msra.mxu0 0.0
    %992 = vmatprep.subr.mxu0 0.0
    %993 = vmatpush1.msra.mxu0 0.0
    %994 = vmatprep.subr.mxu0 0.0
    %995 = vmatpush1.msra.mxu0 0.0
    %996 = vmatprep.subr.mxu0 0.0
    %997 = vmatpush1.msra.mxu0 0.0
    %998 = vmatprep.subr.mxu0 0.0
    %999 = vmatpush1.msra.mxu0 0.0
    %1000 = vmatprep.subr.mxu0 0.0
    %1001 = vmatpush1.msra.mxu0 0.0
    %1002 = vmatprep.subr.mxu0 0.0
    %1003 = vmatpush1.msra.mxu0 0.0
    %1004 = vmatprep.subr.mxu0 0.0
    %1005 = vmatpush1.msra.mxu0 0.0
    %1006 = vmatprep.subr.mxu0 0.0
    %1007 = vmatpush1.msra.mxu0 0.0
    %1008 = vmatprep.subr.mxu0 0.0
    %1009 = vmatpush1.msra.mxu0 0.0
    %1010 = vmatprep.subr.mxu0 0.0
    %1011 = vmatpush1.msra.mxu0 0.0
    %1012 = vmatprep.mubr.f32.mxu0 0.0
    %1013 = vmatmul.mubr.f32.gmra.mrb[0].mxu0 %v865
    %v1014 = vpop.f32.mrb[0].mxu0
    %v1015 = vadd.f32 0.0, %v1014
    %v1016 = vpop.f32.mrb[0].mxu0
    %v1017 = vadd.f32 0.0, %v1016
    %1018 = vmatprep.mubr.f32.mxu0 0.0
    %1019 = vmatmul.mubr.f32.gmra.mrb[0].mxu0 %v868
    %v1020 = vpop.f32.mrb[0].mxu0
    %v1021 = vadd.f32 0.0, %v1020
    %v1022 = vpop.f32.mrb[0].mxu0
    %v1023 = vadd.f32 0.0, %v1022
    %1024 = vmatprep.mubr.f32.mxu0 0.0
    %1025 = vmatmul.mubr.f32.gmra.mrb[0].mxu0 %v871
    %v1026 = vpop.f32.mrb[0].mxu0
    %v1027 = vadd.f32 0.0, %v1026
    %v1028 = vpop.f32.mrb[0].mxu0
    %v1029 = vadd.f32 0.0, %v1028
    %1030 = vmatprep.mubr.f32.mxu0 0.0
    %1031 = vmatmul.mubr.f32.gmra.mrb[0].mxu0 %v874
    %v1032 = vpop.f32.mrb[0].mxu0
    %v1033 = vadd.f32 0.0, %v1032
    %v1034 = vpop.f32.mrb[0].mxu0
    %v1035 = vadd.f32 0.0, %v1034
    %1036 = vmatprep.mubr.f32.mxu0 0.0
    %1037 = vmatmul.mubr.f32.gmra.mrb[0].mxu0 %v877
    %v1038 = vpop.f32.mrb[0].mxu0
    %v1039 = vadd.f32 0.0, %v1038
    %v1040 = vpop.f32.mrb[0].mxu0
    %v1041 = vadd.f32 0.0, %v1040
    %1042 = vmatprep.mubr.f32.mxu0 0.0
    %1043 = vmatmul.mubr.f32.gmra.mrb[0].mxu0 %v880
    %v1044 = vpop.f32.mrb[0].mxu0
    %v1045 = vadd.f32 0.0, %v1044
    %v1046 = vpop.f32.mrb[0].mxu0
    %v1047 = vadd.f32 0.0, %v1046
    %1048 = vmatprep.mubr.f32.mxu0 0.0
    %1049 = vmatmul.mubr.f32.gmra.mrb[0].mxu0 %v883
    %v1050 = vpop.f32.mrb[0].mxu0
    %v1051 = vadd.f32 0.0, %v1050
    %v1052 = vpop.f32.mrb[0].mxu0
    %v1053 = vadd.f32 0.0, %v1052
    %1054 = vmatprep.mubr.f32.mxu0 0.0
    %1055 = vmatmul.mubr.f32.gmra.mrb[0].mxu0 %v886
    %v1056 = vpop.f32.mrb[0].mxu0
    %v1057 = vadd.f32 0.0, %v1056
    %v1058 = vpop.f32.mrb[0].mxu0
    %v1059 = vadd.f32 0.0, %v1058
    %1060 = vmatprep.mubr.f32.mxu0 0.0
    %1061 = vmatmul.mubr.f32.gmra.mrb[0].mxu0 %v889
    %v1062 = vpop.f32.mrb[0].mxu0
    %v1063 = vadd.f32 0.0, %v1062
    %v1064 = vpop.f32.mrb[0].mxu0
    %v1065 = vadd.f32 0.0, %v1064
    %1066 = vmatprep.mubr.f32.mxu0 0.0
    %1067 = vmatmul.mubr.f32.gmra.mrb[0].mxu0 %v892
    %v1068 = vpop.f32.mrb[0].mxu0
    %v1069 = vadd.f32 0.0, %v1068
    %v1070 = vpop.f32.mrb[0].mxu0
    %v1071 = vadd.f32 0.0, %v1070
    %1072 = vmatprep.mubr.f32.mxu0 0.0
    %1073 = vmatmul.mubr.f32.gmra.mrb[0].mxu0 %v895
    %v1074 = vpop.f32.mrb[0].mxu0
    %v1075 = vadd.f32 0.0, %v1074
    %v1076 = vpop.f32.mrb[0].mxu0
    %v1077 = vadd.f32 0.0, %v1076
    %1078 = vmatprep.mubr.f32.mxu0 0.0
    %1079 = vmatmul.mubr.f32.gmra.mrb[0].mxu0 %v898
    %v1080 = vpop.f32.mrb[0].mxu0
    %v1081 = vadd.f32 0.0, %v1080
    %v1082 = vpop.f32.mrb[0].mxu0
    %v1083 = vadd.f32 0.0, %v1082
    %1084 = vmatprep.mubr.f32.mxu0 0.0
    %1085 = vmatmul.mubr.f32.gmra.mrb[0].mxu0 %v901
    %v1086 = vpop.f32.mrb[0].mxu0
    %v1087 = vadd.f32 0.0, %v1086
    %v1088 = vpop.f32.mrb[0].mxu0
    %v1089 = vadd.f32 0.0, %v1088
    %1090 = vmatprep.mubr.f32.mxu0 0.0
    %1091 = vmatmul.mubr.f32.gmra.mrb[0].mxu0 %v904
    %v1092 = vpop.f32.mrb[0].mxu0
    %v1093 = vadd.f32 0.0, %v1092
    %v1094 = vpop.f32.mrb[0].mxu0
    %v1095 = vadd.f32 0.0, %v1094
    %1096 = vmatprep.mubr.f32.mxu0 0.0
    %1097 = vmatmul.mubr.f32.gmra.mrb[0].mxu0 %v907
    %v1098 = vpop.f32.mrb[0].mxu0
    %v1099 = vadd.f32 0.0, %v1098
    %v1100 = vpop.f32.mrb[0].mxu0
    %v1101 = vadd.f32 0.0, %v1100
    %1102 = vmatprep.mubr.f32.mxu0 0.0
    %1103 = vmatmul.mubr.f32.gmra.mrb[0].mxu0 %v910
    %v1104 = vpop.f32.mrb[0].mxu0
    %v1105 = vadd.f32 0.0, %v1104
    %v1106 = vpop.f32.mrb[0].mxu0
    %v1107 = vadd.f32 0.0, %v1106
    %1108 = vmatprep.mubr.f32.mxu0 0.0
    %1109 = vmatmul.mubr.f32.gmra.mrb[0].mxu0 %v913
    %v1110 = vpop.f32.mrb[0].mxu0
    %v1111 = vadd.f32 0.0, %v1110
    %v1112 = vpop.f32.mrb[0].mxu0
    %v1113 = vadd.f32 0.0, %v1112
    %1114 = vmatprep.mubr.f32.mxu0 0.0
    %1115 = vmatmul.mubr.f32.gmra.mrb[0].mxu0 %v916
    %v1116 = vpop.f32.mrb[0].mxu0
    %v1117 = vadd.f32 0.0, %v1116
    %v1118 = vpop.f32.mrb[0].mxu0
    %v1119 = vadd.f32 0.0, %v1118
    %1120 = vmatprep.mubr.f32.mxu0 0.0
    %1121 = vmatmul.mubr.f32.gmra.mrb[0].mxu0 %v919
    %v1122 = vpop.f32.mrb[0].mxu0
    %v1123 = vadd.f32 0.0, %v1122
    %v1124 = vpop.f32.mrb[0].mxu0
    %v1125 = vadd.f32 0.0, %v1124
    %1126 = vmatprep.mubr.f32.mxu0 0.0
    %1127 = vmatmul.mubr.f32.gmra.mrb[0].mxu0 %v922
    %v1128 = vpop.f32.mrb[0].mxu0
    %v1129 = vadd.f32 0.0, %v1128
    %v1130 = vpop.f32.mrb[0].mxu0
    %v1131 = vadd.f32 0.0, %v1130
    %1132 = vmatprep.mubr.f32.mxu0 0.0
    %1133 = vmatmul.mubr.f32.gmra.mrb[0].mxu0 %v925
    %v1134 = vpop.f32.mrb[0].mxu0
    %v1135 = vadd.f32 0.0, %v1134
    %v1136 = vpop.f32.mrb[0].mxu0
    %v1137 = vadd.f32 0.0, %v1136
    %1138 = vmatprep.mubr.f32.mxu0 0.0
    %1139 = vmatmul.mubr.f32.gmra.mrb[0].mxu0 %v928
    %v1140 = vpop.f32.mrb[0].mxu0
    %v1141 = vadd.f32 0.0, %v1140
    %v1142 = vpop.f32.mrb[0].mxu0
    %v1143 = vadd.f32 0.0, %v1142
    %1144 = vmatprep.mubr.f32.mxu0 0.0
    %1145 = vmatmul.mubr.f32.gmra.mrb[0].mxu0 %v931
    %v1146 = vpop.f32.mrb[0].mxu0
    %v1147 = vadd.f32 0.0, %v1146
    %v1148 = vpop.f32.mrb[0].mxu0
    %v1149 = vadd.f32 0.0, %v1148
    %1150 = vmatprep.mubr.f32.mxu0 0.0
    %1151 = vmatmul.mubr.f32.gmra.mrb[0].mxu0 %v934
    %v1152 = vpop.f32.mrb[0].mxu0
    %v1153 = vadd.f32 0.0, %v1152
    %v1154 = vpop.f32.mrb[0].mxu0
    %v1155 = vadd.f32 0.0, %v1154
    %1156 = vmatprep.mubr.f32.mxu0 0.0
    %1157 = vmatmul.mubr.f32.gmra.mrb[0].mxu0 %v937
    %v1158 = vpop.f32.mrb[0].mxu0
    %v1159 = vadd.f32 0.0, %v1158
    %v1160 = vpop.f32.mrb[0].mxu0
    %v1161 = vadd.f32 0.0, %v1160
    %1162 = vmatprep.mubr.f32.mxu0 0.0
    %1163 = vmatmul.mubr.f32.gmra.mrb[0].mxu0 %v940
    %v1164 = vpop.f32.mrb[0].mxu0
    %v1165 = vadd.f32 0.0, %v1164
    %v1166 = vpop.f32.mrb[0].mxu0
    %v1167 = vadd.f32 0.0, %v1166
    %1168 = vmatprep.mubr.f32.mxu0 0.0
    %1169 = vmatmul.mubr.f32.gmra.mrb[0].mxu0 %v943
    %v1170 = vpop.f32.mrb[0].mxu0
    %v1171 = vadd.f32 0.0, %v1170
    %v1172 = vpop.f32.mrb[0].mxu0
    %v1173 = vadd.f32 0.0, %v1172
    %1174 = vmatprep.mubr.f32.mxu0 0.0
    %1175 = vmatmul.mubr.f32.gmra.mrb[0].mxu0 %v946
    %v1176 = vpop.f32.mrb[0].mxu0
    %v1177 = vadd.f32 0.0, %v1176
    %v1178 = vpop.f32.mrb[0].mxu0
    %v1179 = vadd.f32 0.0, %v1178
    %1180 = vdwg.mxu0
    %vm1181 = vcmask 785408
    %v1182 = vsel %vm1181, %v492, inf
    %v1183 = vsel %vm1181, %v498, inf
    %v1184 = vmin.f32 %v490, %v502
    %v1185 = vsel %vm1181, %v504, inf
    %v1186 = vmin.f32 %v1182, %v1185
    %v1187 = vmin.f32 %v496, %v508
    %v1188 = vsel %vm1181, %v510, inf
    %v1189 = vmin.f32 %v1183, %v1188
    %v1190 = vmin.f32 %v1184, %v514
    %v1191 = vsel %vm1181, %v516, inf
    %v1192 = vmin.f32 %v1186, %v1191
    %v1193 = vmin.f32 %v1187, %v520
    %v1194 = vsel %vm1181, %v522, inf
    %v1195 = vmin.f32 %v1189, %v1194
    %v1196 = vmin.f32 %v1190, %v526
    %v1197 = vsel %vm1181, %v528, inf
    %v1198 = vmin.f32 %v1192, %v1197
    %v1199 = vmin.f32 %v1193, %v532
    %v1200 = vsel %vm1181, %v534, inf
    %v1201 = vmin.f32 %v1195, %v1200
    %v1202 = vmin.f32 %v1196, %v538
    %v1203 = vsel %vm1181, %v540, inf
    %v1204 = vmin.f32 %v1198, %v1203
    %v1205 = vmin.f32 %v1199, %v544
    %v1206 = vsel %vm1181, %v546, inf
    %v1207 = vmin.f32 %v1201, %v1206
    %v1208 = vmin.f32 %v1202, %v550
    %v1209 = vsel %vm1181, %v552, inf
    %v1210 = vmin.f32 %v1204, %v1209
    %v1211 = vmin.f32 %v1205, %v556
    %v1212 = vsel %vm1181, %v558, inf
    %v1213 = vmin.f32 %v1207, %v1212
    %v1214 = vmin.f32 %v1208, %v562
    %v1215 = vsel %vm1181, %v564, inf
    %v1216 = vmin.f32 %v1210, %v1215
    %v1217 = vmin.f32 %v1211, %v568
    %v1218 = vsel %vm1181, %v570, inf
    %v1219 = vmin.f32 %v1213, %v1218
    %v1220 = vmin.f32 %v1214, %v574
    %v1221 = vsel %vm1181, %v576, inf
    %v1222 = vmin.f32 %v1216, %v1221
    %v1223 = vmin.f32 %v1217, %v580
    %v1224 = vsel %vm1181, %v582, inf
    %v1225 = vmin.f32 %v1219, %v1224
    %v1226 = vmin.f32 %v1220, %v586
    %v1227 = vsel %vm1181, %v588, inf
    %v1228 = vmin.f32 %v1222, %v1227
    %v1229 = vmin.f32 %v1223, %v592
    %v1230 = vsel %vm1181, %v594, inf
    %v1231 = vmin.f32 %v1225, %v1230
    %v1232 = vmin.f32 %v1226, %v598
    %v1233 = vsel %vm1181, %v600, inf
    %v1234 = vmin.f32 %v1228, %v1233
    %v1235 = vmin.f32 %v1229, %v604
    %v1236 = vsel %vm1181, %v606, inf
    %v1237 = vmin.f32 %v1231, %v1236
    %v1238 = vmin.f32 %v1232, %v610
    %v1239 = vsel %vm1181, %v612, inf
    %v1240 = vmin.f32 %v1234, %v1239
    %v1241 = vmin.f32 %v1235, %v616
    %v1242 = vsel %vm1181, %v618, inf
    %v1243 = vmin.f32 %v1237, %v1242
    %v1244 = vmin.f32 %v1238, %v622
    %v1245 = vsel %vm1181, %v624, inf
    %v1246 = vmin.f32 %v1240, %v1245
    %v1247 = vmin.f32 %v1241, %v628
    %v1248 = vsel %vm1181, %v630, inf
    %v1249 = vmin.f32 %v1243, %v1248
    %v1250 = vmin.f32 %v1244, %v634
    %v1251 = vsel %vm1181, %v636, inf
    %v1252 = vmin.f32 %v1246, %v1251
    %v1253 = vmin.f32 %v1247, %v640
    %v1254 = vsel %vm1181, %v642, inf
    %v1255 = vmin.f32 %v1249, %v1254
    %v1256 = vmin.f32 %v1250, %v646
    %v1257 = vsel %vm1181, %v648, inf
    %v1258 = vmin.f32 %v1252, %v1257
    %v1259 = vmin.f32 %v1253, %v652
    %v1260 = vsel %vm1181, %v654, inf
    %v1261 = vmin.f32 %v1255, %v1260
    %v1262 = vmin.f32 %v1256, %v1258
    %v1263 = vmin.f32 %v1259, %v1261
    %v1264 = vmin.f32 %v1262, %v1263
    %1265 = vmin.xlane.f32.xlu0 %v1264
    %v1266 = vpop.xlane.xlu0 %1265
    %v1267 = vrot.slane %v1266, 4
    %v1268 = vmin.f32 %v1266, %v1267
    %v1269 = vrot.slane %v1268, 2
    %v1270 = vmin.f32 %v1268, %v1269
    %v1271 = vrot.slane %v1270, 1
    %v1272 = vmin.f32 %v1270, %v1271
    %s1273 = vtos %v1272
    %v1274 = vsel %vm1181, %v492, -inf
    %v1275 = vsel %vm1181, %v498, -inf
    %v1276 = vmax.f32 %v490, %v502
    %v1277 = vsel %vm1181, %v504, -inf
    %v1278 = vmax.f32 %v1274, %v1277
    %v1279 = vmax.f32 %v496, %v508
    %v1280 = vsel %vm1181, %v510, -inf
    %v1281 = vmax.f32 %v1275, %v1280
    %v1282 = vmax.f32 %v1276, %v514
    %v1283 = vsel %vm1181, %v516, -inf
    %v1284 = vmax.f32 %v1278, %v1283
    %v1285 = vmax.f32 %v1279, %v520
    %v1286 = vsel %vm1181, %v522, -inf
    %v1287 = vmax.f32 %v1281, %v1286
    %v1288 = vmax.f32 %v1282, %v526
    %v1289 = vsel %vm1181, %v528, -inf
    %v1290 = vmax.f32 %v1284, %v1289
    %v1291 = vmax.f32 %v1285, %v532
    %v1292 = vsel %vm1181, %v534, -inf
    %v1293 = vmax.f32 %v1287, %v1292
    %v1294 = vmax.f32 %v1288, %v538
    %v1295 = vsel %vm1181, %v540, -inf
    %v1296 = vmax.f32 %v1290, %v1295
    %v1297 = vmax.f32 %v1291, %v544
    %v1298 = vsel %vm1181, %v546, -inf
    %v1299 = vmax.f32 %v1293, %v1298
    %v1300 = vmax.f32 %v1294, %v550
    %v1301 = vsel %vm1181, %v552, -inf
    %v1302 = vmax.f32 %v1296, %v1301
    %v1303 = vmax.f32 %v1297, %v556
    %v1304 = vsel %vm1181, %v558, -inf
    %v1305 = vmax.f32 %v1299, %v1304
    %v1306 = vmax.f32 %v1300, %v562
    %v1307 = vsel %vm1181, %v564, -inf
    %v1308 = vmax.f32 %v1302, %v1307
    %v1309 = vmax.f32 %v1303, %v568
    %v1310 = vsel %vm1181, %v570, -inf
    %v1311 = vmax.f32 %v1305, %v1310
    %v1312 = vmax.f32 %v1306, %v574
    %v1313 = vsel %vm1181, %v576, -inf
    %v1314 = vmax.f32 %v1308, %v1313
    %v1315 = vmax.f32 %v1309, %v580
    %v1316 = vsel %vm1181, %v582, -inf
    %v1317 = vmax.f32 %v1311, %v1316
    %v1318 = vmax.f32 %v1312, %v586
    %v1319 = vsel %vm1181, %v588, -inf
    %v1320 = vmax.f32 %v1314, %v1319
    %v1321 = vmax.f32 %v1315, %v592
    %v1322 = vsel %vm1181, %v594, -inf
    %v1323 = vmax.f32 %v1317, %v1322
    %v1324 = vmax.f32 %v1318, %v598
    %v1325 = vsel %vm1181, %v600, -inf
    %v1326 = vmax.f32 %v1320, %v1325
    %v1327 = vmax.f32 %v1321, %v604
    %v1328 = vsel %vm1181, %v606, -inf
    %v1329 = vmax.f32 %v1323, %v1328
    %v1330 = vmax.f32 %v1324, %v610
    %v1331 = vsel %vm1181, %v612, -inf
    %v1332 = vmax.f32 %v1326, %v1331
    %v1333 = vmax.f32 %v1327, %v616
    %v1334 = vsel %vm1181, %v618, -inf
    %v1335 = vmax.f32 %v1329, %v1334
    %v1336 = vmax.f32 %v1330, %v622
    %v1337 = vsel %vm1181, %v624, -inf
    %v1338 = vmax.f32 %v1332, %v1337
    %v1339 = vmax.f32 %v1333, %v628
    %v1340 = vsel %vm1181, %v630, -inf
    %v1341 = vmax.f32 %v1335, %v1340
    %v1342 = vmax.f32 %v1336, %v634
    %v1343 = vsel %vm1181, %v636, -inf
    %v1344 = vmax.f32 %v1338, %v1343
    %v1345 = vmax.f32 %v1339, %v640
    %v1346 = vsel %vm1181, %v642, -inf
    %v1347 = vmax.f32 %v1341, %v1346
    %v1348 = vmax.f32 %v1342, %v646
    %v1349 = vsel %vm1181, %v648, -inf
    %v1350 = vmax.f32 %v1344, %v1349
    %v1351 = vmax.f32 %v1345, %v652
    %v1352 = vsel %vm1181, %v654, -inf
    %v1353 = vmax.f32 %v1347, %v1352
    %v1354 = vmax.f32 %v1348, %v1350
    %v1355 = vmax.f32 %v1351, %v1353
    %v1356 = vmax.f32 %v1354, %v1355
    %1357 = vmax.xlane.f32.xlu0 %v1356
    %v1358 = vpop.xlane.xlu0 %1357
    %v1359 = vrot.slane %v1358, 4
    %v1360 = vmax.f32 %v1358, %v1359
    %v1361 = vrot.slane %v1360, 2
    %v1362 = vmax.f32 %v1360, %v1361
    %v1363 = vrot.slane %v1362, 1
    %v1364 = vmax.f32 %v1362, %v1363
    %s1365 = vtos %v1364
    %v1366 = vsel %vm1181, %v1017, inf
    %v1367 = vsel %vm1181, %v1023, inf
    %v1368 = vmin.f32 %v1015, %v1027
    %v1369 = vsel %vm1181, %v1029, inf
    %v1370 = vmin.f32 %v1366, %v1369
    %v1371 = vmin.f32 %v1021, %v1033
    %v1372 = vsel %vm1181, %v1035, inf
    %v1373 = vmin.f32 %v1367, %v1372
    %v1374 = vmin.f32 %v1368, %v1039
    %v1375 = vsel %vm1181, %v1041, inf
    %v1376 = vmin.f32 %v1370, %v1375
    %v1377 = vmin.f32 %v1371, %v1045
    %v1378 = vsel %vm1181, %v1047, inf
    %v1379 = vmin.f32 %v1373, %v1378
    %v1380 = vmin.f32 %v1374, %v1051
    %v1381 = vsel %vm1181, %v1053, inf
    %v1382 = vmin.f32 %v1376, %v1381
    %v1383 = vmin.f32 %v1377, %v1057
    %v1384 = vsel %vm1181, %v1059, inf
    %v1385 = vmin.f32 %v1379, %v1384
    %v1386 = vmin.f32 %v1380, %v1063
    %v1387 = vsel %vm1181, %v1065, inf
    %v1388 = vmin.f32 %v1382, %v1387
    %v1389 = vmin.f32 %v1383, %v1069
    %v1390 = vsel %vm1181, %v1071, inf
    %v1391 = vmin.f32 %v1385, %v1390
    %v1392 = vmin.f32 %v1386, %v1075
    %v1393 = vsel %vm1181, %v1077, inf
    %v1394 = vmin.f32 %v1388, %v1393
    %v1395 = vmin.f32 %v1389, %v1081
    %v1396 = vsel %vm1181, %v1083, inf
    %v1397 = vmin.f32 %v1391, %v1396
    %v1398 = vmin.f32 %v1392, %v1087
    %v1399 = vsel %vm1181, %v1089, inf
    %v1400 = vmin.f32 %v1394, %v1399
    %v1401 = vmin.f32 %v1395, %v1093
    %v1402 = vsel %vm1181, %v1095, inf
    %v1403 = vmin.f32 %v1397, %v1402
    %v1404 = vmin.f32 %v1398, %v1099
    %v1405 = vsel %vm1181, %v1101, inf
    %v1406 = vmin.f32 %v1400, %v1405
    %v1407 = vmin.f32 %v1401, %v1105
    %v1408 = vsel %vm1181, %v1107, inf
    %v1409 = vmin.f32 %v1403, %v1408
    %v1410 = vmin.f32 %v1404, %v1111
    %v1411 = vsel %vm1181, %v1113, inf
    %v1412 = vmin.f32 %v1406, %v1411
    %v1413 = vmin.f32 %v1407, %v1117
    %v1414 = vsel %vm1181, %v1119, inf
    %v1415 = vmin.f32 %v1409, %v1414
    %v1416 = vmin.f32 %v1410, %v1123
    %v1417 = vsel %vm1181, %v1125, inf
    %v1418 = vmin.f32 %v1412, %v1417
    %v1419 = vmin.f32 %v1413, %v1129
    %v1420 = vsel %vm1181, %v1131, inf
    %v1421 = vmin.f32 %v1415, %v1420
    %v1422 = vmin.f32 %v1416, %v1135
    %v1423 = vsel %vm1181, %v1137, inf
    %v1424 = vmin.f32 %v1418, %v1423
    %v1425 = vmin.f32 %v1419, %v1141
    %v1426 = vsel %vm1181, %v1143, inf
    %v1427 = vmin.f32 %v1421, %v1426
    %v1428 = vmin.f32 %v1422, %v1147
    %v1429 = vsel %vm1181, %v1149, inf
    %v1430 = vmin.f32 %v1424, %v1429
    %v1431 = vmin.f32 %v1425, %v1153
    %v1432 = vsel %vm1181, %v1155, inf
    %v1433 = vmin.f32 %v1427, %v1432
    %v1434 = vmin.f32 %v1428, %v1159
    %v1435 = vsel %vm1181, %v1161, inf
    %v1436 = vmin.f32 %v1430, %v1435
    %v1437 = vmin.f32 %v1431, %v1165
    %v1438 = vsel %vm1181, %v1167, inf
    %v1439 = vmin.f32 %v1433, %v1438
    %v1440 = vmin.f32 %v1434, %v1171
    %v1441 = vsel %vm1181, %v1173, inf
    %v1442 = vmin.f32 %v1436, %v1441
    %v1443 = vmin.f32 %v1437, %v1177
    %v1444 = vsel %vm1181, %v1179, inf
    %v1445 = vmin.f32 %v1439, %v1444
    %v1446 = vmin.f32 %v1440, %v1442
    %v1447 = vmin.f32 %v1443, %v1445
    %v1448 = vmin.f32 %v1446, %v1447
    %1449 = vmin.xlane.f32.xlu0 %v1448
    %v1450 = vpop.xlane.xlu0 %1449
    %v1451 = vrot.slane %v1450, 4
    %v1452 = vmin.f32 %v1450, %v1451
    %v1453 = vrot.slane %v1452, 2
    %v1454 = vmin.f32 %v1452, %v1453
    %v1455 = vrot.slane %v1454, 1
    %v1456 = vmin.f32 %v1454, %v1455
    %s1457 = vtos %v1456
    %s1458 = smin.f32 %s1273, %s1457
    %v1459 = vsel %vm1181, %v1017, -inf
    %v1460 = vsel %vm1181, %v1023, -inf
    %v1461 = vmax.f32 %v1015, %v1027
    %v1462 = vsel %vm1181, %v1029, -inf
    %v1463 = vmax.f32 %v1459, %v1462
    %v1464 = vmax.f32 %v1021, %v1033
    %v1465 = vsel %vm1181, %v1035, -inf
    %v1466 = vmax.f32 %v1460, %v1465
    %v1467 = vmax.f32 %v1461, %v1039
    %v1468 = vsel %vm1181, %v1041, -inf
    %v1469 = vmax.f32 %v1463, %v1468
    %v1470 = vmax.f32 %v1464, %v1045
    %v1471 = vsel %vm1181, %v1047, -inf
    %v1472 = vmax.f32 %v1466, %v1471
    %v1473 = vmax.f32 %v1467, %v1051
    %v1474 = vsel %vm1181, %v1053, -inf
    %v1475 = vmax.f32 %v1469, %v1474
    %v1476 = vmax.f32 %v1470, %v1057
    %v1477 = vsel %vm1181, %v1059, -inf
    %v1478 = vmax.f32 %v1472, %v1477
    %v1479 = vmax.f32 %v1473, %v1063
    %v1480 = vsel %vm1181, %v1065, -inf
    %v1481 = vmax.f32 %v1475, %v1480
    %v1482 = vmax.f32 %v1476, %v1069
    %v1483 = vsel %vm1181, %v1071, -inf
    %v1484 = vmax.f32 %v1478, %v1483
    %v1485 = vmax.f32 %v1479, %v1075
    %v1486 = vsel %vm1181, %v1077, -inf
    %v1487 = vmax.f32 %v1481, %v1486
    %v1488 = vmax.f32 %v1482, %v1081
    %v1489 = vsel %vm1181, %v1083, -inf
    %v1490 = vmax.f32 %v1484, %v1489
    %v1491 = vmax.f32 %v1485, %v1087
    %v1492 = vsel %vm1181, %v1089, -inf
    %v1493 = vmax.f32 %v1487, %v1492
    %v1494 = vmax.f32 %v1488, %v1093
    %v1495 = vsel %vm1181, %v1095, -inf
    %v1496 = vmax.f32 %v1490, %v1495
    %v1497 = vmax.f32 %v1491, %v1099
    %v1498 = vsel %vm1181, %v1101, -inf
    %v1499 = vmax.f32 %v1493, %v1498
    %v1500 = vmax.f32 %v1494, %v1105
    %v1501 = vsel %vm1181, %v1107, -inf
    %v1502 = vmax.f32 %v1496, %v1501
    %v1503 = vmax.f32 %v1497, %v1111
    %v1504 = vsel %vm1181, %v1113, -inf
    %v1505 = vmax.f32 %v1499, %v1504
    %v1506 = vmax.f32 %v1500, %v1117
    %v1507 = vsel %vm1181, %v1119, -inf
    %v1508 = vmax.f32 %v1502, %v1507
    %v1509 = vmax.f32 %v1503, %v1123
    %v1510 = vsel %vm1181, %v1125, -inf
    %v1511 = vmax.f32 %v1505, %v1510
    %v1512 = vmax.f32 %v1506, %v1129
    %v1513 = vsel %vm1181, %v1131, -inf
    %v1514 = vmax.f32 %v1508, %v1513
    %v1515 = vmax.f32 %v1509, %v1135
    %v1516 = vsel %vm1181, %v1137, -inf
    %v1517 = vmax.f32 %v1511, %v1516
    %v1518 = vmax.f32 %v1512, %v1141
    %v1519 = vsel %vm1181, %v1143, -inf
    %v1520 = vmax.f32 %v1514, %v1519
    %v1521 = vmax.f32 %v1515, %v1147
    %v1522 = vsel %vm1181, %v1149, -inf
    %v1523 = vmax.f32 %v1517, %v1522
    %v1524 = vmax.f32 %v1518, %v1153
    %v1525 = vsel %vm1181, %v1155, -inf
    %v1526 = vmax.f32 %v1520, %v1525
    %v1527 = vmax.f32 %v1521, %v1159
    %v1528 = vsel %vm1181, %v1161, -inf
    %v1529 = vmax.f32 %v1523, %v1528
    %v1530 = vmax.f32 %v1524, %v1165
    %v1531 = vsel %vm1181, %v1167, -inf
    %v1532 = vmax.f32 %v1526, %v1531
    %v1533 = vmax.f32 %v1527, %v1171
    %v1534 = vsel %vm1181, %v1173, -inf
    %v1535 = vmax.f32 %v1529, %v1534
    %v1536 = vmax.f32 %v1530, %v1177
    %v1537 = vsel %vm1181, %v1179, -inf
    %v1538 = vmax.f32 %v1532, %v1537
    %v1539 = vmax.f32 %v1533, %v1535
    %v1540 = vmax.f32 %v1536, %v1538
    %v1541 = vmax.f32 %v1539, %v1540
    %1542 = vmax.xlane.f32.xlu0 %v1541
    %v1543 = vpop.xlane.xlu0 %1542
    %v1544 = vrot.slane %v1543, 4
    %v1545 = vmax.f32 %v1543, %v1544
    %v1546 = vrot.slane %v1545, 2
    %v1547 = vmax.f32 %v1545, %v1546
    %v1548 = vrot.slane %v1547, 1
    %v1549 = vmax.f32 %v1547, %v1548
    %s1550 = vtos %v1549
    %s1551 = smax.f32 %s1365, %s1550
    %s1552 = ssub.f32 %s1551, %s1458
    %p1553 = scmp.gt.f32.partialorder %s1552, 0.0
    %v1554 = vstv %s1552
    %v1555 = vrcp.pop %v1554
    %s1556 = vtos %v1555
    %s1557 = scalar_select %p1553, %s1556, 1.0
    %v1558 = vstv %s1458
    %v1559 = vsub.f32 %v490, %v1558
    %v1560 = vsub.f32 %v492, %v1558
    %v1561 = vsub.f32 %v496, %v1558
    %v1562 = vsub.f32 %v498, %v1558
    %v1563 = vsub.f32 %v502, %v1558
    %v1564 = vsub.f32 %v504, %v1558
    %v1565 = vsub.f32 %v508, %v1558
    %v1566 = vsub.f32 %v510, %v1558
    %v1567 = vsub.f32 %v514, %v1558
    %v1568 = vsub.f32 %v516, %v1558
    %v1569 = vsub.f32 %v520, %v1558
    %v1570 = vsub.f32 %v522, %v1558
    %v1571 = vsub.f32 %v526, %v1558
    %v1572 = vsub.f32 %v528, %v1558
    %v1573 = vsub.f32 %v532, %v1558
    %v1574 = vsub.f32 %v534, %v1558
    %v1575 = vsub.f32 %v538, %v1558
    %v1576 = vsub.f32 %v540, %v1558
    %v1577 = vsub.f32 %v544, %v1558
    %v1578 = vsub.f32 %v546, %v1558
    %v1579 = vsub.f32 %v550, %v1558
    %v1580 = vsub.f32 %v552, %v1558
    %v1581 = vsub.f32 %v556, %v1558
    %v1582 = vsub.f32 %v558, %v1558
    %v1583 = vsub.f32 %v562, %v1558
    %v1584 = vsub.f32 %v564, %v1558
    %v1585 = vsub.f32 %v568, %v1558
    %v1586 = vsub.f32 %v570, %v1558
    %v1587 = vsub.f32 %v574, %v1558
    %v1588 = vsub.f32 %v576, %v1558
    %v1589 = vsub.f32 %v580, %v1558
    %v1590 = vsub.f32 %v582, %v1558
    %v1591 = vsub.f32 %v586, %v1558
    %v1592 = vsub.f32 %v588, %v1558
    %v1593 = vsub.f32 %v592, %v1558
    %v1594 = vsub.f32 %v594, %v1558
    %v1595 = vsub.f32 %v598, %v1558
    %v1596 = vsub.f32 %v600, %v1558
    %v1597 = vsub.f32 %v604, %v1558
    %v1598 = vsub.f32 %v606, %v1558
    %v1599 = vsub.f32 %v610, %v1558
    %v1600 = vsub.f32 %v612, %v1558
    %v1601 = vsub.f32 %v616, %v1558
    %v1602 = vsub.f32 %v618, %v1558
    %v1603 = vsub.f32 %v622, %v1558
    %v1604 = vsub.f32 %v624, %v1558
    %v1605 = vsub.f32 %v628, %v1558
    %v1606 = vsub.f32 %v630, %v1558
    %v1607 = vsub.f32 %v634, %v1558
    %v1608 = vsub.f32 %v636, %v1558
    %v1609 = vsub.f32 %v640, %v1558
    %v1610 = vsub.f32 %v642, %v1558
    %v1611 = vsub.f32 %v646, %v1558
    %v1612 = vsub.f32 %v648, %v1558
    %v1613 = vsub.f32 %v652, %v1558
    %v1614 = vsub.f32 %v654, %v1558
    %v1615 = vstv %s1557
    %v1616 = vmul.f32 %v1559, %v1615
    %v1617 = vmul.f32 %v1560, %v1615
    %v1618 = vmul.f32 %v1561, %v1615
    %v1619 = vmul.f32 %v1562, %v1615
    %v1620 = vmul.f32 %v1563, %v1615
    %v1621 = vmul.f32 %v1564, %v1615
    %v1622 = vmul.f32 %v1565, %v1615
    %v1623 = vmul.f32 %v1566, %v1615
    %v1624 = vmul.f32 %v1567, %v1615
    %v1625 = vmul.f32 %v1568, %v1615
    %v1626 = vmul.f32 %v1569, %v1615
    %v1627 = vmul.f32 %v1570, %v1615
    %v1628 = vmul.f32 %v1571, %v1615
    %v1629 = vmul.f32 %v1572, %v1615
    %v1630 = vmul.f32 %v1573, %v1615
    %v1631 = vmul.f32 %v1574, %v1615
    %v1632 = vmul.f32 %v1575, %v1615
    %v1633 = vmul.f32 %v1576, %v1615
    %v1634 = vmul.f32 %v1577, %v1615
    %v1635 = vmul.f32 %v1578, %v1615
    %v1636 = vmul.f32 %v1579, %v1615
    %v1637 = vmul.f32 %v1580, %v1615
    %v1638 = vmul.f32 %v1581, %v1615
    %v1639 = vmul.f32 %v1582, %v1615
    %v1640 = vmul.f32 %v1583, %v1615
    %v1641 = vmul.f32 %v1584, %v1615
    %v1642 = vmul.f32 %v1585, %v1615
    %v1643 = vmul.f32 %v1586, %v1615
    %v1644 = vmul.f32 %v1587, %v1615
    %v1645 = vmul.f32 %v1588, %v1615
    %v1646 = vmul.f32 %v1589, %v1615
    %v1647 = vmul.f32 %v1590, %v1615
    %v1648 = vmul.f32 %v1591, %v1615
    %v1649 = vmul.f32 %v1592, %v1615
    %v1650 = vmul.f32 %v1593, %v1615
    %v1651 = vmul.f32 %v1594, %v1615
    %v1652 = vmul.f32 %v1595, %v1615
    %v1653 = vmul.f32 %v1596, %v1615
    %v1654 = vmul.f32 %v1597, %v1615
    %v1655 = vmul.f32 %v1598, %v1615
    %v1656 = vmul.f32 %v1599, %v1615
    %v1657 = vmul.f32 %v1600, %v1615
    %v1658 = vmul.f32 %v1601, %v1615
    %v1659 = vmul.f32 %v1602, %v1615
    %v1660 = vmul.f32 %v1603, %v1615
    %v1661 = vmul.f32 %v1604, %v1615
    %v1662 = vmul.f32 %v1605, %v1615
    %v1663 = vmul.f32 %v1606, %v1615
    %v1664 = vmul.f32 %v1607, %v1615
    %v1665 = vmul.f32 %v1608, %v1615
    %v1666 = vmul.f32 %v1609, %v1615
    %v1667 = vmul.f32 %v1610, %v1615
    %v1668 = vmul.f32 %v1611, %v1615
    %v1669 = vmul.f32 %v1612, %v1615
    %v1670 = vmul.f32 %v1613, %v1615
    %v1671 = vmul.f32 %v1614, %v1615
    %1672 = vst [vmem:[#allocation2] sm:$0xff] %v1616
    %1673 = vst.msk [vmem:[#allocation2 + $0x8] sm:$0xff] %vm1181, %v1617
    %1674 = vst [vmem:[#allocation2 + $0x10] sm:$0xff] %v1618
    %1675 = vst.msk [vmem:[#allocation2 + $0x18] sm:$0xff] %vm1181, %v1619
    %1676 = vst [vmem:[#allocation2 + $0x20] sm:$0xff] %v1620
    %1677 = vst.msk [vmem:[#allocation2 + $0x28] sm:$0xff] %vm1181, %v1621
    %1678 = vst [vmem:[#allocation2 + $0x30] sm:$0xff] %v1622
    %1679 = vst.msk [vmem:[#allocation2 + $0x38] sm:$0xff] %vm1181, %v1623
    %1680 = vst [vmem:[#allocation2 + $0x40] sm:$0xff] %v1624
    %1681 = vst.msk [vmem:[#allocation2 + $0x48] sm:$0xff] %vm1181, %v1625
    %1682 = vst [vmem:[#allocation2 + $0x50] sm:$0xff] %v1626
    %1683 = vst.msk [vmem:[#allocation2 + $0x58] sm:$0xff] %vm1181, %v1627
    %1684 = vst [vmem:[#allocation2 + $0x60] sm:$0xff] %v1628
    %1685 = vst.msk [vmem:[#allocation2 + $0x68] sm:$0xff] %vm1181, %v1629
    %1686 = vst [vmem:[#allocation2 + $0x70] sm:$0xff] %v1630
    %1687 = vst.msk [vmem:[#allocation2 + $0x78] sm:$0xff] %vm1181, %v1631
    %1688 = vst [vmem:[#allocation2 + $0x80] sm:$0xff] %v1632
    %1689 = vst.msk [vmem:[#allocation2 + $0x88] sm:$0xff] %vm1181, %v1633
    %1690 = vst [vmem:[#allocation2 + $0x90] sm:$0xff] %v1634
    %1691 = vst.msk [vmem:[#allocation2 + $0x98] sm:$0xff] %vm1181, %v1635
    %1692 = vst [vmem:[#allocation2 + $0xa0] sm:$0xff] %v1636
    %1693 = vst.msk [vmem:[#allocation2 + $0xa8] sm:$0xff] %vm1181, %v1637
    %1694 = vst [vmem:[#allocation2 + $0xb0] sm:$0xff] %v1638
    %1695 = vst.msk [vmem:[#allocation2 + $0xb8] sm:$0xff] %vm1181, %v1639
    %1696 = vst [vmem:[#allocation2 + $0xc0] sm:$0xff] %v1640
    %1697 = vst.msk [vmem:[#allocation2 + $0xc8] sm:$0xff] %vm1181, %v1641
    %1698 = vst [vmem:[#allocation2 + $0xd0] sm:$0xff] %v1642
    %1699 = vst.msk [vmem:[#allocation2 + $0xd8] sm:$0xff] %vm1181, %v1643
    %1700 = vst [vmem:[#allocation2 + $0xe0] sm:$0xff] %v1644
    %1701 = vst.msk [vmem:[#allocation2 + $0xe8] sm:$0xff] %vm1181, %v1645
    %1702 = vst [vmem:[#allocation2 + $0xf0] sm:$0xff] %v1646
    %1703 = vst.msk [vmem:[#allocation2 + $0xf8] sm:$0xff] %vm1181, %v1647
    %1704 = vst [vmem:[#allocation2 + $0x100] sm:$0xff] %v1648
    %1705 = vst.msk [vmem:[#allocation2 + $0x108] sm:$0xff] %vm1181, %v1649
    %1706 = vst [vmem:[#allocation2 + $0x110] sm:$0xff] %v1650
    %1707 = vst.msk [vmem:[#allocation2 + $0x118] sm:$0xff] %vm1181, %v1651
    %1708 = vst [vmem:[#allocation2 + $0x120] sm:$0xff] %v1652
    %1709 = vst.msk [vmem:[#allocation2 + $0x128] sm:$0xff] %vm1181, %v1653
    %1710 = vst [vmem:[#allocation2 + $0x130] sm:$0xff] %v1654
    %1711 = vst.msk [vmem:[#allocation2 + $0x138] sm:$0xff] %vm1181, %v1655
    %1712 = vst [vmem:[#allocation2 + $0x140] sm:$0xff] %v1656
    %1713 = vst.msk [vmem:[#allocation2 + $0x148] sm:$0xff] %vm1181, %v1657
    %1714 = vst [vmem:[#allocation2 + $0x150] sm:$0xff] %v1658
    %1715 = vst.msk [vmem:[#allocation2 + $0x158] sm:$0xff] %vm1181, %v1659
    %1716 = vst [vmem:[#allocation2 + $0x160] sm:$0xff] %v1660
    %1717 = vst.msk [vmem:[#allocation2 + $0x168] sm:$0xff] %vm1181, %v1661
    %1718 = vst [vmem:[#allocation2 + $0x170] sm:$0xff] %v1662
    %1719 = vst.msk [vmem:[#allocation2 + $0x178] sm:$0xff] %vm1181, %v1663
    %1720 = vst [vmem:[#allocation2 + $0x180] sm:$0xff] %v1664
    %1721 = vst.msk [vmem:[#allocation2 + $0x188] sm:$0xff] %vm1181, %v1665
    %1722 = vst [vmem:[#allocation2 + $0x190] sm:$0xff] %v1666
    %1723 = vst.msk [vmem:[#allocation2 + $0x198] sm:$0xff] %vm1181, %v1667
    %1724 = vst [vmem:[#allocation2 + $0x1a0] sm:$0xff] %v1668
    %1725 = vst.msk [vmem:[#allocation2 + $0x1a8] sm:$0xff] %vm1181, %v1669
    %1726 = vst [vmem:[#allocation2 + $0x1b0] sm:$0xff] %v1670
    %1727 = vst.msk [vmem:[#allocation2 + $0x1b8] sm:$0xff] %vm1181, %v1671
    %v1728 = vsub.f32 %v1015, %v1558
    %v1729 = vsub.f32 %v1017, %v1558
    %v1730 = vsub.f32 %v1021, %v1558
    %v1731 = vsub.f32 %v1023, %v1558
    %v1732 = vsub.f32 %v1027, %v1558
    %v1733 = vsub.f32 %v1029, %v1558
    %v1734 = vsub.f32 %v1033, %v1558
    %v1735 = vsub.f32 %v1035, %v1558
    %v1736 = vsub.f32 %v1039, %v1558
    %v1737 = vsub.f32 %v1041, %v1558
    %v1738 = vsub.f32 %v1045, %v1558
    %v1739 = vsub.f32 %v1047, %v1558
    %v1740 = vsub.f32 %v1051, %v1558
    %v1741 = vsub.f32 %v1053, %v1558
    %v1742 = vsub.f32 %v1057, %v1558
    %v1743 = vsub.f32 %v1059, %v1558
    %v1744 = vsub.f32 %v1063, %v1558
    %v1745 = vsub.f32 %v1065, %v1558
    %v1746 = vsub.f32 %v1069, %v1558
    %v1747 = vsub.f32 %v1071, %v1558
    %v1748 = vsub.f32 %v1075, %v1558
    %v1749 = vsub.f32 %v1077, %v1558
    %v1750 = vsub.f32 %v1081, %v1558
    %v1751 = vsub.f32 %v1083, %v1558
    %v1752 = vsub.f32 %v1087, %v1558
    %v1753 = vsub.f32 %v1089, %v1558
    %v1754 = vsub.f32 %v1093, %v1558
    %v1755 = vsub.f32 %v1095, %v1558
    %v1756 = vsub.f32 %v1099, %v1558
    %v1757 = vsub.f32 %v1101, %v1558
    %v1758 = vsub.f32 %v1105, %v1558
    %v1759 = vsub.f32 %v1107, %v1558
    %v1760 = vsub.f32 %v1111, %v1558
    %v1761 = vsub.f32 %v1113, %v1558
    %v1762 = vsub.f32 %v1117, %v1558
    %v1763 = vsub.f32 %v1119, %v1558
    %v1764 = vsub.f32 %v1123, %v1558
    %v1765 = vsub.f32 %v1125, %v1558
    %v1766 = vsub.f32 %v1129, %v1558
    %v1767 = vsub.f32 %v1131, %v1558
    %v1768 = vsub.f32 %v1135, %v1558
    %v1769 = vsub.f32 %v1137, %v1558
    %v1770 = vsub.f32 %v1141, %v1558
    %v1771 = vsub.f32 %v1143, %v1558
    %v1772 = vsub.f32 %v1147, %v1558
    %v1773 = vsub.f32 %v1149, %v1558
    %v1774 = vsub.f32 %v1153, %v1558
    %v1775 = vsub.f32 %v1155, %v1558
    %v1776 = vsub.f32 %v1159, %v1558
    %v1777 = vsub.f32 %v1161, %v1558
    %v1778 = vsub.f32 %v1165, %v1558
    %v1779 = vsub.f32 %v1167, %v1558
    %v1780 = vsub.f32 %v1171, %v1558
    %v1781 = vsub.f32 %v1173, %v1558
    %v1782 = vsub.f32 %v1177, %v1558
    %v1783 = vsub.f32 %v1179, %v1558
    %v1784 = vmul.f32 %v1728, %v1615
    %v1785 = vmul.f32 %v1729, %v1615
    %v1786 = vmul.f32 %v1730, %v1615
    %v1787 = vmul.f32 %v1731, %v1615
    %v1788 = vmul.f32 %v1732, %v1615
    %v1789 = vmul.f32 %v1733, %v1615
    %v1790 = vmul.f32 %v1734, %v1615
    %v1791 = vmul.f32 %v1735, %v1615
    %v1792 = vmul.f32 %v1736, %v1615
    %v1793 = vmul.f32 %v1737, %v1615
    %v1794 = vmul.f32 %v1738, %v1615
    %v1795 = vmul.f32 %v1739, %v1615
    %v1796 = vmul.f32 %v1740, %v1615
    %v1797 = vmul.f32 %v1741, %v1615
    %v1798 = vmul.f32 %v1742, %v1615
    %v1799 = vmul.f32 %v1743, %v1615
    %v1800 = vmul.f32 %v1744, %v1615
    %v1801 = vmul.f32 %v1745, %v1615
    %v1802 = vmul.f32 %v1746, %v1615
    %v1803 = vmul.f32 %v1747, %v1615
    %v1804 = vmul.f32 %v1748, %v1615
    %v1805 = vmul.f32 %v1749, %v1615
    %v1806 = vmul.f32 %v1750, %v1615
    %v1807 = vmul.f32 %v1751, %v1615
    %v1808 = vmul.f32 %v1752, %v1615
    %v1809 = vmul.f32 %v1753, %v1615
    %v1810 = vmul.f32 %v1754, %v1615
    %v1811 = vmul.f32 %v1755, %v1615
    %v1812 = vmul.f32 %v1756, %v1615
    %v1813 = vmul.f32 %v1757, %v1615
    %v1814 = vmul.f32 %v1758, %v1615
    %v1815 = vmul.f32 %v1759, %v1615
    %v1816 = vmul.f32 %v1760, %v1615
    %v1817 = vmul.f32 %v1761, %v1615
    %v1818 = vmul.f32 %v1762, %v1615
    %v1819 = vmul.f32 %v1763, %v1615
    %v1820 = vmul.f32 %v1764, %v1615
    %v1821 = vmul.f32 %v1765, %v1615
    %v1822 = vmul.f32 %v1766, %v1615
    %v1823 = vmul.f32 %v1767, %v1615
    %v1824 = vmul.f32 %v1768, %v1615
    %v1825 = vmul.f32 %v1769, %v1615
    %v1826 = vmul.f32 %v1770, %v1615
    %v1827 = vmul.f32 %v1771, %v1615
    %v1828 = vmul.f32 %v1772, %v1615
    %v1829 = vmul.f32 %v1773, %v1615
    %v1830 = vmul.f32 %v1774, %v1615
    %v1831 = vmul.f32 %v1775, %v1615
    %v1832 = vmul.f32 %v1776, %v1615
    %v1833 = vmul.f32 %v1777, %v1615
    %v1834 = vmul.f32 %v1778, %v1615
    %v1835 = vmul.f32 %v1779, %v1615
    %v1836 = vmul.f32 %v1780, %v1615
    %v1837 = vmul.f32 %v1781, %v1615
    %v1838 = vmul.f32 %v1782, %v1615
    %v1839 = vmul.f32 %v1783, %v1615
    %s1840 = scalar_lea.vmem [#allocation2], 448
    %1841 = vst [vmem:[%s1840] sm:$0xff] %v1784
    %1842 = vst.msk [vmem:[%s1840 + $0x8] sm:$0xff] %vm1181, %v1785
    %1843 = vst [vmem:[%s1840 + $0x10] sm:$0xff] %v1786
    %1844 = vst.msk [vmem:[%s1840 + $0x18] sm:$0xff] %vm1181, %v1787
    %1845 = vst [vmem:[%s1840 + $0x20] sm:$0xff] %v1788
    %1846 = vst.msk [vmem:[%s1840 + $0x28] sm:$0xff] %vm1181, %v1789
    %1847 = vst [vmem:[%s1840 + $0x30] sm:$0xff] %v1790
    %1848 = vst.msk [vmem:[%s1840 + $0x38] sm:$0xff] %vm1181, %v1791
    %1849 = vst [vmem:[%s1840 + $0x40] sm:$0xff] %v1792
    %1850 = vst.msk [vmem:[%s1840 + $0x48] sm:$0xff] %vm1181, %v1793
    %1851 = vst [vmem:[%s1840 + $0x50] sm:$0xff] %v1794
    %1852 = vst.msk [vmem:[%s1840 + $0x58] sm:$0xff] %vm1181, %v1795
    %1853 = vst [vmem:[%s1840 + $0x60] sm:$0xff] %v1796
    %1854 = vst.msk [vmem:[%s1840 + $0x68] sm:$0xff] %vm1181, %v1797
    %1855 = vst [vmem:[%s1840 + $0x70] sm:$0xff] %v1798
    %1856 = vst.msk [vmem:[%s1840 + $0x78] sm:$0xff] %vm1181, %v1799
    %1857 = vst [vmem:[%s1840 + $0x80] sm:$0xff] %v1800
    %1858 = vst.msk [vmem:[%s1840 + $0x88] sm:$0xff] %vm1181, %v1801
    %1859 = vst [vmem:[%s1840 + $0x90] sm:$0xff] %v1802
    %1860 = vst.msk [vmem:[%s1840 + $0x98] sm:$0xff] %vm1181, %v1803
    %1861 = vst [vmem:[%s1840 + $0xa0] sm:$0xff] %v1804
    %1862 = vst.msk [vmem:[%s1840 + $0xa8] sm:$0xff] %vm1181, %v1805
    %1863 = vst [vmem:[%s1840 + $0xb0] sm:$0xff] %v1806
    %1864 = vst.msk [vmem:[%s1840 + $0xb8] sm:$0xff] %vm1181, %v1807
    %1865 = vst [vmem:[%s1840 + $0xc0] sm:$0xff] %v1808
    %1866 = vst.msk [vmem:[%s1840 + $0xc8] sm:$0xff] %vm1181, %v1809
    %1867 = vst [vmem:[%s1840 + $0xd0] sm:$0xff] %v1810
    %1868 = vst.msk [vmem:[%s1840 + $0xd8] sm:$0xff] %vm1181, %v1811
    %1869 = vst [vmem:[%s1840 + $0xe0] sm:$0xff] %v1812
    %1870 = vst.msk [vmem:[%s1840 + $0xe8] sm:$0xff] %vm1181, %v1813
    %1871 = vst [vmem:[%s1840 + $0xf0] sm:$0xff] %v1814
    %1872 = vst.msk [vmem:[%s1840 + $0xf8] sm:$0xff] %vm1181, %v1815
    %1873 = vst [vmem:[%s1840 + $0x100] sm:$0xff] %v1816
    %1874 = vst.msk [vmem:[%s1840 + $0x108] sm:$0xff] %vm1181, %v1817
    %1875 = vst [vmem:[%s1840 + $0x110] sm:$0xff] %v1818
    %1876 = vst.msk [vmem:[%s1840 + $0x118] sm:$0xff] %vm1181, %v1819
    %1877 = vst [vmem:[%s1840 + $0x120] sm:$0xff] %v1820
    %1878 = vst.msk [vmem:[%s1840 + $0x128] sm:$0xff] %vm1181, %v1821
    %1879 = vst [vmem:[%s1840 + $0x130] sm:$0xff] %v1822
    %1880 = vst.msk [vmem:[%s1840 + $0x138] sm:$0xff] %vm1181, %v1823
    %1881 = vst [vmem:[%s1840 + $0x140] sm:$0xff] %v1824
    %1882 = vst.msk [vmem:[%s1840 + $0x148] sm:$0xff] %vm1181, %v1825
    %1883 = vst [vmem:[%s1840 + $0x150] sm:$0xff] %v1826
    %1884 = vst.msk [vmem:[%s1840 + $0x158] sm:$0xff] %vm1181, %v1827
    %1885 = vst [vmem:[%s1840 + $0x160] sm:$0xff] %v1828
    %1886 = vst.msk [vmem:[%s1840 + $0x168] sm:$0xff] %vm1181, %v1829
    %1887 = vst [vmem:[%s1840 + $0x170] sm:$0xff] %v1830
    %1888 = vst.msk [vmem:[%s1840 + $0x178] sm:$0xff] %vm1181, %v1831
    %1889 = vst [vmem:[%s1840 + $0x180] sm:$0xff] %v1832
    %1890 = vst.msk [vmem:[%s1840 + $0x188] sm:$0xff] %vm1181, %v1833
    %1891 = vst [vmem:[%s1840 + $0x190] sm:$0xff] %v1834
    %1892 = vst.msk [vmem:[%s1840 + $0x198] sm:$0xff] %vm1181, %v1835
    %1893 = vst [vmem:[%s1840 + $0x1a0] sm:$0xff] %v1836
    %1894 = vst.msk [vmem:[%s1840 + $0x1a8] sm:$0xff] %vm1181, %v1837
    %1895 = vst [vmem:[%s1840 + $0x1b0] sm:$0xff] %v1838
    %1896 = vst.msk [vmem:[%s1840 + $0x1b8] sm:$0xff] %vm1181, %v1839
    // Predicated region
    $region14: #{visual_similarity_forward.3} parent=1 // pred_check
      _
    $region15: #{visual_similarity_forward.3} parent=1 // pred_check_branch
      %1898 = sbr.rel (0) target = $region17
    $region16: #{visual_similarity_forward.3} parent=1 // pred_region
      %s1900 = ssub.s32 14336, 14336
      %1901 = vsyncadd [#allocation3], %s1900
      %s1902 = sshll.u32 [#allocation2], 4
      %s1903 = int_to_ptr.vmem [resolvable:$true] %s1902
      %1908 = dma.vmem_to_hbm [thread:$0]  %s1903, 14336, %s3, [#allocation3], 256, 256, 16
    $region17: #{visual_similarity_forward.3} parent=1 // pred_fallthru
      _
    // Predicated region
    $region18: #{visual_similarity_forward.3} parent=1 // pred_check
      _
    $region19: #{visual_similarity_forward.3} parent=1 // pred_check_branch
      %1910 = sbr.rel (0) target = $region21
    $region20: #{visual_similarity_forward.3} parent=1 // pred_region
      %1911 = dma.done [#allocation3], 14336
    $region21: #{visual_similarity_forward.3} parent=1 // pred_fallthru
      _
    %1912 = vsyncpa [#allocation3], 1

</llo_original>
